<compile_context>
chip_gen: v7x
topology: tpu7x:2x2x1
jax: 0.10.0
libtpu: 0.0.40
codegen_flags: <defaults>
</compile_context>

<pallas_src>
import functools

import jax
import jax.numpy as jnp
from jax import lax
from jax.experimental import pallas as pl
from jax.experimental.pallas import tpu as pltpu


# ----------------------------------------------------------------------------
# Fused Pallas kernel
# ----------------------------------------------------------------------------
def _layer_norm(v, g, b):
    # eps = 1e-5 to match torch.nn.LayerNorm default.
    mu = jnp.mean(v, axis=-1, keepdims=True)
    var = jnp.mean(jnp.square(v - mu), axis=-1, keepdims=True)
    return (v - mu) * lax.rsqrt(var + 1e-5) * g + b


def _fused_policy_kernel(
    x_ref, adj_ref, topo_ref,
    linw_ref, linb_ref,
    ln1g_ref, ln1b_ref, wqkv_ref, bqkv_ref, wo_ref, bo_ref,
    ln2g_ref, ln2b_ref, w1_ref, b1_ref, w2_ref, b2_ref,
    downw_ref, downb_ref, whd_ref, wht_ref, bh_ref,
    o_ref, *, nheads, num_layers,
):
    bb, n, f_ind = x_ref.shape
    d = bo_ref.shape[-1]
    dk = d // nheads
    gh = nheads * bb                       # fused (head, sample) batch axis
    bf16 = jnp.bfloat16

    # ---- adjacency mask hoisted OUT of the 9-layer loop: additive bias,
    #      pre-broadcast to the head axis (head-major index = head*bb + b).
    adj_bias = jnp.where(adj_ref[...] == 0.0, jnp.float32(-1e9), jnp.float32(0.0))
    adj_bias_g = jnp.broadcast_to(adj_bias[None], (nheads, bb, n, n)).reshape(gh, n, n)

    # ---- linear_layer: DenseBlock(F_ind -> D), Identity non-lin, batch folded
    #      into the matmul M dimension ((bb*N, F_ind) slab).  f32 (tiny, odd K).
    x = jnp.dot(x_ref[...].reshape(bb * n, f_ind), linw_ref[...],
                preferred_element_type=jnp.float32) + linb_ref[...]

    # ---- 6 latent + 3 head SMAAC GAT layers.  Weights stacked on a leading L
    #      axis; lax.fori_loop bounds live ranges (vs. a 9x python unroll) and
    #      reads each layer's weights with a dynamic ref[l] on the untiled axis.
    def gat_layer(l, x):
        # -- adjacency-masked multi-head self-attention + residual -----------
        xn = _layer_norm(x, ln1g_ref[l], ln1b_ref[l])
        # Fused Q|K|V projection.  Q columns of wqkv are pre-scaled by
        # 1/sqrt(dk) at init (softmax scale folded away).  One f32->bf16 cast
        # of the whole qkv slab; q/k/v slices below need no further casts.
        qkv = (jnp.dot(xn.astype(bf16), wqkv_ref[l],
                       preferred_element_type=jnp.float32)
               + bqkv_ref[l]).astype(bf16)                        # (bb*n, 3d)

        # heads -> leading batch axis once per layer: (bb*n, 3h, dk) -> (3h, bb*n, dk)
        qkv3 = pltpu.einshape("ngd->gnd", qkv.reshape(bb * n, 3 * nheads, dk))
        q = qkv3[0 * nheads:1 * nheads].reshape(gh, n, dk)        # (h*bb, n, dk)
        k = qkv3[1 * nheads:2 * nheads].reshape(gh, n, dk)
        v = qkv3[2 * nheads:3 * nheads].reshape(gh, n, dk)

        # ONE batched contraction over (bb*h): no per-sample loop, no concat.
        s = jnp.einsum("gqd,gkd->gqk", q, k,
                       preferred_element_type=jnp.float32) + adj_bias_g
        s = s - jnp.max(s, axis=-1, keepdims=True)                # f32 softmax
        p = jnp.exp(s)
        p = p * pl.reciprocal(jnp.sum(p, axis=-1, keepdims=True), approx=True)
        ctx = jnp.einsum("gqk,gkd->gqd", p.astype(bf16), v,
                         preferred_element_type=jnp.float32)      # (h*bb, n, dk)

        # merge heads back onto the lane axis -> single (bb*n,d)x(d,d) out-proj
        ctx = pltpu.einshape("gnd->ngd", ctx.reshape(nheads, bb * n, dk))
        ctx = ctx.reshape(bb * n, d).astype(bf16)
        x = x + jnp.dot(ctx, wo_ref[l],
                        preferred_element_type=jnp.float32) + bo_ref[l]

        # -- position-wise feed-forward + residual ----------------------------
        xn = _layer_norm(x, ln2g_ref[l], ln2b_ref[l])
        h1 = jnp.maximum(
            jnp.dot(xn.astype(bf16), w1_ref[l],
                    preferred_element_type=jnp.float32) + b1_ref[l], 0.0)
        x = x + jnp.dot(h1.astype(bf16), w2_ref[l],
                        preferred_element_type=jnp.float32) + b2_ref[l]
        return x

    x = lax.fori_loop(0, num_layers, gat_layer, x)

    # ---- down_sample (D -> 1) kept in VMEM as a (bb, N) row block; squeeze +
    #      concat(topo) + leaky_relu + ALL action heads fused into one matmul
    #      pair (concat folded away by splitting the stacked head weights).
    down = jnp.sum(x.reshape(bb, n, d) * downw_ref[...], axis=-1) + downb_ref[...]
    a_down = jnp.where(down >= 0.0, down, 0.01 * down)     # F.leaky_relu, slope 0.01
    topo = topo_ref[...]                                    # (bb, n_topo)
    a_topo = jnp.where(topo >= 0.0, topo, 0.01 * topo)
    o_ref[...] = (
        jnp.dot(a_down, whd_ref[...], preferred_element_type=jnp.float32)
        + jnp.dot(a_topo, wht_ref[...], preferred_element_type=jnp.float32)
        + bh_ref[...]
    )


# ----------------------------------------------------------------------------
# Wrapper: one pallas_call for the whole forward
# ----------------------------------------------------------------------------
def _tensorcores_per_chip():
    """Grid-size heuristic: 2 TensorCores on v7x megacore, 1 on v5e/v6e."""
    try:
        kind = jax.devices()[0].device_kind.lower()
    except Exception:
        return 1
    return 2 if "v7" in kind else 1


def _replicated_spec(a):
    nd = a.ndim
    return pl.BlockSpec(a.shape, lambda i, _nd=nd: (0,) * _nd)


def _cost_estimate(bsz, n, f_ind, d, nheads, n_topo, a_total, num_layers,
                   operands, out_nbytes):
    per_layer = (2 * n * d * 3 * d          # fused QKV projection
                 + 2 * 2 * n * n * d        # scores + context
                 + 3 * 2 * n * d * d)       # out-proj + 2 FF matmuls
    flops = bsz * (2 * n * f_ind * d
                   + num_layers * per_layer
                   + 2 * n * d
                   + 2 * (n + n_topo) * a_total)
    transcendentals = bsz * num_layers * (nheads * n * n + nheads * n)
    bytes_accessed = out_nbytes + sum(int(a.size) * a.dtype.itemsize for a in operands)
    return pl.CostEstimate(flops=int(flops), transcendentals=int(transcendentals),
                           bytes_accessed=int(bytes_accessed))


def maze_smaac_policy_forward(obs, params, nheads, batch_block=None):
    x_ind = obs["independent_of_action"]   # (B, N, F_ind)
    adj = obs["dependent_on_action"]       # (B, N, N)
    topo = obs["topo"]                     # (B, N_topo, 1)

    bsz, n, f_ind = x_ind.shape
    n_topo = topo.shape[1]
    d = params["linear_w"].shape[1]
    num_layers = params["gat"]["wqkv"].shape[0]
    a_total = params["head_b"].shape[-1]
    assert d % nheads == 0

    # Grid = TensorCore count (g=1 on v5e/v6e, g=2 on v7x); the whole per-core
    # batch is folded into the matmul M dimension inside a single block.
    if batch_block is None:
        n_tc = _tensorcores_per_chip()
        gdiv = n_tc if (bsz % n_tc == 0 and bsz >= n_tc) else 1
        batch_block = bsz // gdiv
    assert bsz % batch_block == 0
    bb = batch_block
    g = bsz // bb

    # Pure layout glue outside the kernel (includes 'squeeze_topo').
    x_g = x_ind.reshape(g, bb, n, f_ind)
    adj_g = adj.reshape(g, bb, n, n)
    topo_g = topo.reshape(g, bb, n_topo)

    gat = params["gat"]
    weight_args = (
        params["linear_w"], params["linear_b"],
        gat["ln1_g"], gat["ln1_b"], gat["wqkv"], gat["bqkv"],
        gat["wo"], gat["bo"], gat["ln2_g"], gat["ln2_b"],
        gat["w1"], gat["b1"], gat["w2"], gat["b2"],
        params["down_w_row"], params["down_b"],
        params["head_w_down"], params["head_w_topo"], params["head_b"],
    )

    in_specs = [
        pl.BlockSpec((pl.Squeezed(), bb, n, f_ind), lambda i: (i, 0, 0, 0)),
        pl.BlockSpec((pl.Squeezed(), bb, n, n), lambda i: (i, 0, 0, 0)),
        pl.BlockSpec((pl.Squeezed(), bb, n_topo), lambda i: (i, 0, 0)),
    ] + [_replicated_spec(a) for a in weight_args]
    out_specs = pl.BlockSpec((pl.Squeezed(), bb, a_total), lambda i: (i, 0, 0))

    out_nbytes = g * bb * a_total * 4
    cost = _cost_estimate(bsz, n, f_ind, d, nheads, n_topo, a_total, num_layers,
                          (x_g, adj_g, topo_g) + weight_args, out_nbytes)

    logits = pl.pallas_call(
        functools.partial(_fused_policy_kernel, nheads=nheads, num_layers=num_layers),
        out_shape=jax.ShapeDtypeStruct((g, bb, a_total), jnp.float32),
        grid=(g,),
        in_specs=in_specs,
        out_specs=out_specs,
        compiler_params=pltpu.CompilerParams(dimension_semantics=("parallel",)),
        cost_estimate=cost,
    )(x_g, adj_g, topo_g, *weight_args)

    logits = logits.reshape(bsz, a_total)
    out = {}
    off = 0
    for name, a in zip(params["head_names"], params["head_sizes"]):
        out[name] = logits[:, off:off + a]
        off += a
    return out


# ----------------------------------------------------------------------------
# Parameter construction (deterministic, synthetic)
# ----------------------------------------------------------------------------
def normc_init(key, shape, std=1.0):
    """normc initializer used by make_module_init_normc."""
    w = jax.random.normal(key, shape, dtype=jnp.float32)
    return w * std / jnp.sqrt(jnp.sum(jnp.square(w), axis=0, keepdims=True))


def init_params(key, f_ind, state_dim, n_nodes, n_topo, nheads,
                action_logits_shapes, num_latent_layers=6, num_head_layers=3):
    d = state_dim
    dk = d // nheads
    num_layers = num_latent_layers + num_head_layers
    keys = jax.random.split(key, 8)
    scale = 1.0 / jnp.sqrt(jnp.float32(d))

    def lin_w(k, shape):
        return jax.random.normal(k, shape, jnp.float32) * scale

    kq, kk, kv, ko, k1, k2 = jax.random.split(keys[1], 6)
    # Softmax 1/sqrt(dk) scale folded into the Q projection (kernel does not rescale).
    wq = lin_w(kq, (num_layers, d, d)) * (1.0 / jnp.sqrt(jnp.float32(dk)))
    wk = lin_w(kk, (num_layers, d, d))
    wv = lin_w(kv, (num_layers, d, d))
    wo = lin_w(ko, (num_layers, d, d))
    w1 = lin_w(k1, (num_layers, d, d))
    w2 = lin_w(k2, (num_layers, d, d))

    gat = dict(
        ln1_g=jnp.ones((num_layers, 1, d), jnp.float32),
        ln1_b=jnp.zeros((num_layers, 1, d), jnp.float32),
        # fused Q|K|V weight, bf16 for the MXU (accumulation stays f32 in-kernel)
        wqkv=jnp.concatenate([wq, wk, wv], axis=-1).astype(jnp.bfloat16),  # (L, d, 3d)
        bqkv=jnp.zeros((num_layers, 1, 3 * d), jnp.float32),
        wo=wo.astype(jnp.bfloat16),                                         # (L, d, d)
        bo=jnp.zeros((num_layers, 1, d), jnp.float32),
        ln2_g=jnp.ones((num_layers, 1, d), jnp.float32),
        ln2_b=jnp.zeros((num_layers, 1, d), jnp.float32),
        w1=w1.astype(jnp.bfloat16), b1=jnp.zeros((num_layers, 1, d), jnp.float32),
        w2=w2.astype(jnp.bfloat16), b2=jnp.zeros((num_layers, 1, d), jnp.float32),
    )

    concat_dim = n_nodes + n_topo
    head_names = sorted(action_logits_shapes.keys())
    head_sizes = [int(action_logits_shapes[k][-1]) for k in head_names]
    head_w = jnp.concatenate(
        [normc_init(jax.random.fold_in(keys[4], i), (concat_dim, a), std=0.01)
         for i, a in enumerate(head_sizes)], axis=-1)              # (N+N_topo, A_total)

    return dict(
        linear_w=normc_init(keys[0], (f_ind, d), std=1.0),
        linear_b=jnp.zeros((1, d), jnp.float32),
        gat=gat,
        down_w_row=normc_init(keys[3], (d, 1), std=1.0).reshape(1, d),
        down_b=jnp.zeros((1, 1), jnp.float32),
        head_w_down=head_w[:n_nodes],          # f32 (tiny; no quantization here)
        head_w_topo=head_w[n_nodes:],
        head_b=jnp.zeros((1, int(sum(head_sizes))), jnp.float32),
        head_names=head_names,
        head_sizes=head_sizes,
    )


# ----------------------------------------------------------------------------
# Demo
# ----------------------------------------------------------------------------
if __name__ == "__main__":
    key = jax.random.PRNGKey(0)

    B = 2            # batch
    N = 16           # number of graph nodes
    F_IND = 12       # 'independent_of_action' feature dim
    STATE_DIM = 32   # embedding dim
    NHEADS = 4
    N_TOPO = 16      # topo vector length (obs 'topo' has shape (N_TOPO, 1))
    action_logits_shapes = {"action_logits": (8,)}

    k_x, k_adj, k_topo, k_params = jax.random.split(key, 4)

    x_ind = jax.random.normal(k_x, (B, N, F_IND), dtype=jnp.float32)

    # adjacency ('dependent_on_action'): symmetric 0/1 with self-loops
    a = (jax.random.uniform(k_adj, (B, N, N)) < 0.3).astype(jnp.float32)
    a = jnp.maximum(a, jnp.transpose(a, (0, 2, 1)))
    adj = jnp.maximum(a, jnp.eye(N, dtype=jnp.float32)[None])

    topo = jnp.sign(jax.random.normal(k_topo, (B, N_TOPO, 1))).astype(jnp.float32)

    params = init_params(k_params, F_IND, STATE_DIM, N, N_TOPO, NHEADS,
                         action_logits_shapes)

    obs = {"independent_of_action": x_ind, "dependent_on_action": adj, "topo": topo}

    out = maze_smaac_policy_forward(obs, params, NHEADS)
    for v in out.values():
        jax.block_until_ready(v)

    assert out["action_logits"].shape == (B, 8)
    assert bool(jnp.all(jnp.isfinite(out["action_logits"])))
    print("KERNEL_OK")
</pallas_src>

<mosaic_0001>
module attributes {stable_mosaic.version = 11 : i64} {
  func.func @_fused_policy_kernel(%arg0: i32, %arg1: memref<1x2x16x12xf32, #tpu.memory_space<vmem>>, %arg2: memref<1x2x16x16xf32, #tpu.memory_space<vmem>>, %arg3: memref<1x2x16xf32, #tpu.memory_space<vmem>>, %arg4: memref<12x32xf32, #tpu.memory_space<vmem>>, %arg5: memref<1x32xf32, #tpu.memory_space<vmem>>, %arg6: memref<9x1x32xf32, #tpu.memory_space<vmem>>, %arg7: memref<9x1x32xf32, #tpu.memory_space<vmem>>, %arg8: memref<9x32x96xbf16, #tpu.memory_space<vmem>>, %arg9: memref<9x1x96xf32, #tpu.memory_space<vmem>>, %arg10: memref<9x32x32xbf16, #tpu.memory_space<vmem>>, %arg11: memref<9x1x32xf32, #tpu.memory_space<vmem>>, %arg12: memref<9x1x32xf32, #tpu.memory_space<vmem>>, %arg13: memref<9x1x32xf32, #tpu.memory_space<vmem>>, %arg14: memref<9x32x32xbf16, #tpu.memory_space<vmem>>, %arg15: memref<9x1x32xf32, #tpu.memory_space<vmem>>, %arg16: memref<9x32x32xbf16, #tpu.memory_space<vmem>>, %arg17: memref<9x1x32xf32, #tpu.memory_space<vmem>>, %arg18: memref<1x32xf32, #tpu.memory_space<vmem>>, %arg19: memref<1x1xf32, #tpu.memory_space<vmem>>, %arg20: memref<16x8xf32, #tpu.memory_space<vmem>>, %arg21: memref<16x8xf32, #tpu.memory_space<vmem>>, %arg22: memref<1x8xf32, #tpu.memory_space<vmem>>, %arg23: memref<1x2x8xf32, #tpu.memory_space<vmem>>) attributes {dimension_semantics = [#tpu.dimension_semantics<parallel>], iteration_bounds = array<i64: 1>, scalar_prefetch = 0 : i64, scratch_operands = 0 : i64, tpu.core_type = #tpu.core_type<tc>, window_params = [{transform_indices = @transform_0, window_bounds = array<i64: 1, 2, 16, 12>}, {transform_indices = @transform_1, window_bounds = array<i64: 1, 2, 16, 16>}, {transform_indices = @transform_2, window_bounds = array<i64: 1, 2, 16>}, {pipeline_mode = #tpu.pipeline_mode<synchronous>, transform_indices = @transform_3, window_bounds = array<i64: 12, 32>}, {pipeline_mode = #tpu.pipeline_mode<synchronous>, transform_indices = @transform_4, window_bounds = array<i64: 1, 32>}, {pipeline_mode = #tpu.pipeline_mode<synchronous>, transform_indices = @transform_5, window_bounds = array<i64: 9, 1, 32>}, {pipeline_mode = #tpu.pipeline_mode<synchronous>, transform_indices = @transform_6, window_bounds = array<i64: 9, 1, 32>}, {pipeline_mode = #tpu.pipeline_mode<synchronous>, transform_indices = @transform_7, window_bounds = array<i64: 9, 32, 96>}, {pipeline_mode = #tpu.pipeline_mode<synchronous>, transform_indices = @transform_8, window_bounds = array<i64: 9, 1, 96>}, {pipeline_mode = #tpu.pipeline_mode<synchronous>, transform_indices = @transform_9, window_bounds = array<i64: 9, 32, 32>}, {pipeline_mode = #tpu.pipeline_mode<synchronous>, transform_indices = @transform_10, window_bounds = array<i64: 9, 1, 32>}, {pipeline_mode = #tpu.pipeline_mode<synchronous>, transform_indices = @transform_11, window_bounds = array<i64: 9, 1, 32>}, {pipeline_mode = #tpu.pipeline_mode<synchronous>, transform_indices = @transform_12, window_bounds = array<i64: 9, 1, 32>}, {pipeline_mode = #tpu.pipeline_mode<synchronous>, transform_indices = @transform_13, window_bounds = array<i64: 9, 32, 32>}, {pipeline_mode = #tpu.pipeline_mode<synchronous>, transform_indices = @transform_14, window_bounds = array<i64: 9, 1, 32>}, {pipeline_mode = #tpu.pipeline_mode<synchronous>, transform_indices = @transform_15, window_bounds = array<i64: 9, 32, 32>}, {pipeline_mode = #tpu.pipeline_mode<synchronous>, transform_indices = @transform_16, window_bounds = array<i64: 9, 1, 32>}, {pipeline_mode = #tpu.pipeline_mode<synchronous>, transform_indices = @transform_17, window_bounds = array<i64: 1, 32>}, {pipeline_mode = #tpu.pipeline_mode<synchronous>, transform_indices = @transform_18, window_bounds = array<i64: 1, 1>}, {pipeline_mode = #tpu.pipeline_mode<synchronous>, transform_indices = @transform_19, window_bounds = array<i64: 16, 8>}, {pipeline_mode = #tpu.pipeline_mode<synchronous>, transform_indices = @transform_20, window_bounds = array<i64: 16, 8>}, {pipeline_mode = #tpu.pipeline_mode<synchronous>, transform_indices = @transform_21, window_bounds = array<i64: 1, 8>}, {transform_indices = @transform_22, window_bounds = array<i64: 1, 2, 8>}]} {
    %c0 = arith.constant 0 : index
    %c0_0 = arith.constant 0 : index
    %c0_1 = arith.constant 0 : index
    %c0_2 = arith.constant 0 : index
    %0 = vector.load %arg2[%c0, %c0_0, %c0_1, %c0_2] : memref<1x2x16x16xf32, #tpu.memory_space<vmem>>, vector<1x2x16x16xf32>
    %1 = vector.shape_cast %0 : vector<1x2x16x16xf32> to vector<2x16x16xf32>
    %cst = arith.constant 0.000000e+00 : f32
    %2 = vector.broadcast %cst : f32 to vector<2x16x16xf32>
    %3 = arith.cmpf oeq, %1, %2 : vector<2x16x16xf32>
    %cst_3 = arith.constant -1.000000e+09 : f32
    %cst_4 = arith.constant 0.000000e+00 : f32
    %4 = vector.broadcast %cst_3 : f32 to vector<2x16x16xf32>
    %5 = vector.broadcast %cst_4 : f32 to vector<2x16x16xf32>
    %6 = arith.select %3, %4, %5 : vector<2x16x16xi1>, vector<2x16x16xf32>
    %7 = vector.shape_cast %6 : vector<2x16x16xf32> to vector<1x2x16x16xf32>
    %8 = vector.shape_cast %7 : vector<1x2x16x16xf32> to vector<1x2x16x16xf32>
    %9 = vector.broadcast %8 : vector<1x2x16x16xf32> to vector<4x2x16x16xf32>
    %10 = vector.shape_cast %9 : vector<4x2x16x16xf32> to vector<8x16x16xf32>
    %c0_5 = arith.constant 0 : index
    %c0_6 = arith.constant 0 : index
    %c0_7 = arith.constant 0 : index
    %c0_8 = arith.constant 0 : index
    %11 = vector.load %arg1[%c0_5, %c0_6, %c0_7, %c0_8] : memref<1x2x16x12xf32, #tpu.memory_space<vmem>>, vector<1x2x16x12xf32>
    %12 = vector.shape_cast %11 : vector<1x2x16x12xf32> to vector<2x16x12xf32>
    %13 = vector.shape_cast %12 : vector<2x16x12xf32> to vector<32x12xf32>
    %c0_9 = arith.constant 0 : index
    %c0_10 = arith.constant 0 : index
    %14 = vector.load %arg4[%c0_9, %c0_10] : memref<12x32xf32, #tpu.memory_space<vmem>>, vector<12x32xf32>
    %cst_11 = arith.constant dense<0.000000e+00> : vector<32x32xf32>
    %15 = tpu.matmul %13, %14, %cst_11 {dimension_numbers = #tpu.dot_dimension_numbers<[1], [0], [0], [1], [0, 0, 1, 1], [], []>} : vector<32x12xf32>, vector<12x32xf32>, vector<32x32xf32> -> vector<32x32xf32>
    %c0_12 = arith.constant 0 : index
    %c0_13 = arith.constant 0 : index
    %16 = vector.load %arg5[%c0_12, %c0_13] : memref<1x32xf32, #tpu.memory_space<vmem>>, vector<1x32xf32>
    %17 = vector.broadcast %16 : vector<1x32xf32> to vector<32x32xf32>
    %18 = arith.addf %15, %17 : vector<32x32xf32>
    %c0_i32 = arith.constant 0 : i32
    %c9_i32 = arith.constant 9 : i32
    %19 = arith.addi %c0_i32, %c9_i32 : i32
    %c1_i32 = arith.constant 1 : i32
    %20 = scf.for %arg24 = %c0_i32 to %19 step %c1_i32 iter_args(%arg25 = %18) -> (vector<32x32xf32>)  : i32 {
      %53 = arith.index_cast %arg24 : i32 to index
      %c0_38 = arith.constant 0 : index
      %c0_39 = arith.constant 0 : index
      %54 = vector.load %arg6[%53, %c0_38, %c0_39] : memref<9x1x32xf32, #tpu.memory_space<vmem>>, vector<1x1x32xf32>
      %55 = vector.shape_cast %54 : vector<1x1x32xf32> to vector<1x32xf32>
      %56 = arith.index_cast %arg24 : i32 to index
      %c0_40 = arith.constant 0 : index
      %c0_41 = arith.constant 0 : index
      %57 = vector.load %arg7[%56, %c0_40, %c0_41] : memref<9x1x32xf32, #tpu.memory_space<vmem>>, vector<1x1x32xf32>
      %58 = vector.shape_cast %57 : vector<1x1x32xf32> to vector<1x32xf32>
      %cst_42 = arith.constant dense<0.000000e+00> : vector<32xf32>
      %59 = vector.multi_reduction <add>, %arg25, %cst_42 [1] : vector<32x32xf32> to vector<32xf32>
      %60 = vector.shape_cast %59 : vector<32xf32> to vector<32x1xf32>
      %cst_43 = arith.constant 3.200000e+01 : f32
      %61 = vector.broadcast %cst_43 : f32 to vector<32x1xf32>
      %62 = arith.divf %60, %61 : vector<32x1xf32>
      %63 = vector.broadcast %62 : vector<32x1xf32> to vector<32x32xf32>
      %64 = arith.subf %arg25, %63 : vector<32x32xf32>
      %65 = arith.mulf %64, %64 : vector<32x32xf32>
      %cst_44 = arith.constant dense<0.000000e+00> : vector<32xf32>
      %66 = vector.multi_reduction <add>, %65, %cst_44 [1] : vector<32x32xf32> to vector<32xf32>
      %67 = vector.shape_cast %66 : vector<32xf32> to vector<32x1xf32>
      %cst_45 = arith.constant 3.200000e+01 : f32
      %68 = vector.broadcast %cst_45 : f32 to vector<32x1xf32>
      %69 = arith.divf %67, %68 : vector<32x1xf32>
      %70 = vector.broadcast %62 : vector<32x1xf32> to vector<32x32xf32>
      %71 = arith.subf %arg25, %70 : vector<32x32xf32>
      %cst_46 = arith.constant 9.99999974E-6 : f32
      %72 = vector.broadcast %cst_46 : f32 to vector<32x1xf32>
      %73 = arith.addf %69, %72 : vector<32x1xf32>
      %74 = math.rsqrt %73 : vector<32x1xf32>
      %75 = vector.broadcast %74 : vector<32x1xf32> to vector<32x32xf32>
      %76 = arith.mulf %71, %75 : vector<32x32xf32>
      %77 = vector.broadcast %55 : vector<1x32xf32> to vector<32x32xf32>
      %78 = arith.mulf %76, %77 : vector<32x32xf32>
      %79 = vector.broadcast %58 : vector<1x32xf32> to vector<32x32xf32>
      %80 = arith.addf %78, %79 : vector<32x32xf32>
      %81 = arith.truncf %80 : vector<32x32xf32> to vector<32x32xbf16>
      %82 = arith.index_cast %arg24 : i32 to index
      %c0_47 = arith.constant 0 : index
      %c0_48 = arith.constant 0 : index
      %83 = vector.load %arg8[%82, %c0_47, %c0_48] : memref<9x32x96xbf16, #tpu.memory_space<vmem>>, vector<1x32x96xbf16>
      %84 = vector.shape_cast %83 : vector<1x32x96xbf16> to vector<32x96xbf16>
      %cst_49 = arith.constant dense<0.000000e+00> : vector<32x96xf32>
      %85 = tpu.matmul %81, %84, %cst_49 {dimension_numbers = #tpu.dot_dimension_numbers<[1], [0], [0], [1], [0, 0, 1, 1], [], []>} : vector<32x32xbf16>, vector<32x96xbf16>, vector<32x96xf32> -> vector<32x96xf32>
      %86 = arith.index_cast %arg24 : i32 to index
      %c0_50 = arith.constant 0 : index
      %c0_51 = arith.constant 0 : index
      %87 = vector.load %arg9[%86, %c0_50, %c0_51] : memref<9x1x96xf32, #tpu.memory_space<vmem>>, vector<1x1x96xf32>
      %88 = vector.shape_cast %87 : vector<1x1x96xf32> to vector<1x96xf32>
      %89 = vector.broadcast %88 : vector<1x96xf32> to vector<32x96xf32>
      %90 = arith.addf %85, %89 : vector<32x96xf32>
      %91 = arith.truncf %90 : vector<32x96xf32> to vector<32x96xbf16>
      %92 = vector.shape_cast %91 : vector<32x96xbf16> to vector<32x12x8xbf16>
      %93 = tpu.transpose %92, [1, 0, 2] : vector<32x12x8xbf16> -> vector<12x32x8xbf16>
      %94 = vector.extract_strided_slice %93 {offsets = [0, 0, 0], sizes = [4, 32, 8], strides = [1, 1, 1]} : vector<12x32x8xbf16> to vector<4x32x8xbf16>
      %95 = vector.shape_cast %94 : vector<4x32x8xbf16> to vector<8x16x8xbf16>
      %96 = vector.extract_strided_slice %93 {offsets = [4, 0, 0], sizes = [4, 32, 8], strides = [1, 1, 1]} : vector<12x32x8xbf16> to vector<4x32x8xbf16>
      %97 = vector.shape_cast %96 : vector<4x32x8xbf16> to vector<8x16x8xbf16>
      %98 = vector.extract_strided_slice %93 {offsets = [8, 0, 0], sizes = [4, 32, 8], strides = [1, 1, 1]} : vector<12x32x8xbf16> to vector<4x32x8xbf16>
      %99 = vector.shape_cast %98 : vector<4x32x8xbf16> to vector<8x16x8xbf16>
      "tpu.trace_start"() <{level = 10 : i32, message = "gqd,gkd->gqk"}> : () -> ()
      %cst_52 = arith.constant dense<0.000000e+00> : vector<8x16x16xf32>
      %100 = tpu.matmul %95, %97, %cst_52 {dimension_numbers = #tpu.dot_dimension_numbers<[2], [2], [1], [1], [0, 0, 0, 1, 1, 1], [0], [0]>} : vector<8x16x8xbf16>, vector<8x16x8xbf16>, vector<8x16x16xf32> -> vector<8x16x16xf32>
      "tpu.trace_stop"() : () -> ()
      %101 = arith.addf %100, %10 : vector<8x16x16xf32>
      %cst_53 = arith.constant dense<0xFF800000> : vector<8x16xf32>
      %102 = vector.multi_reduction <maximumf>, %101, %cst_53 [2] : vector<8x16x16xf32> to vector<8x16xf32>
      %103 = vector.shape_cast %102 : vector<8x16xf32> to vector<8x16x1xf32>
      %104 = vector.broadcast %103 : vector<8x16x1xf32> to vector<8x16x16xf32>
      %105 = arith.subf %101, %104 : vector<8x16x16xf32>
      %106 = math.exp %105 : vector<8x16x16xf32>
      %cst_54 = arith.constant dense<0.000000e+00> : vector<8x16xf32>
      %107 = vector.multi_reduction <add>, %106, %cst_54 [2] : vector<8x16x16xf32> to vector<8x16xf32>
      %108 = vector.shape_cast %107 : vector<8x16xf32> to vector<8x16x1xf32>
      %109 = tpu.reciprocal %108 {approx = true} : vector<8x16x1xf32> -> vector<8x16x1xf32>
      %110 = vector.broadcast %109 : vector<8x16x1xf32> to vector<8x16x16xf32>
      %111 = arith.mulf %106, %110 : vector<8x16x16xf32>
      %112 = arith.truncf %111 : vector<8x16x16xf32> to vector<8x16x16xbf16>
      "tpu.trace_start"() <{level = 10 : i32, message = "gqk,gkd->gqd"}> : () -> ()
      %cst_55 = arith.constant dense<0.000000e+00> : vector<8x16x8xf32>
      %113 = tpu.matmul %112, %99, %cst_55 {dimension_numbers = #tpu.dot_dimension_numbers<[2], [1], [1], [2], [0, 0, 0, 1, 1, 2], [0], [0]>} : vector<8x16x16xbf16>, vector<8x16x8xbf16>, vector<8x16x8xf32> -> vector<8x16x8xf32>
      "tpu.trace_stop"() : () -> ()
      %114 = vector.shape_cast %113 : vector<8x16x8xf32> to vector<4x32x8xf32>
      %115 = tpu.transpose %114, [1, 0, 2] : vector<4x32x8xf32> -> vector<32x4x8xf32>
      %116 = vector.shape_cast %115 : vector<32x4x8xf32> to vector<32x32xf32>
      %117 = arith.truncf %116 : vector<32x32xf32> to vector<32x32xbf16>
      %118 = arith.index_cast %arg24 : i32 to index
      %c0_56 = arith.constant 0 : index
      %c0_57 = arith.constant 0 : index
      %119 = vector.load %arg10[%118, %c0_56, %c0_57] : memref<9x32x32xbf16, #tpu.memory_space<vmem>>, vector<1x32x32xbf16>
      %120 = vector.shape_cast %119 : vector<1x32x32xbf16> to vector<32x32xbf16>
      %cst_58 = arith.constant dense<0.000000e+00> : vector<32x32xf32>
      %121 = tpu.matmul %117, %120, %cst_58 {dimension_numbers = #tpu.dot_dimension_numbers<[1], [0], [0], [1], [0, 0, 1, 1], [], []>} : vector<32x32xbf16>, vector<32x32xbf16>, vector<32x32xf32> -> vector<32x32xf32>
      %122 = arith.addf %arg25, %121 : vector<32x32xf32>
      %123 = arith.index_cast %arg24 : i32 to index
      %c0_59 = arith.constant 0 : index
      %c0_60 = arith.constant 0 : index
      %124 = vector.load %arg11[%123, %c0_59, %c0_60] : memref<9x1x32xf32, #tpu.memory_space<vmem>>, vector<1x1x32xf32>
      %125 = vector.shape_cast %124 : vector<1x1x32xf32> to vector<1x32xf32>
      %126 = vector.broadcast %125 : vector<1x32xf32> to vector<32x32xf32>
      %127 = arith.addf %122, %126 : vector<32x32xf32>
      %128 = arith.index_cast %arg24 : i32 to index
      %c0_61 = arith.constant 0 : index
      %c0_62 = arith.constant 0 : index
      %129 = vector.load %arg12[%128, %c0_61, %c0_62] : memref<9x1x32xf32, #tpu.memory_space<vmem>>, vector<1x1x32xf32>
      %130 = vector.shape_cast %129 : vector<1x1x32xf32> to vector<1x32xf32>
      %131 = arith.index_cast %arg24 : i32 to index
      %c0_63 = arith.constant 0 : index
      %c0_64 = arith.constant 0 : index
      %132 = vector.load %arg13[%131, %c0_63, %c0_64] : memref<9x1x32xf32, #tpu.memory_space<vmem>>, vector<1x1x32xf32>
      %133 = vector.shape_cast %132 : vector<1x1x32xf32> to vector<1x32xf32>
      %cst_65 = arith.constant dense<0.000000e+00> : vector<32xf32>
      %134 = vector.multi_reduction <add>, %127, %cst_65 [1] : vector<32x32xf32> to vector<32xf32>
      %135 = vector.shape_cast %134 : vector<32xf32> to vector<32x1xf32>
      %cst_66 = arith.constant 3.200000e+01 : f32
      %136 = vector.broadcast %cst_66 : f32 to vector<32x1xf32>
      %137 = arith.divf %135, %136 : vector<32x1xf32>
      %138 = vector.broadcast %137 : vector<32x1xf32> to vector<32x32xf32>
      %139 = arith.subf %127, %138 : vector<32x32xf32>
      %140 = arith.mulf %139, %139 : vector<32x32xf32>
      %cst_67 = arith.constant dense<0.000000e+00> : vector<32xf32>
      %141 = vector.multi_reduction <add>, %140, %cst_67 [1] : vector<32x32xf32> to vector<32xf32>
      %142 = vector.shape_cast %141 : vector<32xf32> to vector<32x1xf32>
      %cst_68 = arith.constant 3.200000e+01 : f32
      %143 = vector.broadcast %cst_68 : f32 to vector<32x1xf32>
      %144 = arith.divf %142, %143 : vector<32x1xf32>
      %145 = vector.broadcast %137 : vector<32x1xf32> to vector<32x32xf32>
      %146 = arith.subf %127, %145 : vector<32x32xf32>
      %cst_69 = arith.constant 9.99999974E-6 : f32
      %147 = vector.broadcast %cst_69 : f32 to vector<32x1xf32>
      %148 = arith.addf %144, %147 : vector<32x1xf32>
      %149 = math.rsqrt %148 : vector<32x1xf32>
      %150 = vector.broadcast %149 : vector<32x1xf32> to vector<32x32xf32>
      %151 = arith.mulf %146, %150 : vector<32x32xf32>
      %152 = vector.broadcast %130 : vector<1x32xf32> to vector<32x32xf32>
      %153 = arith.mulf %151, %152 : vector<32x32xf32>
      %154 = vector.broadcast %133 : vector<1x32xf32> to vector<32x32xf32>
      %155 = arith.addf %153, %154 : vector<32x32xf32>
      %156 = arith.truncf %155 : vector<32x32xf32> to vector<32x32xbf16>
      %157 = arith.index_cast %arg24 : i32 to index
      %c0_70 = arith.constant 0 : index
      %c0_71 = arith.constant 0 : index
      %158 = vector.load %arg14[%157, %c0_70, %c0_71] : memref<9x32x32xbf16, #tpu.memory_space<vmem>>, vector<1x32x32xbf16>
      %159 = vector.shape_cast %158 : vector<1x32x32xbf16> to vector<32x32xbf16>
      %cst_72 = arith.constant dense<0.000000e+00> : vector<32x32xf32>
      %160 = tpu.matmul %156, %159, %cst_72 {dimension_numbers = #tpu.dot_dimension_numbers<[1], [0], [0], [1], [0, 0, 1, 1], [], []>} : vector<32x32xbf16>, vector<32x32xbf16>, vector<32x32xf32> -> vector<32x32xf32>
      %161 = arith.index_cast %arg24 : i32 to index
      %c0_73 = arith.constant 0 : index
      %c0_74 = arith.constant 0 : index
      %162 = vector.load %arg15[%161, %c0_73, %c0_74] : memref<9x1x32xf32, #tpu.memory_space<vmem>>, vector<1x1x32xf32>
      %163 = vector.shape_cast %162 : vector<1x1x32xf32> to vector<1x32xf32>
      %164 = vector.broadcast %163 : vector<1x32xf32> to vector<32x32xf32>
      %165 = arith.addf %160, %164 : vector<32x32xf32>
      %cst_75 = arith.constant 0.000000e+00 : f32
      %166 = vector.broadcast %cst_75 : f32 to vector<32x32xf32>
      %167 = arith.maximumf %165, %166 : vector<32x32xf32>
      %168 = arith.truncf %167 : vector<32x32xf32> to vector<32x32xbf16>
      %169 = arith.index_cast %arg24 : i32 to index
      %c0_76 = arith.constant 0 : index
      %c0_77 = arith.constant 0 : index
      %170 = vector.load %arg16[%169, %c0_76, %c0_77] : memref<9x32x32xbf16, #tpu.memory_space<vmem>>, vector<1x32x32xbf16>
      %171 = vector.shape_cast %170 : vector<1x32x32xbf16> to vector<32x32xbf16>
      %cst_78 = arith.constant dense<0.000000e+00> : vector<32x32xf32>
      %172 = tpu.matmul %168, %171, %cst_78 {dimension_numbers = #tpu.dot_dimension_numbers<[1], [0], [0], [1], [0, 0, 1, 1], [], []>} : vector<32x32xbf16>, vector<32x32xbf16>, vector<32x32xf32> -> vector<32x32xf32>
      %173 = arith.addf %127, %172 : vector<32x32xf32>
      %174 = arith.index_cast %arg24 : i32 to index
      %c0_79 = arith.constant 0 : index
      %c0_80 = arith.constant 0 : index
      %175 = vector.load %arg17[%174, %c0_79, %c0_80] : memref<9x1x32xf32, #tpu.memory_space<vmem>>, vector<1x1x32xf32>
      %176 = vector.shape_cast %175 : vector<1x1x32xf32> to vector<1x32xf32>
      %177 = vector.broadcast %176 : vector<1x32xf32> to vector<32x32xf32>
      %178 = arith.addf %173, %177 : vector<32x32xf32>
      scf.yield %178 : vector<32x32xf32>
    }
    %c9_i32_14 = arith.constant 9 : i32
    %21 = vector.shape_cast %20 : vector<32x32xf32> to vector<2x16x32xf32>
    %c0_15 = arith.constant 0 : index
    %c0_16 = arith.constant 0 : index
    %22 = vector.load %arg18[%c0_15, %c0_16] : memref<1x32xf32, #tpu.memory_space<vmem>>, vector<1x32xf32>
    %23 = vector.shape_cast %22 : vector<1x32xf32> to vector<1x1x32xf32>
    %24 = vector.broadcast %23 : vector<1x1x32xf32> to vector<2x16x32xf32>
    %25 = arith.mulf %21, %24 : vector<2x16x32xf32>
    %cst_17 = arith.constant dense<0.000000e+00> : vector<2x16xf32>
    %26 = vector.multi_reduction <add>, %25, %cst_17 [2] : vector<2x16x32xf32> to vector<2x16xf32>
    %c0_18 = arith.constant 0 : index
    %c0_19 = arith.constant 0 : index
    %27 = vector.load %arg19[%c0_18, %c0_19] : memref<1x1xf32, #tpu.memory_space<vmem>>, vector<1x1xf32>
    %28 = vector.broadcast %27 : vector<1x1xf32> to vector<2x16xf32>
    %29 = arith.addf %26, %28 : vector<2x16xf32>
    %cst_20 = arith.constant 0.000000e+00 : f32
    %30 = vector.broadcast %cst_20 : f32 to vector<2x16xf32>
    %31 = arith.cmpf oge, %29, %30 : vector<2x16xf32>
    %cst_21 = arith.constant 0.00999999977 : f32
    %32 = vector.broadcast %cst_21 : f32 to vector<2x16xf32>
    %33 = arith.mulf %32, %29 : vector<2x16xf32>
    %34 = arith.select %31, %29, %33 : vector<2x16xi1>, vector<2x16xf32>
    %c0_22 = arith.constant 0 : index
    %c0_23 = arith.constant 0 : index
    %c0_24 = arith.constant 0 : index
    %35 = vector.load %arg3[%c0_22, %c0_23, %c0_24] : memref<1x2x16xf32, #tpu.memory_space<vmem>>, vector<1x2x16xf32>
    %36 = vector.shape_cast %35 : vector<1x2x16xf32> to vector<2x16xf32>
    %cst_25 = arith.constant 0.000000e+00 : f32
    %37 = vector.broadcast %cst_25 : f32 to vector<2x16xf32>
    %38 = arith.cmpf oge, %36, %37 : vector<2x16xf32>
    %cst_26 = arith.constant 0.00999999977 : f32
    %39 = vector.broadcast %cst_26 : f32 to vector<2x16xf32>
    %40 = arith.mulf %39, %36 : vector<2x16xf32>
    %41 = arith.select %38, %36, %40 : vector<2x16xi1>, vector<2x16xf32>
    %c0_27 = arith.constant 0 : index
    %c0_28 = arith.constant 0 : index
    %42 = vector.load %arg20[%c0_27, %c0_28] : memref<16x8xf32, #tpu.memory_space<vmem>>, vector<16x8xf32>
    %cst_29 = arith.constant dense<0.000000e+00> : vector<2x8xf32>
    %43 = tpu.matmul %34, %42, %cst_29 {dimension_numbers = #tpu.dot_dimension_numbers<[1], [0], [0], [1], [0, 0, 1, 1], [], []>} : vector<2x16xf32>, vector<16x8xf32>, vector<2x8xf32> -> vector<2x8xf32>
    %c0_30 = arith.constant 0 : index
    %c0_31 = arith.constant 0 : index
    %44 = vector.load %arg21[%c0_30, %c0_31] : memref<16x8xf32, #tpu.memory_space<vmem>>, vector<16x8xf32>
    %cst_32 = arith.constant dense<0.000000e+00> : vector<2x8xf32>
    %45 = tpu.matmul %41, %44, %cst_32 {dimension_numbers = #tpu.dot_dimension_numbers<[1], [0], [0], [1], [0, 0, 1, 1], [], []>} : vector<2x16xf32>, vector<16x8xf32>, vector<2x8xf32> -> vector<2x8xf32>
    %46 = arith.addf %43, %45 : vector<2x8xf32>
    %c0_33 = arith.constant 0 : index
    %c0_34 = arith.constant 0 : index
    %47 = vector.load %arg22[%c0_33, %c0_34] : memref<1x8xf32, #tpu.memory_space<vmem>>, vector<1x8xf32>
    %48 = vector.broadcast %47 : vector<1x8xf32> to vector<2x8xf32>
    %49 = arith.addf %46, %48 : vector<2x8xf32>
    %c0_35 = arith.constant 0 : index
    %c0_36 = arith.constant 0 : index
    %c0_37 = arith.constant 0 : index
    %50 = vector.load %arg23[%c0_35, %c0_36, %c0_37] : memref<1x2x8xf32, #tpu.memory_space<vmem>>, vector<1x2x8xf32>
    %51 = vector.shape_cast %50 : vector<1x2x8xf32> to vector<2x8xf32>
    %52 = vector.shape_cast %49 : vector<2x8xf32> to vector<1x2x8xf32>
    tpu.vector_store %arg23[%c0_35, %c0_36, %c0_37], %52 {strides = array<i32>} : memref<1x2x8xf32, #tpu.memory_space<vmem>>, vector<1x2x8xf32>,
    return
  }
  func.func @transform_0(%arg0: i32) -> (i32, i32, i32, i32) {
    %c0_i32 = arith.constant 0 : i32
    %c0_i32_0 = arith.constant 0 : i32
    %c0_i32_1 = arith.constant 0 : i32
    %c0_i32_2 = arith.constant 0 : i32
    return %arg0, %c0_i32, %c0_i32_0, %c0_i32_1 : i32, i32, i32, i32
  }
  func.func @transform_1(%arg0: i32) -> (i32, i32, i32, i32) {
    %c0_i32 = arith.constant 0 : i32
    %c0_i32_0 = arith.constant 0 : i32
    %c0_i32_1 = arith.constant 0 : i32
    %c0_i32_2 = arith.constant 0 : i32
    return %arg0, %c0_i32, %c0_i32_0, %c0_i32_1 : i32, i32, i32, i32
  }
  func.func @transform_2(%arg0: i32) -> (i32, i32, i32) {
    %c0_i32 = arith.constant 0 : i32
    %c0_i32_0 = arith.constant 0 : i32
    %c0_i32_1 = arith.constant 0 : i32
    return %arg0, %c0_i32, %c0_i32_0 : i32, i32, i32
  }
  func.func @transform_3(%arg0: i32) -> (i32, i32) {
    %c0_i32 = arith.constant 0 : i32
    %c0_i32_0 = arith.constant 0 : i32
    %c0_i32_1 = arith.constant 0 : i32
    return %c0_i32, %c0_i32_0 : i32, i32
  }
  func.func @transform_4(%arg0: i32) -> (i32, i32) {
    %c0_i32 = arith.constant 0 : i32
    %c0_i32_0 = arith.constant 0 : i32
    %c0_i32_1 = arith.constant 0 : i32
    return %c0_i32, %c0_i32_0 : i32, i32
  }
  func.func @transform_5(%arg0: i32) -> (i32, i32, i32) {
    %c0_i32 = arith.constant 0 : i32
    %c0_i32_0 = arith.constant 0 : i32
    %c0_i32_1 = arith.constant 0 : i32
    %c0_i32_2 = arith.constant 0 : i32
    return %c0_i32, %c0_i32_0, %c0_i32_1 : i32, i32, i32
  }
  func.func @transform_6(%arg0: i32) -> (i32, i32, i32) {
    %c0_i32 = arith.constant 0 : i32
    %c0_i32_0 = arith.constant 0 : i32
    %c0_i32_1 = arith.constant 0 : i32
    %c0_i32_2 = arith.constant 0 : i32
    return %c0_i32, %c0_i32_0, %c0_i32_1 : i32, i32, i32
  }
  func.func @transform_7(%arg0: i32) -> (i32, i32, i32) {
    %c0_i32 = arith.constant 0 : i32
    %c0_i32_0 = arith.constant 0 : i32
    %c0_i32_1 = arith.constant 0 : i32
    %c0_i32_2 = arith.constant 0 : i32
    return %c0_i32, %c0_i32_0, %c0_i32_1 : i32, i32, i32
  }
  func.func @transform_8(%arg0: i32) -> (i32, i32, i32) {
    %c0_i32 = arith.constant 0 : i32
    %c0_i32_0 = arith.constant 0 : i32
    %c0_i32_1 = arith.constant 0 : i32
    %c0_i32_2 = arith.constant 0 : i32
    return %c0_i32, %c0_i32_0, %c0_i32_1 : i32, i32, i32
  }
  func.func @transform_9(%arg0: i32) -> (i32, i32, i32) {
    %c0_i32 = arith.constant 0 : i32
    %c0_i32_0 = arith.constant 0 : i32
    %c0_i32_1 = arith.constant 0 : i32
    %c0_i32_2 = arith.constant 0 : i32
    return %c0_i32, %c0_i32_0, %c0_i32_1 : i32, i32, i32
  }
  func.func @transform_10(%arg0: i32) -> (i32, i32, i32) {
    %c0_i32 = arith.constant 0 : i32
    %c0_i32_0 = arith.constant 0 : i32
    %c0_i32_1 = arith.constant 0 : i32
    %c0_i32_2 = arith.constant 0 : i32
    return %c0_i32, %c0_i32_0, %c0_i32_1 : i32, i32, i32
  }
  func.func @transform_11(%arg0: i32) -> (i32, i32, i32) {
    %c0_i32 = arith.constant 0 : i32
    %c0_i32_0 = arith.constant 0 : i32
    %c0_i32_1 = arith.constant 0 : i32
    %c0_i32_2 = arith.constant 0 : i32
    return %c0_i32, %c0_i32_0, %c0_i32_1 : i32, i32, i32
  }
  func.func @transform_12(%arg0: i32) -> (i32, i32, i32) {
    %c0_i32 = arith.constant 0 : i32
    %c0_i32_0 = arith.constant 0 : i32
    %c0_i32_1 = arith.constant 0 : i32
    %c0_i32_2 = arith.constant 0 : i32
    return %c0_i32, %c0_i32_0, %c0_i32_1 : i32, i32, i32
  }
  func.func @transform_13(%arg0: i32) -> (i32, i32, i32) {
    %c0_i32 = arith.constant 0 : i32
    %c0_i32_0 = arith.constant 0 : i32
    %c0_i32_1 = arith.constant 0 : i32
    %c0_i32_2 = arith.constant 0 : i32
    return %c0_i32, %c0_i32_0, %c0_i32_1 : i32, i32, i32
  }
  func.func @transform_14(%arg0: i32) -> (i32, i32, i32) {
    %c0_i32 = arith.constant 0 : i32
    %c0_i32_0 = arith.constant 0 : i32
    %c0_i32_1 = arith.constant 0 : i32
    %c0_i32_2 = arith.constant 0 : i32
    return %c0_i32, %c0_i32_0, %c0_i32_1 : i32, i32, i32
  }
  func.func @transform_15(%arg0: i32) -> (i32, i32, i32) {
    %c0_i32 = arith.constant 0 : i32
    %c0_i32_0 = arith.constant 0 : i32
    %c0_i32_1 = arith.constant 0 : i32
    %c0_i32_2 = arith.constant 0 : i32
    return %c0_i32, %c0_i32_0, %c0_i32_1 : i32, i32, i32
  }
  func.func @transform_16(%arg0: i32) -> (i32, i32, i32) {
    %c0_i32 = arith.constant 0 : i32
    %c0_i32_0 = arith.constant 0 : i32
    %c0_i32_1 = arith.constant 0 : i32
    %c0_i32_2 = arith.constant 0 : i32
    return %c0_i32, %c0_i32_0, %c0_i32_1 : i32, i32, i32
  }
  func.func @transform_17(%arg0: i32) -> (i32, i32) {
    %c0_i32 = arith.constant 0 : i32
    %c0_i32_0 = arith.constant 0 : i32
    %c0_i32_1 = arith.constant 0 : i32
    return %c0_i32, %c0_i32_0 : i32, i32
  }
  func.func @transform_18(%arg0: i32) -> (i32, i32) {
    %c0_i32 = arith.constant 0 : i32
    %c0_i32_0 = arith.constant 0 : i32
    %c0_i32_1 = arith.constant 0 : i32
    return %c0_i32, %c0_i32_0 : i32, i32
  }
  func.func @transform_19(%arg0: i32) -> (i32, i32) {
    %c0_i32 = arith.constant 0 : i32
    %c0_i32_0 = arith.constant 0 : i32
    %c0_i32_1 = arith.constant 0 : i32
    return %c0_i32, %c0_i32_0 : i32, i32
  }
  func.func @transform_20(%arg0: i32) -> (i32, i32) {
    %c0_i32 = arith.constant 0 : i32
    %c0_i32_0 = arith.constant 0 : i32
    %c0_i32_1 = arith.constant 0 : i32
    return %c0_i32, %c0_i32_0 : i32, i32
  }
  func.func @transform_21(%arg0: i32) -> (i32, i32) {
    %c0_i32 = arith.constant 0 : i32
    %c0_i32_0 = arith.constant 0 : i32
    %c0_i32_1 = arith.constant 0 : i32
    return %c0_i32, %c0_i32_0 : i32, i32
  }
  func.func @transform_22(%arg0: i32) -> (i32, i32, i32) {
    %c0_i32 = arith.constant 0 : i32
    %c0_i32_0 = arith.constant 0 : i32
    %c0_i32_1 = arith.constant 0 : i32
    return %arg0, %c0_i32, %c0_i32_0 : i32, i32, i32
  }
}

</mosaic_0001>

<llo_original>
// kernel: tpu_custom_call.1
$region0: #{tpu_custom_call.1}
  #allocation0 [shape = 'u32[]', space=smem, size = 0x4, offset = 0x4, fixed_abs, tag = 'smem constant byte address 0x4 - core index']
  #allocation1 [shape = 'u32[144,128]{1,0:T(1,128)}', space=vmem, size = 0x12000, scoped, tag = 'internal scratch']
  #allocation2 [shape = 'f32[1,1]{1,0:T(1,128)S(1)}', space=vmem, size = 0x200, scoped, tag = 'scoped memory for tpu_custom_call.1']
  %s0 = inlined_call_operand.vmem [shape: f32[1,2,16,12], index: 0, kind: input, shape index: {}]
  %s1 = inlined_call_operand.hbm [shape: f32[1,2,16,16], index: 1, kind: input, shape index: {}]
  %s2 = inlined_call_operand.hbm [shape: f32[1,2,16], index: 2, kind: input, shape index: {}]
  %s3 = inlined_call_operand.hbm [shape: f32[12,32], index: 3, kind: input, shape index: {}]
  %s4 = inlined_call_operand.vmem [shape: f32[1,32], index: 4, kind: input, shape index: {}]
  %s5 = inlined_call_operand.vmem [shape: f32[9,1,32], index: 5, kind: input, shape index: {}]
  %s6 = inlined_call_operand.hbm [shape: f32[9,1,32], index: 6, kind: input, shape index: {}]
  %s7 = inlined_call_operand.hbm [shape: bf16[9,32,96], index: 7, kind: input, shape index: {}]
  %s8 = inlined_call_operand.hbm [shape: f32[9,1,96], index: 8, kind: input, shape index: {}]
  %s9 = inlined_call_operand.hbm [shape: bf16[9,32,32], index: 9, kind: input, shape index: {}]
  %s10 = inlined_call_operand.hbm [shape: f32[9,1,32], index: 10, kind: input, shape index: {}]
  %s11 = inlined_call_operand.hbm [shape: f32[9,1,32], index: 11, kind: input, shape index: {}]
  %s12 = inlined_call_operand.hbm [shape: f32[9,1,32], index: 12, kind: input, shape index: {}]
  %s13 = inlined_call_operand.vmem [shape: bf16[9,32,32], index: 13, kind: input, shape index: {}]
  %s14 = inlined_call_operand.hbm [shape: f32[9,1,32], index: 14, kind: input, shape index: {}]
  %s15 = inlined_call_operand.hbm [shape: bf16[9,32,32], index: 15, kind: input, shape index: {}]
  %s16 = inlined_call_operand.vmem [shape: f32[9,1,32], index: 16, kind: input, shape index: {}]
  %s17 = inlined_call_operand.hbm [shape: f32[1,32], index: 17, kind: input, shape index: {}]
  %s18 = inlined_call_operand.<no memory space> [shape: f32[1,1], index: 18, kind: input, shape index: {}]
  %s19 = inlined_call_operand.vmem [shape: f32[16,8], index: 19, kind: input, shape index: {}]
  %s20 = inlined_call_operand.vmem [shape: f32[16,8], index: 20, kind: input, shape index: {}]
  %s21 = inlined_call_operand.vmem [shape: f32[1,8], index: 21, kind: input, shape index: {}]
  %s22 = inlined_call_operand.hbm [shape: f32[1,2,8], index: 22, kind: output, shape index: {}]
  %s23 = sld [smem:[#allocation0]]
  $region157: #{tpu_custom_call.1} parent=0
    _
  %s25 = ssub.s32 1, %s23
  %s26 = scalar_select 0, %s25, %s23
  %v27 = vstv %s18
  %28 = vst [vmem:[#allocation2] sm:$0x1] %v27
  $region1: #{tpu_custom_call.1} parent=0
    #allocation3 [shape = 'u8[16384]{0}', space=vmem, size = 0x4000, scoped, tag = 'input window, operand 1, single buffered']
    #allocation4 [shape = 's32[1]{0}', space=sflag, size = 0x4, scoped, tag = 'scoped memory for tpu_custom_call.1']
    #allocation5 [shape = 's32[1]{0}', space=sflag, size = 0x4, scoped, tag = 'scoped memory for tpu_custom_call.1']
    #allocation6 [shape = 'u8[1024]{0}', space=vmem, size = 0x400, scoped, tag = 'input window, operand 2, single buffered']
    #allocation7 [shape = 's32[1]{0}', space=sflag, size = 0x4, scoped, tag = 'scoped memory for tpu_custom_call.1']
    #allocation8 [shape = 'u8[8192]{0}', space=vmem, size = 0x2000, scoped, tag = 'input window, operand 3, single buffered']
    #allocation9 [shape = 'u8[4608]{0}', space=vmem, size = 0x1400, scoped, tag = 'input window, operand 6, single buffered']
    #allocation10 [shape = 's32[1]{0}', space=sflag, size = 0x4, scoped, tag = 'scoped memory for tpu_custom_call.1']
    #allocation11 [shape = 'u8[73728]{0}', space=vmem, size = 0x12000, scoped, tag = 'input window, operand 7, single buffered']
    #allocation12 [shape = 'u8[4608]{0}', space=vmem, size = 0x1400, scoped, tag = 'input window, operand 8, single buffered']
    #allocation13 [shape = 's32[1]{0}', space=sflag, size = 0x4, scoped, tag = 'scoped memory for tpu_custom_call.1']
    #allocation14 [shape = 'u8[73728]{0}', space=vmem, size = 0x12000, scoped, tag = 'input window, operand 9, single buffered']
    #allocation15 [shape = 'u8[4608]{0}', space=vmem, size = 0x1400, scoped, tag = 'input window, operand 10, single buffered']
    #allocation16 [shape = 's32[1]{0}', space=sflag, size = 0x4, scoped, tag = 'scoped memory for tpu_custom_call.1']
    #allocation17 [shape = 'u8[4608]{0}', space=vmem, size = 0x1400, scoped, tag = 'input window, operand 11, single buffered']
    #allocation18 [shape = 'u8[4608]{0}', space=vmem, size = 0x1400, scoped, tag = 'input window, operand 12, single buffered']
    #allocation19 [shape = 's32[1]{0}', space=sflag, size = 0x4, scoped, tag = 'scoped memory for tpu_custom_call.1']
    #allocation20 [shape = 'u8[4608]{0}', space=vmem, size = 0x1400, scoped, tag = 'input window, operand 14, single buffered']
    #allocation21 [shape = 'u8[73728]{0}', space=vmem, size = 0x12000, scoped, tag = 'input window, operand 15, single buffered']
    #allocation22 [shape = 's32[1]{0}', space=sflag, size = 0x4, scoped, tag = 'scoped memory for tpu_custom_call.1']
    #allocation23 [shape = 'u8[512]{0}', space=vmem, size = 0x400, scoped, tag = 'input window, operand 17, single buffered']
    #allocation24 [shape = 'u8[1024]{0}', space=vmem, size = 0x400, scoped, tag = 'output window, operand 0, single buffered']
    %29 = vsyncpa [#allocation4], 0
    %30 = vsyncpa [#allocation7], 0
    %31 = vsyncpa [#allocation10], 0
    %32 = vsyncpa [#allocation13], 0
    %33 = vsyncpa [#allocation16], 0
    %34 = vsyncpa [#allocation19], 0
    %35 = vsyncpa [#allocation22], 0
    %36 = vsyncpa [#allocation5], 0
    // Predicated region
    $region2: #{tpu_custom_call.1} parent=1 // pred_check
      _
    $region3: #{tpu_custom_call.1} parent=1 // pred_check_branch
      %38 = sbr.rel (0) target = $region5
    $region4: #{tpu_custom_call.1} parent=1 // pred_region
      _
    $region5: #{tpu_custom_call.1} parent=1 // pred_fallthru
      _
    // Predicated region
    $region6: #{tpu_custom_call.1} parent=1 // pred_check
      _
    $region7: #{tpu_custom_call.1} parent=1 // pred_check_branch
      %40 = sbr.rel (0) target = $region9
    $region8: #{tpu_custom_call.1} parent=1 // pred_region
      %s42 = ssub.s32 512, 512
      %43 = vsyncadd [#allocation4], %s42
      %s44 = sshll.u32 [#allocation3], 4
      %s45 = int_to_ptr.vmem [resolvable:$true] %s44
      %50 = dma.hbm_to_vmem [thread:$0]  %s1, 512, %s45, [#allocation4], 128, 128, 8
    $region9: #{tpu_custom_call.1} parent=1 // pred_fallthru
      _
    // Predicated region
    $region10: #{tpu_custom_call.1} parent=1 // pred_check
      _
    $region11: #{tpu_custom_call.1} parent=1 // pred_check_branch
      %52 = sbr.rel (0) target = $region13
    $region12: #{tpu_custom_call.1} parent=1 // pred_region
      %s54 = ssub.s32 32, 32
      %55 = vsyncadd [#allocation7], %s54
      %s57 = sshll.u32 [#allocation6], 4
      %s58 = int_to_ptr.vmem [resolvable:$true] %s57
      %60 = dma.hbm_to_vmem [thread:$0]  %s2, 32, %s58, [#allocation7]
    $region13: #{tpu_custom_call.1} parent=1 // pred_fallthru
      _
    // Predicated region
    $region14: #{tpu_custom_call.1} parent=1 // pred_check
      _
    $region15: #{tpu_custom_call.1} parent=1 // pred_check_branch
      %62 = sbr.rel (0) target = $region17
    $region16: #{tpu_custom_call.1} parent=1 // pred_region
      %s64 = ssub.s32 256, 256
      %65 = vsyncadd [#allocation7], %s64
      %s66 = sshll.u32 [#allocation8], 4
      %s67 = int_to_ptr.vmem [resolvable:$true] %s66
      %72 = dma.hbm_to_vmem [thread:$0]  %s3, 256, %s67, [#allocation7], 128, 128, 8
    $region17: #{tpu_custom_call.1} parent=1 // pred_fallthru
      _
    // Predicated region
    $region18: #{tpu_custom_call.1} parent=1 // pred_check
      _
    $region19: #{tpu_custom_call.1} parent=1 // pred_check_branch
      %74 = sbr.rel (0) target = $region21
    $region20: #{tpu_custom_call.1} parent=1 // pred_region
      _
    $region21: #{tpu_custom_call.1} parent=1 // pred_fallthru
      _
    // Predicated region
    $region22: #{tpu_custom_call.1} parent=1 // pred_check
      _
    $region23: #{tpu_custom_call.1} parent=1 // pred_check_branch
      %76 = sbr.rel (0) target = $region25
    $region24: #{tpu_custom_call.1} parent=1 // pred_region
      _
    $region25: #{tpu_custom_call.1} parent=1 // pred_fallthru
      _
    // Predicated region
    $region26: #{tpu_custom_call.1} parent=1 // pred_check
      _
    $region27: #{tpu_custom_call.1} parent=1 // pred_check_branch
      %78 = sbr.rel (0) target = $region29
    $region28: #{tpu_custom_call.1} parent=1 // pred_region
      %s80 = ssub.s32 144, 144
      %81 = vsyncadd [#allocation10], %s80
      %s82 = sshll.u32 [#allocation9], 4
      %s83 = int_to_ptr.vmem [resolvable:$true] %s82
      %88 = dma.hbm_to_vmem [thread:$0]  %s6, 144, %s83, [#allocation10], 16, 16, 1
    $region29: #{tpu_custom_call.1} parent=1 // pred_fallthru
      _
    // Predicated region
    $region30: #{tpu_custom_call.1} parent=1 // pred_check
      _
    $region31: #{tpu_custom_call.1} parent=1 // pred_check_branch
      %90 = sbr.rel (0) target = $region33
    $region32: #{tpu_custom_call.1} parent=1 // pred_region
      %s92 = ssub.s32 2304, 2304
      %93 = vsyncadd [#allocation10], %s92
      %s94 = sshll.u32 [#allocation11], 4
      %s95 = int_to_ptr.vmem [resolvable:$true] %s94
      %100 = dma.hbm_to_vmem [thread:$0]  %s7, 2304, %s95, [#allocation10], 64, 64, 4
    $region33: #{tpu_custom_call.1} parent=1 // pred_fallthru
      _
    // Predicated region
    $region34: #{tpu_custom_call.1} parent=1 // pred_check
      _
    $region35: #{tpu_custom_call.1} parent=1 // pred_check_branch
      %102 = sbr.rel (0) target = $region37
    $region36: #{tpu_custom_call.1} parent=1 // pred_region
      %s104 = ssub.s32 144, 144
      %105 = vsyncadd [#allocation13], %s104
      %s106 = sshll.u32 [#allocation12], 4
      %s107 = int_to_ptr.vmem [resolvable:$true] %s106
      %112 = dma.hbm_to_vmem [thread:$0]  %s8, 144, %s107, [#allocation13], 16, 16, 1
    $region37: #{tpu_custom_call.1} parent=1 // pred_fallthru
      _
    // Predicated region
    $region38: #{tpu_custom_call.1} parent=1 // pred_check
      _
    $region39: #{tpu_custom_call.1} parent=1 // pred_check_branch
      %114 = sbr.rel (0) target = $region41
    $region40: #{tpu_custom_call.1} parent=1 // pred_region
      %s116 = ssub.s32 2304, 2304
      %117 = vsyncadd [#allocation13], %s116
      %s118 = sshll.u32 [#allocation14], 4
      %s119 = int_to_ptr.vmem [resolvable:$true] %s118
      %124 = dma.hbm_to_vmem [thread:$0]  %s9, 2304, %s119, [#allocation13], 64, 64, 4
    $region41: #{tpu_custom_call.1} parent=1 // pred_fallthru
      _
    // Predicated region
    $region42: #{tpu_custom_call.1} parent=1 // pred_check
      _
    $region43: #{tpu_custom_call.1} parent=1 // pred_check_branch
      %126 = sbr.rel (0) target = $region45
    $region44: #{tpu_custom_call.1} parent=1 // pred_region
      %s128 = ssub.s32 144, 144
      %129 = vsyncadd [#allocation16], %s128
      %s130 = sshll.u32 [#allocation15], 4
      %s131 = int_to_ptr.vmem [resolvable:$true] %s130
      %136 = dma.hbm_to_vmem [thread:$0]  %s10, 144, %s131, [#allocation16], 16, 16, 1
    $region45: #{tpu_custom_call.1} parent=1 // pred_fallthru
      _
    // Predicated region
    $region46: #{tpu_custom_call.1} parent=1 // pred_check
      _
    $region47: #{tpu_custom_call.1} parent=1 // pred_check_branch
      %138 = sbr.rel (0) target = $region49
    $region48: #{tpu_custom_call.1} parent=1 // pred_region
      %s140 = ssub.s32 144, 144
      %141 = vsyncadd [#allocation16], %s140
      %s142 = sshll.u32 [#allocation17], 4
      %s143 = int_to_ptr.vmem [resolvable:$true] %s142
      %148 = dma.hbm_to_vmem [thread:$0]  %s11, 144, %s143, [#allocation16], 16, 16, 1
    $region49: #{tpu_custom_call.1} parent=1 // pred_fallthru
      _
    // Predicated region
    $region50: #{tpu_custom_call.1} parent=1 // pred_check
      _
    $region51: #{tpu_custom_call.1} parent=1 // pred_check_branch
      %150 = sbr.rel (0) target = $region53
    $region52: #{tpu_custom_call.1} parent=1 // pred_region
      %s152 = ssub.s32 144, 144
      %153 = vsyncadd [#allocation19], %s152
      %s154 = sshll.u32 [#allocation18], 4
      %s155 = int_to_ptr.vmem [resolvable:$true] %s154
      %160 = dma.hbm_to_vmem [thread:$0]  %s12, 144, %s155, [#allocation19], 16, 16, 1
    $region53: #{tpu_custom_call.1} parent=1 // pred_fallthru
      _
    // Predicated region
    $region54: #{tpu_custom_call.1} parent=1 // pred_check
      _
    $region55: #{tpu_custom_call.1} parent=1 // pred_check_branch
      %162 = sbr.rel (0) target = $region57
    $region56: #{tpu_custom_call.1} parent=1 // pred_region
      _
    $region57: #{tpu_custom_call.1} parent=1 // pred_fallthru
      _
    // Predicated region
    $region58: #{tpu_custom_call.1} parent=1 // pred_check
      _
    $region59: #{tpu_custom_call.1} parent=1 // pred_check_branch
      %164 = sbr.rel (0) target = $region61
    $region60: #{tpu_custom_call.1} parent=1 // pred_region
      %s166 = ssub.s32 144, 144
      %167 = vsyncadd [#allocation19], %s166
      %s168 = sshll.u32 [#allocation20], 4
      %s169 = int_to_ptr.vmem [resolvable:$true] %s168
      %174 = dma.hbm_to_vmem [thread:$0]  %s14, 144, %s169, [#allocation19], 16, 16, 1
    $region61: #{tpu_custom_call.1} parent=1 // pred_fallthru
      _
    // Predicated region
    $region62: #{tpu_custom_call.1} parent=1 // pred_check
      _
    $region63: #{tpu_custom_call.1} parent=1 // pred_check_branch
      %176 = sbr.rel (0) target = $region65
    $region64: #{tpu_custom_call.1} parent=1 // pred_region
      %s178 = ssub.s32 2304, 2304
      %179 = vsyncadd [#allocation22], %s178
      %s180 = sshll.u32 [#allocation21], 4
      %s181 = int_to_ptr.vmem [resolvable:$true] %s180
      %186 = dma.hbm_to_vmem [thread:$0]  %s15, 2304, %s181, [#allocation22], 64, 64, 4
    $region65: #{tpu_custom_call.1} parent=1 // pred_fallthru
      _
    // Predicated region
    $region66: #{tpu_custom_call.1} parent=1 // pred_check
      _
    $region67: #{tpu_custom_call.1} parent=1 // pred_check_branch
      %188 = sbr.rel (0) target = $region69
    $region68: #{tpu_custom_call.1} parent=1 // pred_region
      _
    $region69: #{tpu_custom_call.1} parent=1 // pred_fallthru
      _
    // Predicated region
    $region70: #{tpu_custom_call.1} parent=1 // pred_check
      _
    $region71: #{tpu_custom_call.1} parent=1 // pred_check_branch
      %190 = sbr.rel (0) target = $region73
    $region72: #{tpu_custom_call.1} parent=1 // pred_region
      %s192 = ssub.s32 16, 16
      %193 = vsyncadd [#allocation22], %s192
      %s195 = sshll.u32 [#allocation23], 4
      %s196 = int_to_ptr.vmem [resolvable:$true] %s195
      %198 = dma.hbm_to_vmem [thread:$0]  %s17, 16, %s196, [#allocation22]
    $region73: #{tpu_custom_call.1} parent=1 // pred_fallthru
      _
    // Predicated region
    $region74: #{tpu_custom_call.1} parent=1 // pred_check
      _
    $region75: #{tpu_custom_call.1} parent=1 // pred_check_branch
      %200 = sbr.rel (0) target = $region77
    $region76: #{tpu_custom_call.1} parent=1 // pred_region
      _
    $region77: #{tpu_custom_call.1} parent=1 // pred_fallthru
      _
    // Predicated region
    $region78: #{tpu_custom_call.1} parent=1 // pred_check
      _
    $region79: #{tpu_custom_call.1} parent=1 // pred_check_branch
      %202 = sbr.rel (0) target = $region81
    $region80: #{tpu_custom_call.1} parent=1 // pred_region
      _
    $region81: #{tpu_custom_call.1} parent=1 // pred_fallthru
      _
    // Predicated region
    $region82: #{tpu_custom_call.1} parent=1 // pred_check
      _
    $region83: #{tpu_custom_call.1} parent=1 // pred_check_branch
      %204 = sbr.rel (0) target = $region85
    $region84: #{tpu_custom_call.1} parent=1 // pred_region
      _
    $region85: #{tpu_custom_call.1} parent=1 // pred_fallthru
      _
    // Predicated region
    $region86: #{tpu_custom_call.1} parent=1 // pred_check
      _
    $region87: #{tpu_custom_call.1} parent=1 // pred_check_branch
      %206 = sbr.rel (0) target = $region89
    $region88: #{tpu_custom_call.1} parent=1 // pred_region
      _
    $region89: #{tpu_custom_call.1} parent=1 // pred_fallthru
      _
    // Predicated region
    $region90: #{tpu_custom_call.1} parent=1 // pred_check
      _
    $region91: #{tpu_custom_call.1} parent=1 // pred_check_branch
      %208 = sbr.rel (0) target = $region93
    $region92: #{tpu_custom_call.1} parent=1 // pred_region
      %209 = dma.done [#allocation4], 512
    $region93: #{tpu_custom_call.1} parent=1 // pred_fallthru
      _
    // Predicated region
    $region94: #{tpu_custom_call.1} parent=1 // pred_check
      _
    $region95: #{tpu_custom_call.1} parent=1 // pred_check_branch
      %211 = sbr.rel (0) target = $region97
    $region96: #{tpu_custom_call.1} parent=1 // pred_region
      %212 = dma.done [#allocation7], 32
    $region97: #{tpu_custom_call.1} parent=1 // pred_fallthru
      _
    // Predicated region
    $region98: #{tpu_custom_call.1} parent=1 // pred_check
      _
    $region99: #{tpu_custom_call.1} parent=1 // pred_check_branch
      %214 = sbr.rel (0) target = $region101
    $region100: #{tpu_custom_call.1} parent=1 // pred_region
      %215 = dma.done [#allocation7], 256
    $region101: #{tpu_custom_call.1} parent=1 // pred_fallthru
      _
    // Predicated region
    $region102: #{tpu_custom_call.1} parent=1 // pred_check
      _
    $region103: #{tpu_custom_call.1} parent=1 // pred_check_branch
      %217 = sbr.rel (0) target = $region105
    $region104: #{tpu_custom_call.1} parent=1 // pred_region
      %218 = dma.done [#allocation10], 144
    $region105: #{tpu_custom_call.1} parent=1 // pred_fallthru
      _
    // Predicated region
    $region106: #{tpu_custom_call.1} parent=1 // pred_check
      _
    $region107: #{tpu_custom_call.1} parent=1 // pred_check_branch
      %220 = sbr.rel (0) target = $region109
    $region108: #{tpu_custom_call.1} parent=1 // pred_region
      %221 = dma.done [#allocation10], 2304
    $region109: #{tpu_custom_call.1} parent=1 // pred_fallthru
      _
    // Predicated region
    $region110: #{tpu_custom_call.1} parent=1 // pred_check
      _
    $region111: #{tpu_custom_call.1} parent=1 // pred_check_branch
      %223 = sbr.rel (0) target = $region113
    $region112: #{tpu_custom_call.1} parent=1 // pred_region
      %224 = dma.done [#allocation13], 144
    $region113: #{tpu_custom_call.1} parent=1 // pred_fallthru
      _
    // Predicated region
    $region114: #{tpu_custom_call.1} parent=1 // pred_check
      _
    $region115: #{tpu_custom_call.1} parent=1 // pred_check_branch
      %226 = sbr.rel (0) target = $region117
    $region116: #{tpu_custom_call.1} parent=1 // pred_region
      %227 = dma.done [#allocation13], 2304
    $region117: #{tpu_custom_call.1} parent=1 // pred_fallthru
      _
    // Predicated region
    $region118: #{tpu_custom_call.1} parent=1 // pred_check
      _
    $region119: #{tpu_custom_call.1} parent=1 // pred_check_branch
      %229 = sbr.rel (0) target = $region121
    $region120: #{tpu_custom_call.1} parent=1 // pred_region
      %230 = dma.done [#allocation16], 144
    $region121: #{tpu_custom_call.1} parent=1 // pred_fallthru
      _
    // Predicated region
    $region122: #{tpu_custom_call.1} parent=1 // pred_check
      _
    $region123: #{tpu_custom_call.1} parent=1 // pred_check_branch
      %232 = sbr.rel (0) target = $region125
    $region124: #{tpu_custom_call.1} parent=1 // pred_region
      %233 = dma.done [#allocation16], 144
    $region125: #{tpu_custom_call.1} parent=1 // pred_fallthru
      _
    // Predicated region
    $region126: #{tpu_custom_call.1} parent=1 // pred_check
      _
    $region127: #{tpu_custom_call.1} parent=1 // pred_check_branch
      %235 = sbr.rel (0) target = $region129
    $region128: #{tpu_custom_call.1} parent=1 // pred_region
      %236 = dma.done [#allocation19], 144
    $region129: #{tpu_custom_call.1} parent=1 // pred_fallthru
      _
    // Predicated region
    $region130: #{tpu_custom_call.1} parent=1 // pred_check
      _
    $region131: #{tpu_custom_call.1} parent=1 // pred_check_branch
      %238 = sbr.rel (0) target = $region133
    $region132: #{tpu_custom_call.1} parent=1 // pred_region
      %239 = dma.done [#allocation19], 144
    $region133: #{tpu_custom_call.1} parent=1 // pred_fallthru
      _
    // Predicated region
    $region134: #{tpu_custom_call.1} parent=1 // pred_check
      _
    $region135: #{tpu_custom_call.1} parent=1 // pred_check_branch
      %241 = sbr.rel (0) target = $region137
    $region136: #{tpu_custom_call.1} parent=1 // pred_region
      %242 = dma.done [#allocation22], 2304
    $region137: #{tpu_custom_call.1} parent=1 // pred_fallthru
      _
    // Predicated region
    $region138: #{tpu_custom_call.1} parent=1 // pred_check
      _
    $region139: #{tpu_custom_call.1} parent=1 // pred_check_branch
      %244 = sbr.rel (0) target = $region141
    $region140: #{tpu_custom_call.1} parent=1 // pred_region
      %245 = dma.done [#allocation22], 16
    $region141: #{tpu_custom_call.1} parent=1 // pred_fallthru
      _
    %v247 = vld [vmem:[#allocation3] sm:$0xff]
    %v248 = vld [vmem:[#allocation3 + $0x8] sm:$0xff]
    %v249 = vld [vmem:[#allocation3 + $0x10] sm:$0xff]
    %v250 = vld [vmem:[#allocation3 + $0x18] sm:$0xff]
    %vm251 = vcmp.eq.f32.partialorder %v247, 0.0
    %vm252 = vcmp.eq.f32.partialorder %v248, 0.0
    %vm253 = vcmp.eq.f32.partialorder %v249, 0.0
    %vm254 = vcmp.eq.f32.partialorder %v250, 0.0
    %v255 = vsel %vm251, -1e+09, 0.0
    %v256 = vsel %vm252, -1e+09, 0.0
    %v257 = vsel %vm253, -1e+09, 0.0
    %v258 = vsel %vm254, -1e+09, 0.0
    %v259 = vld [vmem:[%s0] sm:$0xff]
    %v260 = vld [vmem:[%s0 + $0x8] sm:$0xff]
    %v261 = vld [vmem:[%s0 + $0x10] sm:$0xff]
    %v262 = vld [vmem:[%s0 + $0x18] sm:$0xff]
    %v263 = vld [vmem:[#allocation8] sm:$0xff]
    %v264 = vld [vmem:[#allocation8 + $0x8] sm:$0xf]
    %v265 = vld [vmem:[%s4] sm:$0x1]
    %v267 = vlaneseq
    %v268 = vshrl.u32 %v267, 7
    %v269 = vsub.s32 0, %v268
    %v270 = vrot.slane %v265, %v269
    %vm272 = vcmask 97280
    %v274 = vsel %vm272, %v259, 0
    %v277 = vsel %vm272, %v260, 0
    %v280 = vsel %vm272, %v261, 0
    %v283 = vsel %vm272, %v262, 0
    %vm285 = vcmask 1043456
    %v287 = vsel %vm285, %v264, 0
    %289 = vmatprep.subr.mxu0 0.0
    %290 = vmatpush1.msra.mxu0 %v263
    %291 = vmatprep.subr.mxu0 0.0
    %292 = vmatpush1.msra.mxu0 %v287
    %293 = vmatprep.subr.mxu0 0.0
    %294 = vmatpush1.msra.mxu0 0.0
    %295 = vmatprep.subr.mxu0 0.0
    %296 = vmatpush1.msra.mxu0 0.0
    %297 = vmatprep.subr.mxu0 0.0
    %298 = vmatpush1.msra.mxu0 0.0
    %299 = vmatprep.subr.mxu0 0.0
    %300 = vmatpush1.msra.mxu0 0.0
    %301 = vmatprep.subr.mxu0 0.0
    %302 = vmatpush1.msra.mxu0 0.0
    %303 = vmatprep.subr.mxu0 0.0
    %304 = vmatpush1.msra.mxu0 0.0
    %305 = vmatprep.subr.mxu0 0.0
    %306 = vmatpush1.msra.mxu0 0.0
    %307 = vmatprep.subr.mxu0 0.0
    %308 = vmatpush1.msra.mxu0 0.0
    %309 = vmatprep.subr.mxu0 0.0
    %310 = vmatpush1.msra.mxu0 0.0
    %311 = vmatprep.subr.mxu0 0.0
    %312 = vmatpush1.msra.mxu0 0.0
    %313 = vmatprep.subr.mxu0 0.0
    %314 = vmatpush1.msra.mxu0 0.0
    %315 = vmatprep.subr.mxu0 0.0
    %316 = vmatpush1.msra.mxu0 0.0
    %317 = vmatprep.subr.mxu0 0.0
    %318 = vmatpush1.msra.mxu0 0.0
    %319 = vmatprep.subr.mxu0 0.0
    %320 = vmatpush1.msra.mxu0 0.0
    %321 = vmatprep.subr.mxu0 0.0
    %322 = vmatpush1.msra.mxu0 0.0
    %323 = vmatprep.subr.mxu0 0.0
    %324 = vmatpush1.msra.mxu0 0.0
    %325 = vmatprep.subr.mxu0 0.0
    %326 = vmatpush1.msra.mxu0 0.0
    %327 = vmatprep.subr.mxu0 0.0
    %328 = vmatpush1.msra.mxu0 0.0
    %329 = vmatprep.subr.mxu0 0.0
    %330 = vmatpush1.msra.mxu0 0.0
    %331 = vmatprep.subr.mxu0 0.0
    %332 = vmatpush1.msra.mxu0 0.0
    %333 = vmatprep.subr.mxu0 0.0
    %334 = vmatpush1.msra.mxu0 0.0
    %335 = vmatprep.subr.mxu0 0.0
    %336 = vmatpush1.msra.mxu0 0.0
    %337 = vmatprep.subr.mxu0 0.0
    %338 = vmatpush1.msra.mxu0 0.0
    %339 = vmatprep.subr.mxu0 0.0
    %340 = vmatpush1.msra.mxu0 0.0
    %341 = vmatprep.subr.mxu0 0.0
    %342 = vmatpush1.msra.mxu0 0.0
    %343 = vmatprep.subr.mxu0 0.0
    %344 = vmatpush1.msra.mxu0 0.0
    %345 = vmatprep.subr.mxu0 0.0
    %346 = vmatpush1.msra.mxu0 0.0
    %347 = vmatprep.subr.mxu0 0.0
    %348 = vmatpush1.msra.mxu0 0.0
    %349 = vmatprep.subr.mxu0 0.0
    %350 = vmatpush1.msra.mxu0 0.0
    %351 = vmatprep.subr.mxu0 0.0
    %352 = vmatpush1.msra.mxu0 0.0
    %353 = vmatprep.mubr.f32.mxu0 0.0
    %354 = vmatmul.mubr.f32.gmra.mrb[0].mxu0 %v274
    %v355 = vpop.f32.mrb[0].mxu0
    %v356 = vadd.f32 %v270, %v355
    %v357 = vpop.f32.mrb[0].mxu0
    %358 = vmatprep.mubr.f32.mxu0 0.0
    %359 = vmatmul.mubr.f32.gmra.mrb[0].mxu0 %v277
    %v360 = vpop.f32.mrb[0].mxu0
    %v361 = vadd.f32 %v270, %v360
    %v362 = vpop.f32.mrb[0].mxu0
    %363 = vmatprep.mubr.f32.mxu0 0.0
    %364 = vmatmul.mubr.f32.gmra.mrb[0].mxu0 %v280
    %v365 = vpop.f32.mrb[0].mxu0
    %v366 = vadd.f32 %v270, %v365
    %v367 = vpop.f32.mrb[0].mxu0
    %368 = vmatprep.mubr.f32.mxu0 0.0
    %369 = vmatmul.mubr.f32.gmra.mrb[0].mxu0 %v283
    %v370 = vpop.f32.mrb[0].mxu0
    %v371 = vadd.f32 %v270, %v370
    %v372 = vpop.f32.mrb[0].mxu0
    %373 = vdwg.mxu0
    loop: start=0, step=1, limit=9
    $region142: #{tpu_custom_call.1} parent=1 // loop_pre_header
      _
    $region143: #{tpu_custom_call.1} parent=1 // loop_header
      %s375 = sphi 0, %s379
      %p376 = scmp.ge.s32.totalorder %s375, 9
      %v380 = vphi %v356, %v3644
      %v381 = vphi %v361, %v3645
      %v382 = vphi %v366, %v3646
      %v383 = vphi %v371, %v3647
    $region144: #{tpu_custom_call.1} parent=1 // loop_header_branch
      %378 = sbr.rel (%p376) target = $region148
    $region145: #{tpu_custom_call.1} parent=1 // loop_body
      %s384 = scalar_lea.vmem %s5, %s375
      %v385 = vld [vmem:[%s384] sm:$0x1]
      %s386 = scalar_lea.vmem [#allocation9], %s375
      %v387 = vld [vmem:[%s386] sm:$0x1]
      %vm388 = vcmask 261120
      %v389 = vsel %vm388, %v380, 0.0
      %390 = vadd.xlane.f32.xlu0 %v389
      %v391 = vpop.xlane.xlu0 %390
      %v392 = vsel %vm388, %v381, 0.0
      %393 = vadd.xlane.f32.xlu0 %v392
      %v394 = vpop.xlane.xlu0 %393
      %v395 = vsel %vm388, %v382, 0.0
      %396 = vadd.xlane.f32.xlu0 %v395
      %v397 = vpop.xlane.xlu0 %396
      %v398 = vsel %vm388, %v383, 0.0
      %399 = vadd.xlane.f32.xlu0 %v398
      %v400 = vpop.xlane.xlu0 %399
      %v401 = vrcp.pop 32.0
      %v402 = vmul.f32 %v391, %v401
      %v403 = vmul.f32 %v394, %v401
      %v404 = vmul.f32 %v397, %v401
      %v405 = vmul.f32 %v400, %v401
      %v406 = vsub.f32 %v380, %v402
      %v407 = vsub.f32 %v381, %v403
      %v408 = vsub.f32 %v382, %v404
      %v409 = vsub.f32 %v383, %v405
      %v410 = vmul.f32 %v406, %v406
      %v411 = vmul.f32 %v407, %v407
      %v412 = vmul.f32 %v408, %v408
      %v413 = vmul.f32 %v409, %v409
      %v414 = vsel %vm388, %v410, 0.0
      %415 = vadd.xlane.f32.xlu0 %v414
      %v416 = vpop.xlane.xlu0 %415
      %v417 = vsel %vm388, %v411, 0.0
      %418 = vadd.xlane.f32.xlu0 %v417
      %v419 = vpop.xlane.xlu0 %418
      %v420 = vsel %vm388, %v412, 0.0
      %421 = vadd.xlane.f32.xlu0 %v420
      %v422 = vpop.xlane.xlu0 %421
      %v423 = vsel %vm388, %v413, 0.0
      %424 = vadd.xlane.f32.xlu0 %v423
      %v425 = vpop.xlane.xlu0 %424
      %v426 = vmul.f32 %v416, %v401
      %v427 = vmul.f32 %v419, %v401
      %v428 = vmul.f32 %v422, %v401
      %v429 = vmul.f32 %v425, %v401
      %v430 = vadd.f32 %v426, 1e-05
      %v431 = vadd.f32 %v427, 1e-05
      %v432 = vadd.f32 %v428, 1e-05
      %v433 = vadd.f32 %v429, 1e-05
      %v434 = vrsqrt.pop %v430
      %v435 = vrsqrt.pop %v431
      %v436 = vrsqrt.pop %v432
      %v437 = vrsqrt.pop %v433
      %v438 = vmul.f32 %v406, %v434
      %v439 = vmul.f32 %v407, %v435
      %v440 = vmul.f32 %v408, %v436
      %v441 = vmul.f32 %v409, %v437
      %v443 = vlaneseq
      %v444 = vshrl.u32 %v443, 7
      %v445 = vsub.s32 0, %v444
      %v446 = vrot.slane %v385, %v445
      %v448 = vmul.f32 %v438, %v446
      %v449 = vmul.f32 %v439, %v446
      %v450 = vmul.f32 %v440, %v446
      %v451 = vmul.f32 %v441, %v446
      %v453 = vlaneseq
      %v454 = vshrl.u32 %v453, 7
      %v455 = vsub.s32 0, %v454
      %v456 = vrot.slane %v387, %v455
      %v458 = vadd.f32 %v448, %v456
      %v459 = vadd.f32 %v449, %v456
      %v460 = vadd.f32 %v450, %v456
      %v461 = vadd.f32 %v451, %v456
      %v462 = vpack.c.bf16 %v459, %v458
      %v463 = vpack.c.bf16 %v461, %v460
      %s464 = smul.u32 %s375, 4
      %s465 = smul.addr %s464, 4
      %s466 = scalar_lea.vmem [#allocation11], %s465
      %v467 = vld [vmem:[%s466] sm:$0xf]
      %v468 = vld [vmem:[%s466 + $0x4] sm:$0xf]
      %v469 = vld [vmem:[%s466 + $0x8] sm:$0xf]
      %v470 = vld [vmem:[%s466 + $0xc] sm:$0xf]
      %s471 = scalar_lea.vmem [#allocation12], %s375
      %v472 = vld [vmem:[%s471] sm:$0x1]
      %v474 = vlaneseq
      %v475 = vshrl.u32 %v474, 7
      %v476 = vsub.s32 0, %v475
      %v477 = vrot.slane %v472, %v476
      %v483 = vunpack.c.l.b16 %v467
      %v484 = vunpack.c.l.b16 %v468
      %v485 = vunpack.c.l.b16 %v469
      %v486 = vunpack.c.l.b16 %v470
      %v487 = vpack.c.b16 %v484, %v483
      %v488 = vpack.c.b16 %v486, %v485
      %v492 = vsel %vm388, %v462, 0
      %v495 = vsel %vm388, %v463, 0
      %497 = vmatprep.subr.bf16.mxu0 0
      %498 = vmatpush1.bf16.msra.mxu0 %v487
      %499 = vmatprep.subr.bf16.mxu0 0
      %500 = vmatpush1.bf16.msra.mxu0 %v488
      %501 = vmatprep.subr.bf16.mxu0 0
      %502 = vmatpush1.bf16.msra.mxu0 0
      %503 = vmatprep.subr.bf16.mxu0 0
      %504 = vmatpush1.bf16.msra.mxu0 0
      %505 = vmatprep.subr.bf16.mxu0 0
      %506 = vmatpush1.bf16.msra.mxu0 0
      %507 = vmatprep.subr.bf16.mxu0 0
      %508 = vmatpush1.bf16.msra.mxu0 0
      %509 = vmatprep.subr.bf16.mxu0 0
      %510 = vmatpush1.bf16.msra.mxu0 0
      %511 = vmatprep.subr.bf16.mxu0 0
      %512 = vmatpush1.bf16.msra.mxu0 0
      %513 = vmatprep.subr.bf16.mxu0 0
      %514 = vmatpush1.bf16.msra.mxu0 0
      %515 = vmatprep.subr.bf16.mxu0 0
      %516 = vmatpush1.bf16.msra.mxu0 0
      %517 = vmatprep.subr.bf16.mxu0 0
      %518 = vmatpush1.bf16.msra.mxu0 0
      %519 = vmatprep.subr.bf16.mxu0 0
      %520 = vmatpush1.bf16.msra.mxu0 0
      %521 = vmatprep.subr.bf16.mxu0 0
      %522 = vmatpush1.bf16.msra.mxu0 0
      %523 = vmatprep.subr.bf16.mxu0 0
      %524 = vmatpush1.bf16.msra.mxu0 0
      %525 = vmatprep.subr.bf16.mxu0 0
      %526 = vmatpush1.bf16.msra.mxu0 0
      %527 = vmatprep.subr.bf16.mxu0 0
      %528 = vmatpush1.bf16.msra.mxu0 0
      %529 = vmatprep.mubr.bf16.mxu0 0
      %530 = vmatmul.mubr.bf16.gmra.mrb[0].mxu0 %v492
      %v531 = vpop.f32.mrb[0].mxu0
      %v532 = vadd.f32 %v477, %v531
      %v533 = vpop.f32.mrb[0].mxu0
      %v534 = vpop.f32.mrb[0].mxu0
      %v535 = vadd.f32 %v477, %v534
      %v536 = vpop.f32.mrb[0].mxu0
      %537 = vmatprep.mubr.bf16.mxu0 0
      %538 = vmatmul.mubr.bf16.gmra.mrb[0].mxu0 %v495
      %v539 = vpop.f32.mrb[0].mxu0
      %v540 = vadd.f32 %v477, %v539
      %v541 = vpop.f32.mrb[0].mxu0
      %v542 = vpop.f32.mrb[0].mxu0
      %v543 = vadd.f32 %v477, %v542
      %v544 = vpop.f32.mrb[0].mxu0
      %545 = vdwg.mxu0
      %v546 = vpack.c.bf16 %v535, %v532
      %v547 = vpack.c.bf16 %v543, %v540
      %550 = vrot.lane.b32.xlu0 %v546, 120
      %v551 = vpop.permute.xlu0 %550
      %552 = vrot.lane.b32.xlu0 %v547, 120
      %v553 = vpop.permute.xlu0 %552
      %554 = vrot.lane.b32.xlu0 %v546, 112
      %v555 = vpop.permute.xlu0 %554
      %556 = vrot.lane.b32.xlu0 %v547, 112
      %v557 = vpop.permute.xlu0 %556
      %558 = vrot.lane.b32.xlu0 %v546, 104
      %v559 = vpop.permute.xlu0 %558
      %560 = vrot.lane.b32.xlu0 %v547, 104
      %v561 = vpop.permute.xlu0 %560
      %562 = vrot.lane.b32.xlu0 %v546, 96
      %v563 = vpop.permute.xlu0 %562
      %564 = vrot.lane.b32.xlu0 %v547, 96
      %v565 = vpop.permute.xlu0 %564
      %566 = vrot.lane.b32.xlu0 %v546, 88
      %v567 = vpop.permute.xlu0 %566
      %568 = vrot.lane.b32.xlu0 %v547, 88
      %v569 = vpop.permute.xlu0 %568
      %570 = vrot.lane.b32.xlu0 %v546, 80
      %v571 = vpop.permute.xlu0 %570
      %572 = vrot.lane.b32.xlu0 %v547, 80
      %v573 = vpop.permute.xlu0 %572
      %574 = vrot.lane.b32.xlu0 %v546, 72
      %v575 = vpop.permute.xlu0 %574
      %576 = vrot.lane.b32.xlu0 %v547, 72
      %v577 = vpop.permute.xlu0 %576
      %578 = vrot.lane.b32.xlu0 %v546, 64
      %v579 = vpop.permute.xlu0 %578
      %580 = vrot.lane.b32.xlu0 %v547, 64
      %v581 = vpop.permute.xlu0 %580
      %582 = vrot.lane.b32.xlu0 %v546, 56
      %v583 = vpop.permute.xlu0 %582
      %584 = vrot.lane.b32.xlu0 %v547, 56
      %v585 = vpop.permute.xlu0 %584
      %586 = vrot.lane.b32.xlu0 %v546, 48
      %v587 = vpop.permute.xlu0 %586
      %588 = vrot.lane.b32.xlu0 %v547, 48
      %v589 = vpop.permute.xlu0 %588
      %590 = vrot.lane.b32.xlu0 %v546, 40
      %v591 = vpop.permute.xlu0 %590
      %592 = vrot.lane.b32.xlu0 %v547, 40
      %v593 = vpop.permute.xlu0 %592
      %v596 = vpack.i.b16 %v551, %v546
      %v598 = vshrl.u32 %v546, 16
      %v599 = vshrl.u32 %v551, 16
      %v600 = vpack.i.b16 %v599, %v598
      %v604 = vpack.i.b16 %v559, %v555
      %v606 = vshrl.u32 %v555, 16
      %v607 = vshrl.u32 %v559, 16
      %v608 = vpack.i.b16 %v607, %v606
      %v612 = vpack.i.b16 %v567, %v563
      %v614 = vshrl.u32 %v563, 16
      %v615 = vshrl.u32 %v567, 16
      %v616 = vpack.i.b16 %v615, %v614
      %v620 = vpack.i.b16 %v575, %v571
      %v622 = vshrl.u32 %v571, 16
      %v623 = vshrl.u32 %v575, 16
      %v624 = vpack.i.b16 %v623, %v622
      %v628 = vpack.i.b16 %v583, %v579
      %v630 = vshrl.u32 %v579, 16
      %v631 = vshrl.u32 %v583, 16
      %v632 = vpack.i.b16 %v631, %v630
      %v636 = vpack.i.b16 %v591, %v587
      %v638 = vshrl.u32 %v587, 16
      %v639 = vshrl.u32 %v591, 16
      %v640 = vpack.i.b16 %v639, %v638
      %v643 = vpack.i.b16 0, 0
      %v645 = vshrl.u32 0, 16
      %v646 = vpack.i.b16 %v645, %v645
      %v650 = vpack.i.b16 %v553, %v547
      %v652 = vshrl.u32 %v547, 16
      %v653 = vshrl.u32 %v553, 16
      %v654 = vpack.i.b16 %v653, %v652
      %v658 = vpack.i.b16 %v561, %v557
      %v660 = vshrl.u32 %v557, 16
      %v661 = vshrl.u32 %v561, 16
      %v662 = vpack.i.b16 %v661, %v660
      %v666 = vpack.i.b16 %v569, %v565
      %v668 = vshrl.u32 %v565, 16
      %v669 = vshrl.u32 %v569, 16
      %v670 = vpack.i.b16 %v669, %v668
      %v674 = vpack.i.b16 %v577, %v573
      %v676 = vshrl.u32 %v573, 16
      %v677 = vshrl.u32 %v577, 16
      %v678 = vpack.i.b16 %v677, %v676
      %v682 = vpack.i.b16 %v585, %v581
      %v684 = vshrl.u32 %v581, 16
      %v685 = vshrl.u32 %v585, 16
      %v686 = vpack.i.b16 %v685, %v684
      %v690 = vpack.i.b16 %v593, %v589
      %v692 = vshrl.u32 %v589, 16
      %v693 = vshrl.u32 %v593, 16
      %v694 = vpack.i.b16 %v693, %v692
      %v696 = vcombine.low %v596, %v612
      %v697 = vcombine.high %v596, %v612
      %v699 = vunpack.c.l.s4 1983009808
      %v700 = vunpack.c.0.s8 %v699
      %v701 = vlaneseq
      %v702 = vshrl.u32 %v701, 7
      %v703 = vsub.s32 %v700, %v702
      %v704 = vrot.slane %v696, %v703
      %v706 = vunpack.c.l.s4 1983009808
      %v707 = vunpack.c.0.s8 %v706
      %v708 = vlaneseq
      %v709 = vshrl.u32 %v708, 7
      %v710 = vsub.s32 %v707, %v709
      %v711 = vrot.slane %v697, %v710
      %v712 = vcombine.low %v604, %v620
      %v713 = vcombine.high %v604, %v620
      %v715 = vunpack.c.l.s4 1983009808
      %v716 = vunpack.c.0.s8 %v715
      %v717 = vlaneseq
      %v718 = vshrl.u32 %v717, 7
      %v719 = vsub.s32 %v716, %v718
      %v720 = vrot.slane %v712, %v719
      %v722 = vunpack.c.l.s4 1983009808
      %v723 = vunpack.c.0.s8 %v722
      %v724 = vlaneseq
      %v725 = vshrl.u32 %v724, 7
      %v726 = vsub.s32 %v723, %v725
      %v727 = vrot.slane %v713, %v726
      %v728 = vcombine.high %v628, %v643
      %v730 = vunpack.c.l.s4 1983009808
      %v731 = vunpack.c.0.s8 %v730
      %v732 = vlaneseq
      %v733 = vshrl.u32 %v732, 7
      %v734 = vsub.s32 %v731, %v733
      %v735 = vrot.slane %v628, %v734
      %v737 = vunpack.c.l.s4 1983009808
      %v738 = vunpack.c.0.s8 %v737
      %v739 = vlaneseq
      %v740 = vshrl.u32 %v739, 7
      %v741 = vsub.s32 %v738, %v740
      %v742 = vrot.slane %v728, %v741
      %v743 = vcombine.high %v636, %v643
      %v745 = vunpack.c.l.s4 1983009808
      %v746 = vunpack.c.0.s8 %v745
      %v747 = vlaneseq
      %v748 = vshrl.u32 %v747, 7
      %v749 = vsub.s32 %v746, %v748
      %v750 = vrot.slane %v636, %v749
      %v752 = vunpack.c.l.s4 1983009808
      %v753 = vunpack.c.0.s8 %v752
      %v754 = vlaneseq
      %v755 = vshrl.u32 %v754, 7
      %v756 = vsub.s32 %v753, %v755
      %v757 = vrot.slane %v743, %v756
      %v758 = vcombine.low %v704, %v720
      %v759 = vcombine.high %v704, %v720
      %v761 = vunpack.c.l.s4 1934713408
      %v762 = vunpack.c.0.s8 %v761
      %v763 = vlaneseq
      %v764 = vshrl.u32 %v763, 7
      %v765 = vsub.s32 %v762, %v764
      %v766 = vrot.slane %v758, %v765
      %v768 = vunpack.c.l.s4 1934713408
      %v769 = vunpack.c.0.s8 %v768
      %v770 = vlaneseq
      %v771 = vshrl.u32 %v770, 7
      %v772 = vsub.s32 %v769, %v771
      %v773 = vrot.slane %v759, %v772
      %v774 = vcombine.low %v711, %v727
      %v775 = vcombine.high %v711, %v727
      %v777 = vunpack.c.l.s4 1934713408
      %v778 = vunpack.c.0.s8 %v777
      %v779 = vlaneseq
      %v780 = vshrl.u32 %v779, 7
      %v781 = vsub.s32 %v778, %v780
      %v782 = vrot.slane %v774, %v781
      %v784 = vunpack.c.l.s4 1934713408
      %v785 = vunpack.c.0.s8 %v784
      %v786 = vlaneseq
      %v787 = vshrl.u32 %v786, 7
      %v788 = vsub.s32 %v785, %v787
      %v789 = vrot.slane %v775, %v788
      %v790 = vcombine.low %v735, %v750
      %v791 = vcombine.high %v735, %v750
      %v793 = vunpack.c.l.s4 1934713408
      %v794 = vunpack.c.0.s8 %v793
      %v795 = vlaneseq
      %v796 = vshrl.u32 %v795, 7
      %v797 = vsub.s32 %v794, %v796
      %v798 = vrot.slane %v790, %v797
      %v800 = vunpack.c.l.s4 1934713408
      %v801 = vunpack.c.0.s8 %v800
      %v802 = vlaneseq
      %v803 = vshrl.u32 %v802, 7
      %v804 = vsub.s32 %v801, %v803
      %v805 = vrot.slane %v791, %v804
      %v806 = vcombine.low %v742, %v757
      %v807 = vcombine.high %v742, %v757
      %v809 = vunpack.c.l.s4 1934713408
      %v810 = vunpack.c.0.s8 %v809
      %v811 = vlaneseq
      %v812 = vshrl.u32 %v811, 7
      %v813 = vsub.s32 %v810, %v812
      %v814 = vrot.slane %v806, %v813
      %v816 = vunpack.c.l.s4 1934713408
      %v817 = vunpack.c.0.s8 %v816
      %v818 = vlaneseq
      %v819 = vshrl.u32 %v818, 7
      %v820 = vsub.s32 %v817, %v819
      %v821 = vrot.slane %v807, %v820
      %v822 = vcombine.low %v766, %v798
      %v823 = vcombine.high %v766, %v798
      %v824 = vcombine.low %v773, %v805
      %v825 = vcombine.high %v773, %v805
      %v826 = vcombine.low %v782, %v814
      %v827 = vcombine.high %v782, %v814
      %v828 = vcombine.low %v789, %v821
      %v829 = vcombine.high %v789, %v821
      %v830 = vcombine.low %v600, %v616
      %v831 = vcombine.high %v600, %v616
      %v833 = vunpack.c.l.s4 1983009808
      %v834 = vunpack.c.0.s8 %v833
      %v835 = vlaneseq
      %v836 = vshrl.u32 %v835, 7
      %v837 = vsub.s32 %v834, %v836
      %v838 = vrot.slane %v830, %v837
      %v840 = vunpack.c.l.s4 1983009808
      %v841 = vunpack.c.0.s8 %v840
      %v842 = vlaneseq
      %v843 = vshrl.u32 %v842, 7
      %v844 = vsub.s32 %v841, %v843
      %v845 = vrot.slane %v831, %v844
      %v846 = vcombine.low %v608, %v624
      %v847 = vcombine.high %v608, %v624
      %v849 = vunpack.c.l.s4 1983009808
      %v850 = vunpack.c.0.s8 %v849
      %v851 = vlaneseq
      %v852 = vshrl.u32 %v851, 7
      %v853 = vsub.s32 %v850, %v852
      %v854 = vrot.slane %v846, %v853
      %v856 = vunpack.c.l.s4 1983009808
      %v857 = vunpack.c.0.s8 %v856
      %v858 = vlaneseq
      %v859 = vshrl.u32 %v858, 7
      %v860 = vsub.s32 %v857, %v859
      %v861 = vrot.slane %v847, %v860
      %v862 = vcombine.high %v632, %v646
      %v864 = vunpack.c.l.s4 1983009808
      %v865 = vunpack.c.0.s8 %v864
      %v866 = vlaneseq
      %v867 = vshrl.u32 %v866, 7
      %v868 = vsub.s32 %v865, %v867
      %v869 = vrot.slane %v632, %v868
      %v871 = vunpack.c.l.s4 1983009808
      %v872 = vunpack.c.0.s8 %v871
      %v873 = vlaneseq
      %v874 = vshrl.u32 %v873, 7
      %v875 = vsub.s32 %v872, %v874
      %v876 = vrot.slane %v862, %v875
      %v877 = vcombine.high %v640, %v646
      %v879 = vunpack.c.l.s4 1983009808
      %v880 = vunpack.c.0.s8 %v879
      %v881 = vlaneseq
      %v882 = vshrl.u32 %v881, 7
      %v883 = vsub.s32 %v880, %v882
      %v884 = vrot.slane %v640, %v883
      %v886 = vunpack.c.l.s4 1983009808
      %v887 = vunpack.c.0.s8 %v886
      %v888 = vlaneseq
      %v889 = vshrl.u32 %v888, 7
      %v890 = vsub.s32 %v887, %v889
      %v891 = vrot.slane %v877, %v890
      %v892 = vcombine.low %v838, %v854
      %v893 = vcombine.high %v838, %v854
      %v895 = vunpack.c.l.s4 1934713408
      %v896 = vunpack.c.0.s8 %v895
      %v897 = vlaneseq
      %v898 = vshrl.u32 %v897, 7
      %v899 = vsub.s32 %v896, %v898
      %v900 = vrot.slane %v892, %v899
      %v902 = vunpack.c.l.s4 1934713408
      %v903 = vunpack.c.0.s8 %v902
      %v904 = vlaneseq
      %v905 = vshrl.u32 %v904, 7
      %v906 = vsub.s32 %v903, %v905
      %v907 = vrot.slane %v893, %v906
      %v908 = vcombine.low %v845, %v861
      %v909 = vcombine.high %v845, %v861
      %v911 = vunpack.c.l.s4 1934713408
      %v912 = vunpack.c.0.s8 %v911
      %v913 = vlaneseq
      %v914 = vshrl.u32 %v913, 7
      %v915 = vsub.s32 %v912, %v914
      %v916 = vrot.slane %v908, %v915
      %v918 = vunpack.c.l.s4 1934713408
      %v919 = vunpack.c.0.s8 %v918
      %v920 = vlaneseq
      %v921 = vshrl.u32 %v920, 7
      %v922 = vsub.s32 %v919, %v921
      %v923 = vrot.slane %v909, %v922
      %v924 = vcombine.low %v869, %v884
      %v925 = vcombine.high %v869, %v884
      %v927 = vunpack.c.l.s4 1934713408
      %v928 = vunpack.c.0.s8 %v927
      %v929 = vlaneseq
      %v930 = vshrl.u32 %v929, 7
      %v931 = vsub.s32 %v928, %v930
      %v932 = vrot.slane %v924, %v931
      %v934 = vunpack.c.l.s4 1934713408
      %v935 = vunpack.c.0.s8 %v934
      %v936 = vlaneseq
      %v937 = vshrl.u32 %v936, 7
      %v938 = vsub.s32 %v935, %v937
      %v939 = vrot.slane %v925, %v938
      %v940 = vcombine.low %v876, %v891
      %v941 = vcombine.high %v876, %v891
      %v943 = vunpack.c.l.s4 1934713408
      %v944 = vunpack.c.0.s8 %v943
      %v945 = vlaneseq
      %v946 = vshrl.u32 %v945, 7
      %v947 = vsub.s32 %v944, %v946
      %v948 = vrot.slane %v940, %v947
      %v950 = vunpack.c.l.s4 1934713408
      %v951 = vunpack.c.0.s8 %v950
      %v952 = vlaneseq
      %v953 = vshrl.u32 %v952, 7
      %v954 = vsub.s32 %v951, %v953
      %v955 = vrot.slane %v941, %v954
      %v956 = vcombine.low %v900, %v932
      %v957 = vcombine.high %v900, %v932
      %v958 = vcombine.low %v907, %v939
      %v959 = vcombine.high %v907, %v939
      %v960 = vcombine.low %v916, %v948
      %v961 = vcombine.high %v916, %v948
      %v962 = vcombine.low %v923, %v955
      %v963 = vcombine.high %v923, %v955
      %v964 = vcombine.low %v650, %v666
      %v965 = vcombine.high %v650, %v666
      %v967 = vunpack.c.l.s4 1983009808
      %v968 = vunpack.c.0.s8 %v967
      %v969 = vlaneseq
      %v970 = vshrl.u32 %v969, 7
      %v971 = vsub.s32 %v968, %v970
      %v972 = vrot.slane %v964, %v971
      %v974 = vunpack.c.l.s4 1983009808
      %v975 = vunpack.c.0.s8 %v974
      %v976 = vlaneseq
      %v977 = vshrl.u32 %v976, 7
      %v978 = vsub.s32 %v975, %v977
      %v979 = vrot.slane %v965, %v978
      %v980 = vcombine.low %v658, %v674
      %v981 = vcombine.high %v658, %v674
      %v983 = vunpack.c.l.s4 1983009808
      %v984 = vunpack.c.0.s8 %v983
      %v985 = vlaneseq
      %v986 = vshrl.u32 %v985, 7
      %v987 = vsub.s32 %v984, %v986
      %v988 = vrot.slane %v980, %v987
      %v990 = vunpack.c.l.s4 1983009808
      %v991 = vunpack.c.0.s8 %v990
      %v992 = vlaneseq
      %v993 = vshrl.u32 %v992, 7
      %v994 = vsub.s32 %v991, %v993
      %v995 = vrot.slane %v981, %v994
      %v996 = vcombine.high %v682, %v643
      %v998 = vunpack.c.l.s4 1983009808
      %v999 = vunpack.c.0.s8 %v998
      %v1000 = vlaneseq
      %v1001 = vshrl.u32 %v1000, 7
      %v1002 = vsub.s32 %v999, %v1001
      %v1003 = vrot.slane %v682, %v1002
      %v1005 = vunpack.c.l.s4 1983009808
      %v1006 = vunpack.c.0.s8 %v1005
      %v1007 = vlaneseq
      %v1008 = vshrl.u32 %v1007, 7
      %v1009 = vsub.s32 %v1006, %v1008
      %v1010 = vrot.slane %v996, %v1009
      %v1011 = vcombine.high %v690, %v643
      %v1013 = vunpack.c.l.s4 1983009808
      %v1014 = vunpack.c.0.s8 %v1013
      %v1015 = vlaneseq
      %v1016 = vshrl.u32 %v1015, 7
      %v1017 = vsub.s32 %v1014, %v1016
      %v1018 = vrot.slane %v690, %v1017
      %v1020 = vunpack.c.l.s4 1983009808
      %v1021 = vunpack.c.0.s8 %v1020
      %v1022 = vlaneseq
      %v1023 = vshrl.u32 %v1022, 7
      %v1024 = vsub.s32 %v1021, %v1023
      %v1025 = vrot.slane %v1011, %v1024
      %v1026 = vcombine.low %v972, %v988
      %v1027 = vcombine.high %v972, %v988
      %v1029 = vunpack.c.l.s4 1934713408
      %v1030 = vunpack.c.0.s8 %v1029
      %v1031 = vlaneseq
      %v1032 = vshrl.u32 %v1031, 7
      %v1033 = vsub.s32 %v1030, %v1032
      %v1034 = vrot.slane %v1026, %v1033
      %v1036 = vunpack.c.l.s4 1934713408
      %v1037 = vunpack.c.0.s8 %v1036
      %v1038 = vlaneseq
      %v1039 = vshrl.u32 %v1038, 7
      %v1040 = vsub.s32 %v1037, %v1039
      %v1041 = vrot.slane %v1027, %v1040
      %v1042 = vcombine.low %v979, %v995
      %v1043 = vcombine.high %v979, %v995
      %v1045 = vunpack.c.l.s4 1934713408
      %v1046 = vunpack.c.0.s8 %v1045
      %v1047 = vlaneseq
      %v1048 = vshrl.u32 %v1047, 7
      %v1049 = vsub.s32 %v1046, %v1048
      %v1050 = vrot.slane %v1042, %v1049
      %v1052 = vunpack.c.l.s4 1934713408
      %v1053 = vunpack.c.0.s8 %v1052
      %v1054 = vlaneseq
      %v1055 = vshrl.u32 %v1054, 7
      %v1056 = vsub.s32 %v1053, %v1055
      %v1057 = vrot.slane %v1043, %v1056
      %v1058 = vcombine.low %v1003, %v1018
      %v1059 = vcombine.high %v1003, %v1018
      %v1061 = vunpack.c.l.s4 1934713408
      %v1062 = vunpack.c.0.s8 %v1061
      %v1063 = vlaneseq
      %v1064 = vshrl.u32 %v1063, 7
      %v1065 = vsub.s32 %v1062, %v1064
      %v1066 = vrot.slane %v1058, %v1065
      %v1068 = vunpack.c.l.s4 1934713408
      %v1069 = vunpack.c.0.s8 %v1068
      %v1070 = vlaneseq
      %v1071 = vshrl.u32 %v1070, 7
      %v1072 = vsub.s32 %v1069, %v1071
      %v1073 = vrot.slane %v1059, %v1072
      %v1074 = vcombine.low %v1010, %v1025
      %v1075 = vcombine.high %v1010, %v1025
      %v1077 = vunpack.c.l.s4 1934713408
      %v1078 = vunpack.c.0.s8 %v1077
      %v1079 = vlaneseq
      %v1080 = vshrl.u32 %v1079, 7
      %v1081 = vsub.s32 %v1078, %v1080
      %v1082 = vrot.slane %v1074, %v1081
      %v1084 = vunpack.c.l.s4 1934713408
      %v1085 = vunpack.c.0.s8 %v1084
      %v1086 = vlaneseq
      %v1087 = vshrl.u32 %v1086, 7
      %v1088 = vsub.s32 %v1085, %v1087
      %v1089 = vrot.slane %v1075, %v1088
      %v1090 = vcombine.low %v1034, %v1066
      %v1091 = vcombine.high %v1034, %v1066
      %v1092 = vcombine.low %v1041, %v1073
      %v1093 = vcombine.high %v1041, %v1073
      %v1094 = vcombine.low %v1050, %v1082
      %v1095 = vcombine.high %v1050, %v1082
      %v1096 = vcombine.low %v1057, %v1089
      %v1097 = vcombine.high %v1057, %v1089
      %v1098 = vcombine.low %v654, %v670
      %v1099 = vcombine.high %v654, %v670
      %v1101 = vunpack.c.l.s4 1983009808
      %v1102 = vunpack.c.0.s8 %v1101
      %v1103 = vlaneseq
      %v1104 = vshrl.u32 %v1103, 7
      %v1105 = vsub.s32 %v1102, %v1104
      %v1106 = vrot.slane %v1098, %v1105
      %v1108 = vunpack.c.l.s4 1983009808
      %v1109 = vunpack.c.0.s8 %v1108
      %v1110 = vlaneseq
      %v1111 = vshrl.u32 %v1110, 7
      %v1112 = vsub.s32 %v1109, %v1111
      %v1113 = vrot.slane %v1099, %v1112
      %v1114 = vcombine.low %v662, %v678
      %v1115 = vcombine.high %v662, %v678
      %v1117 = vunpack.c.l.s4 1983009808
      %v1118 = vunpack.c.0.s8 %v1117
      %v1119 = vlaneseq
      %v1120 = vshrl.u32 %v1119, 7
      %v1121 = vsub.s32 %v1118, %v1120
      %v1122 = vrot.slane %v1114, %v1121
      %v1124 = vunpack.c.l.s4 1983009808
      %v1125 = vunpack.c.0.s8 %v1124
      %v1126 = vlaneseq
      %v1127 = vshrl.u32 %v1126, 7
      %v1128 = vsub.s32 %v1125, %v1127
      %v1129 = vrot.slane %v1115, %v1128
      %v1130 = vcombine.high %v686, %v646
      %v1132 = vunpack.c.l.s4 1983009808
      %v1133 = vunpack.c.0.s8 %v1132
      %v1134 = vlaneseq
      %v1135 = vshrl.u32 %v1134, 7
      %v1136 = vsub.s32 %v1133, %v1135
      %v1137 = vrot.slane %v686, %v1136
      %v1139 = vunpack.c.l.s4 1983009808
      %v1140 = vunpack.c.0.s8 %v1139
      %v1141 = vlaneseq
      %v1142 = vshrl.u32 %v1141, 7
      %v1143 = vsub.s32 %v1140, %v1142
      %v1144 = vrot.slane %v1130, %v1143
      %v1145 = vcombine.high %v694, %v646
      %v1147 = vunpack.c.l.s4 1983009808
      %v1148 = vunpack.c.0.s8 %v1147
      %v1149 = vlaneseq
      %v1150 = vshrl.u32 %v1149, 7
      %v1151 = vsub.s32 %v1148, %v1150
      %v1152 = vrot.slane %v694, %v1151
      %v1154 = vunpack.c.l.s4 1983009808
      %v1155 = vunpack.c.0.s8 %v1154
      %v1156 = vlaneseq
      %v1157 = vshrl.u32 %v1156, 7
      %v1158 = vsub.s32 %v1155, %v1157
      %v1159 = vrot.slane %v1145, %v1158
      %v1160 = vcombine.low %v1106, %v1122
      %v1161 = vcombine.high %v1106, %v1122
      %v1163 = vunpack.c.l.s4 1934713408
      %v1164 = vunpack.c.0.s8 %v1163
      %v1165 = vlaneseq
      %v1166 = vshrl.u32 %v1165, 7
      %v1167 = vsub.s32 %v1164, %v1166
      %v1168 = vrot.slane %v1160, %v1167
      %v1170 = vunpack.c.l.s4 1934713408
      %v1171 = vunpack.c.0.s8 %v1170
      %v1172 = vlaneseq
      %v1173 = vshrl.u32 %v1172, 7
      %v1174 = vsub.s32 %v1171, %v1173
      %v1175 = vrot.slane %v1161, %v1174
      %v1176 = vcombine.low %v1113, %v1129
      %v1177 = vcombine.high %v1113, %v1129
      %v1179 = vunpack.c.l.s4 1934713408
      %v1180 = vunpack.c.0.s8 %v1179
      %v1181 = vlaneseq
      %v1182 = vshrl.u32 %v1181, 7
      %v1183 = vsub.s32 %v1180, %v1182
      %v1184 = vrot.slane %v1176, %v1183
      %v1186 = vunpack.c.l.s4 1934713408
      %v1187 = vunpack.c.0.s8 %v1186
      %v1188 = vlaneseq
      %v1189 = vshrl.u32 %v1188, 7
      %v1190 = vsub.s32 %v1187, %v1189
      %v1191 = vrot.slane %v1177, %v1190
      %v1192 = vcombine.low %v1137, %v1152
      %v1193 = vcombine.high %v1137, %v1152
      %v1195 = vunpack.c.l.s4 1934713408
      %v1196 = vunpack.c.0.s8 %v1195
      %v1197 = vlaneseq
      %v1198 = vshrl.u32 %v1197, 7
      %v1199 = vsub.s32 %v1196, %v1198
      %v1200 = vrot.slane %v1192, %v1199
      %v1202 = vunpack.c.l.s4 1934713408
      %v1203 = vunpack.c.0.s8 %v1202
      %v1204 = vlaneseq
      %v1205 = vshrl.u32 %v1204, 7
      %v1206 = vsub.s32 %v1203, %v1205
      %v1207 = vrot.slane %v1193, %v1206
      %v1208 = vcombine.low %v1144, %v1159
      %v1209 = vcombine.high %v1144, %v1159
      %v1211 = vunpack.c.l.s4 1934713408
      %v1212 = vunpack.c.0.s8 %v1211
      %v1213 = vlaneseq
      %v1214 = vshrl.u32 %v1213, 7
      %v1215 = vsub.s32 %v1212, %v1214
      %v1216 = vrot.slane %v1208, %v1215
      %v1218 = vunpack.c.l.s4 1934713408
      %v1219 = vunpack.c.0.s8 %v1218
      %v1220 = vlaneseq
      %v1221 = vshrl.u32 %v1220, 7
      %v1222 = vsub.s32 %v1219, %v1221
      %v1223 = vrot.slane %v1209, %v1222
      %v1224 = vcombine.low %v1168, %v1200
      %v1225 = vcombine.high %v1168, %v1200
      %v1226 = vcombine.low %v1175, %v1207
      %v1227 = vcombine.high %v1175, %v1207
      %v1228 = vcombine.low %v1184, %v1216
      %v1229 = vcombine.high %v1184, %v1216
      %v1230 = vcombine.low %v1191, %v1223
      %v1231 = vcombine.high %v1191, %v1223
      %v1232 = vcombine.low %v822, %v824
      %v1233 = vcombine.high %v822, %v824
      %v1235 = vunpack.c.l.s4 1983009808
      %v1236 = vunpack.c.0.s8 %v1235
      %v1237 = vlaneseq
      %v1238 = vshrl.u32 %v1237, 7
      %v1239 = vsub.s32 %v1236, %v1238
      %v1240 = vrot.slane %v1232, %v1239
      %v1242 = vunpack.c.l.s4 1983009808
      %v1243 = vunpack.c.0.s8 %v1242
      %v1244 = vlaneseq
      %v1245 = vshrl.u32 %v1244, 7
      %v1246 = vsub.s32 %v1243, %v1245
      %v1247 = vrot.slane %v1233, %v1246
      %v1248 = vcombine.low %v823, %v825
      %v1249 = vcombine.high %v823, %v825
      %v1251 = vunpack.c.l.s4 1983009808
      %v1252 = vunpack.c.0.s8 %v1251
      %v1253 = vlaneseq
      %v1254 = vshrl.u32 %v1253, 7
      %v1255 = vsub.s32 %v1252, %v1254
      %v1256 = vrot.slane %v1248, %v1255
      %v1258 = vunpack.c.l.s4 1983009808
      %v1259 = vunpack.c.0.s8 %v1258
      %v1260 = vlaneseq
      %v1261 = vshrl.u32 %v1260, 7
      %v1262 = vsub.s32 %v1259, %v1261
      %v1263 = vrot.slane %v1249, %v1262
      %v1264 = vcombine.low %v826, %v828
      %v1265 = vcombine.high %v826, %v828
      %v1267 = vunpack.c.l.s4 1983009808
      %v1268 = vunpack.c.0.s8 %v1267
      %v1269 = vlaneseq
      %v1270 = vshrl.u32 %v1269, 7
      %v1271 = vsub.s32 %v1268, %v1270
      %v1272 = vrot.slane %v1264, %v1271
      %v1274 = vunpack.c.l.s4 1983009808
      %v1275 = vunpack.c.0.s8 %v1274
      %v1276 = vlaneseq
      %v1277 = vshrl.u32 %v1276, 7
      %v1278 = vsub.s32 %v1275, %v1277
      %v1279 = vrot.slane %v1265, %v1278
      %v1280 = vcombine.low %v827, %v829
      %v1281 = vcombine.high %v827, %v829
      %v1283 = vunpack.c.l.s4 1983009808
      %v1284 = vunpack.c.0.s8 %v1283
      %v1285 = vlaneseq
      %v1286 = vshrl.u32 %v1285, 7
      %v1287 = vsub.s32 %v1284, %v1286
      %v1288 = vrot.slane %v1280, %v1287
      %v1290 = vunpack.c.l.s4 1983009808
      %v1291 = vunpack.c.0.s8 %v1290
      %v1292 = vlaneseq
      %v1293 = vshrl.u32 %v1292, 7
      %v1294 = vsub.s32 %v1291, %v1293
      %v1295 = vrot.slane %v1281, %v1294
      %v1296 = vcombine.low %v1240, %v1256
      %v1297 = vcombine.high %v1240, %v1256
      %v1299 = vunpack.c.l.s4 1934713408
      %v1300 = vunpack.c.0.s8 %v1299
      %v1301 = vlaneseq
      %v1302 = vshrl.u32 %v1301, 7
      %v1303 = vsub.s32 %v1300, %v1302
      %v1304 = vrot.slane %v1296, %v1303
      %v1306 = vunpack.c.l.s4 1934713408
      %v1307 = vunpack.c.0.s8 %v1306
      %v1308 = vlaneseq
      %v1309 = vshrl.u32 %v1308, 7
      %v1310 = vsub.s32 %v1307, %v1309
      %v1311 = vrot.slane %v1297, %v1310
      %v1312 = vcombine.low %v1247, %v1263
      %v1314 = vunpack.c.l.s4 1934713408
      %v1315 = vunpack.c.0.s8 %v1314
      %v1316 = vlaneseq
      %v1317 = vshrl.u32 %v1316, 7
      %v1318 = vsub.s32 %v1315, %v1317
      %v1319 = vrot.slane %v1312, %v1318
      %v1320 = vcombine.low %v1272, %v1288
      %v1321 = vcombine.high %v1272, %v1288
      %v1323 = vunpack.c.l.s4 1934713408
      %v1324 = vunpack.c.0.s8 %v1323
      %v1325 = vlaneseq
      %v1326 = vshrl.u32 %v1325, 7
      %v1327 = vsub.s32 %v1324, %v1326
      %v1328 = vrot.slane %v1320, %v1327
      %v1330 = vunpack.c.l.s4 1934713408
      %v1331 = vunpack.c.0.s8 %v1330
      %v1332 = vlaneseq
      %v1333 = vshrl.u32 %v1332, 7
      %v1334 = vsub.s32 %v1331, %v1333
      %v1335 = vrot.slane %v1321, %v1334
      %v1336 = vcombine.low %v1279, %v1295
      %v1338 = vunpack.c.l.s4 1934713408
      %v1339 = vunpack.c.0.s8 %v1338
      %v1340 = vlaneseq
      %v1341 = vshrl.u32 %v1340, 7
      %v1342 = vsub.s32 %v1339, %v1341
      %v1343 = vrot.slane %v1336, %v1342
      %v1344 = vcombine.low %v1304, %v1328
      %v1345 = vcombine.high %v1304, %v1328
      %v1346 = vcombine.low %v1311, %v1335
      %v1347 = vcombine.high %v1311, %v1335
      %v1348 = vcombine.low %v1319, %v1343
      %v1349 = vcombine.high %v1319, %v1343
      %v1350 = vcombine.low %v956, %v958
      %v1351 = vcombine.high %v956, %v958
      %v1353 = vunpack.c.l.s4 1983009808
      %v1354 = vunpack.c.0.s8 %v1353
      %v1355 = vlaneseq
      %v1356 = vshrl.u32 %v1355, 7
      %v1357 = vsub.s32 %v1354, %v1356
      %v1358 = vrot.slane %v1350, %v1357
      %v1360 = vunpack.c.l.s4 1983009808
      %v1361 = vunpack.c.0.s8 %v1360
      %v1362 = vlaneseq
      %v1363 = vshrl.u32 %v1362, 7
      %v1364 = vsub.s32 %v1361, %v1363
      %v1365 = vrot.slane %v1351, %v1364
      %v1366 = vcombine.low %v957, %v959
      %v1367 = vcombine.high %v957, %v959
      %v1369 = vunpack.c.l.s4 1983009808
      %v1370 = vunpack.c.0.s8 %v1369
      %v1371 = vlaneseq
      %v1372 = vshrl.u32 %v1371, 7
      %v1373 = vsub.s32 %v1370, %v1372
      %v1374 = vrot.slane %v1366, %v1373
      %v1376 = vunpack.c.l.s4 1983009808
      %v1377 = vunpack.c.0.s8 %v1376
      %v1378 = vlaneseq
      %v1379 = vshrl.u32 %v1378, 7
      %v1380 = vsub.s32 %v1377, %v1379
      %v1381 = vrot.slane %v1367, %v1380
      %v1382 = vcombine.low %v960, %v962
      %v1383 = vcombine.high %v960, %v962
      %v1385 = vunpack.c.l.s4 1983009808
      %v1386 = vunpack.c.0.s8 %v1385
      %v1387 = vlaneseq
      %v1388 = vshrl.u32 %v1387, 7
      %v1389 = vsub.s32 %v1386, %v1388
      %v1390 = vrot.slane %v1382, %v1389
      %v1392 = vunpack.c.l.s4 1983009808
      %v1393 = vunpack.c.0.s8 %v1392
      %v1394 = vlaneseq
      %v1395 = vshrl.u32 %v1394, 7
      %v1396 = vsub.s32 %v1393, %v1395
      %v1397 = vrot.slane %v1383, %v1396
      %v1398 = vcombine.low %v961, %v963
      %v1399 = vcombine.high %v961, %v963
      %v1401 = vunpack.c.l.s4 1983009808
      %v1402 = vunpack.c.0.s8 %v1401
      %v1403 = vlaneseq
      %v1404 = vshrl.u32 %v1403, 7
      %v1405 = vsub.s32 %v1402, %v1404
      %v1406 = vrot.slane %v1398, %v1405
      %v1408 = vunpack.c.l.s4 1983009808
      %v1409 = vunpack.c.0.s8 %v1408
      %v1410 = vlaneseq
      %v1411 = vshrl.u32 %v1410, 7
      %v1412 = vsub.s32 %v1409, %v1411
      %v1413 = vrot.slane %v1399, %v1412
      %v1414 = vcombine.low %v1358, %v1374
      %v1415 = vcombine.high %v1358, %v1374
      %v1417 = vunpack.c.l.s4 1934713408
      %v1418 = vunpack.c.0.s8 %v1417
      %v1419 = vlaneseq
      %v1420 = vshrl.u32 %v1419, 7
      %v1421 = vsub.s32 %v1418, %v1420
      %v1422 = vrot.slane %v1414, %v1421
      %v1424 = vunpack.c.l.s4 1934713408
      %v1425 = vunpack.c.0.s8 %v1424
      %v1426 = vlaneseq
      %v1427 = vshrl.u32 %v1426, 7
      %v1428 = vsub.s32 %v1425, %v1427
      %v1429 = vrot.slane %v1415, %v1428
      %v1430 = vcombine.low %v1365, %v1381
      %v1432 = vunpack.c.l.s4 1934713408
      %v1433 = vunpack.c.0.s8 %v1432
      %v1434 = vlaneseq
      %v1435 = vshrl.u32 %v1434, 7
      %v1436 = vsub.s32 %v1433, %v1435
      %v1437 = vrot.slane %v1430, %v1436
      %v1438 = vcombine.low %v1390, %v1406
      %v1439 = vcombine.high %v1390, %v1406
      %v1441 = vunpack.c.l.s4 1934713408
      %v1442 = vunpack.c.0.s8 %v1441
      %v1443 = vlaneseq
      %v1444 = vshrl.u32 %v1443, 7
      %v1445 = vsub.s32 %v1442, %v1444
      %v1446 = vrot.slane %v1438, %v1445
      %v1448 = vunpack.c.l.s4 1934713408
      %v1449 = vunpack.c.0.s8 %v1448
      %v1450 = vlaneseq
      %v1451 = vshrl.u32 %v1450, 7
      %v1452 = vsub.s32 %v1449, %v1451
      %v1453 = vrot.slane %v1439, %v1452
      %v1454 = vcombine.low %v1397, %v1413
      %v1456 = vunpack.c.l.s4 1934713408
      %v1457 = vunpack.c.0.s8 %v1456
      %v1458 = vlaneseq
      %v1459 = vshrl.u32 %v1458, 7
      %v1460 = vsub.s32 %v1457, %v1459
      %v1461 = vrot.slane %v1454, %v1460
      %v1462 = vcombine.low %v1422, %v1446
      %v1463 = vcombine.high %v1422, %v1446
      %v1464 = vcombine.low %v1429, %v1453
      %v1465 = vcombine.high %v1429, %v1453
      %v1466 = vcombine.low %v1437, %v1461
      %v1467 = vcombine.high %v1437, %v1461
      %v1468 = vcombine.low %v1090, %v1092
      %v1469 = vcombine.high %v1090, %v1092
      %v1471 = vunpack.c.l.s4 1983009808
      %v1472 = vunpack.c.0.s8 %v1471
      %v1473 = vlaneseq
      %v1474 = vshrl.u32 %v1473, 7
      %v1475 = vsub.s32 %v1472, %v1474
      %v1476 = vrot.slane %v1468, %v1475
      %v1478 = vunpack.c.l.s4 1983009808
      %v1479 = vunpack.c.0.s8 %v1478
      %v1480 = vlaneseq
      %v1481 = vshrl.u32 %v1480, 7
      %v1482 = vsub.s32 %v1479, %v1481
      %v1483 = vrot.slane %v1469, %v1482
      %v1484 = vcombine.low %v1091, %v1093
      %v1485 = vcombine.high %v1091, %v1093
      %v1487 = vunpack.c.l.s4 1983009808
      %v1488 = vunpack.c.0.s8 %v1487
      %v1489 = vlaneseq
      %v1490 = vshrl.u32 %v1489, 7
      %v1491 = vsub.s32 %v1488, %v1490
      %v1492 = vrot.slane %v1484, %v1491
      %v1494 = vunpack.c.l.s4 1983009808
      %v1495 = vunpack.c.0.s8 %v1494
      %v1496 = vlaneseq
      %v1497 = vshrl.u32 %v1496, 7
      %v1498 = vsub.s32 %v1495, %v1497
      %v1499 = vrot.slane %v1485, %v1498
      %v1500 = vcombine.low %v1094, %v1096
      %v1501 = vcombine.high %v1094, %v1096
      %v1503 = vunpack.c.l.s4 1983009808
      %v1504 = vunpack.c.0.s8 %v1503
      %v1505 = vlaneseq
      %v1506 = vshrl.u32 %v1505, 7
      %v1507 = vsub.s32 %v1504, %v1506
      %v1508 = vrot.slane %v1500, %v1507
      %v1510 = vunpack.c.l.s4 1983009808
      %v1511 = vunpack.c.0.s8 %v1510
      %v1512 = vlaneseq
      %v1513 = vshrl.u32 %v1512, 7
      %v1514 = vsub.s32 %v1511, %v1513
      %v1515 = vrot.slane %v1501, %v1514
      %v1516 = vcombine.low %v1095, %v1097
      %v1517 = vcombine.high %v1095, %v1097
      %v1519 = vunpack.c.l.s4 1983009808
      %v1520 = vunpack.c.0.s8 %v1519
      %v1521 = vlaneseq
      %v1522 = vshrl.u32 %v1521, 7
      %v1523 = vsub.s32 %v1520, %v1522
      %v1524 = vrot.slane %v1516, %v1523
      %v1526 = vunpack.c.l.s4 1983009808
      %v1527 = vunpack.c.0.s8 %v1526
      %v1528 = vlaneseq
      %v1529 = vshrl.u32 %v1528, 7
      %v1530 = vsub.s32 %v1527, %v1529
      %v1531 = vrot.slane %v1517, %v1530
      %v1532 = vcombine.low %v1476, %v1492
      %v1533 = vcombine.high %v1476, %v1492
      %v1535 = vunpack.c.l.s4 1934713408
      %v1536 = vunpack.c.0.s8 %v1535
      %v1537 = vlaneseq
      %v1538 = vshrl.u32 %v1537, 7
      %v1539 = vsub.s32 %v1536, %v1538
      %v1540 = vrot.slane %v1532, %v1539
      %v1542 = vunpack.c.l.s4 1934713408
      %v1543 = vunpack.c.0.s8 %v1542
      %v1544 = vlaneseq
      %v1545 = vshrl.u32 %v1544, 7
      %v1546 = vsub.s32 %v1543, %v1545
      %v1547 = vrot.slane %v1533, %v1546
      %v1548 = vcombine.low %v1483, %v1499
      %v1550 = vunpack.c.l.s4 1934713408
      %v1551 = vunpack.c.0.s8 %v1550
      %v1552 = vlaneseq
      %v1553 = vshrl.u32 %v1552, 7
      %v1554 = vsub.s32 %v1551, %v1553
      %v1555 = vrot.slane %v1548, %v1554
      %v1556 = vcombine.low %v1508, %v1524
      %v1557 = vcombine.high %v1508, %v1524
      %v1559 = vunpack.c.l.s4 1934713408
      %v1560 = vunpack.c.0.s8 %v1559
      %v1561 = vlaneseq
      %v1562 = vshrl.u32 %v1561, 7
      %v1563 = vsub.s32 %v1560, %v1562
      %v1564 = vrot.slane %v1556, %v1563
      %v1566 = vunpack.c.l.s4 1934713408
      %v1567 = vunpack.c.0.s8 %v1566
      %v1568 = vlaneseq
      %v1569 = vshrl.u32 %v1568, 7
      %v1570 = vsub.s32 %v1567, %v1569
      %v1571 = vrot.slane %v1557, %v1570
      %v1572 = vcombine.low %v1515, %v1531
      %v1574 = vunpack.c.l.s4 1934713408
      %v1575 = vunpack.c.0.s8 %v1574
      %v1576 = vlaneseq
      %v1577 = vshrl.u32 %v1576, 7
      %v1578 = vsub.s32 %v1575, %v1577
      %v1579 = vrot.slane %v1572, %v1578
      %v1580 = vcombine.low %v1540, %v1564
      %v1581 = vcombine.high %v1540, %v1564
      %v1582 = vcombine.low %v1547, %v1571
      %v1583 = vcombine.high %v1547, %v1571
      %v1584 = vcombine.low %v1555, %v1579
      %v1585 = vcombine.high %v1555, %v1579
      %v1586 = vcombine.low %v1224, %v1226
      %v1587 = vcombine.high %v1224, %v1226
      %v1589 = vunpack.c.l.s4 1983009808
      %v1590 = vunpack.c.0.s8 %v1589
      %v1591 = vlaneseq
      %v1592 = vshrl.u32 %v1591, 7
      %v1593 = vsub.s32 %v1590, %v1592
      %v1594 = vrot.slane %v1586, %v1593
      %v1596 = vunpack.c.l.s4 1983009808
      %v1597 = vunpack.c.0.s8 %v1596
      %v1598 = vlaneseq
      %v1599 = vshrl.u32 %v1598, 7
      %v1600 = vsub.s32 %v1597, %v1599
      %v1601 = vrot.slane %v1587, %v1600
      %v1602 = vcombine.low %v1225, %v1227
      %v1603 = vcombine.high %v1225, %v1227
      %v1605 = vunpack.c.l.s4 1983009808
      %v1606 = vunpack.c.0.s8 %v1605
      %v1607 = vlaneseq
      %v1608 = vshrl.u32 %v1607, 7
      %v1609 = vsub.s32 %v1606, %v1608
      %v1610 = vrot.slane %v1602, %v1609
      %v1612 = vunpack.c.l.s4 1983009808
      %v1613 = vunpack.c.0.s8 %v1612
      %v1614 = vlaneseq
      %v1615 = vshrl.u32 %v1614, 7
      %v1616 = vsub.s32 %v1613, %v1615
      %v1617 = vrot.slane %v1603, %v1616
      %v1618 = vcombine.low %v1228, %v1230
      %v1619 = vcombine.high %v1228, %v1230
      %v1621 = vunpack.c.l.s4 1983009808
      %v1622 = vunpack.c.0.s8 %v1621
      %v1623 = vlaneseq
      %v1624 = vshrl.u32 %v1623, 7
      %v1625 = vsub.s32 %v1622, %v1624
      %v1626 = vrot.slane %v1618, %v1625
      %v1628 = vunpack.c.l.s4 1983009808
      %v1629 = vunpack.c.0.s8 %v1628
      %v1630 = vlaneseq
      %v1631 = vshrl.u32 %v1630, 7
      %v1632 = vsub.s32 %v1629, %v1631
      %v1633 = vrot.slane %v1619, %v1632
      %v1634 = vcombine.low %v1229, %v1231
      %v1635 = vcombine.high %v1229, %v1231
      %v1637 = vunpack.c.l.s4 1983009808
      %v1638 = vunpack.c.0.s8 %v1637
      %v1639 = vlaneseq
      %v1640 = vshrl.u32 %v1639, 7
      %v1641 = vsub.s32 %v1638, %v1640
      %v1642 = vrot.slane %v1634, %v1641
      %v1644 = vunpack.c.l.s4 1983009808
      %v1645 = vunpack.c.0.s8 %v1644
      %v1646 = vlaneseq
      %v1647 = vshrl.u32 %v1646, 7
      %v1648 = vsub.s32 %v1645, %v1647
      %v1649 = vrot.slane %v1635, %v1648
      %v1650 = vcombine.low %v1594, %v1610
      %v1651 = vcombine.high %v1594, %v1610
      %v1653 = vunpack.c.l.s4 1934713408
      %v1654 = vunpack.c.0.s8 %v1653
      %v1655 = vlaneseq
      %v1656 = vshrl.u32 %v1655, 7
      %v1657 = vsub.s32 %v1654, %v1656
      %v1658 = vrot.slane %v1650, %v1657
      %v1660 = vunpack.c.l.s4 1934713408
      %v1661 = vunpack.c.0.s8 %v1660
      %v1662 = vlaneseq
      %v1663 = vshrl.u32 %v1662, 7
      %v1664 = vsub.s32 %v1661, %v1663
      %v1665 = vrot.slane %v1651, %v1664
      %v1666 = vcombine.low %v1601, %v1617
      %v1668 = vunpack.c.l.s4 1934713408
      %v1669 = vunpack.c.0.s8 %v1668
      %v1670 = vlaneseq
      %v1671 = vshrl.u32 %v1670, 7
      %v1672 = vsub.s32 %v1669, %v1671
      %v1673 = vrot.slane %v1666, %v1672
      %v1674 = vcombine.low %v1626, %v1642
      %v1675 = vcombine.high %v1626, %v1642
      %v1677 = vunpack.c.l.s4 1934713408
      %v1678 = vunpack.c.0.s8 %v1677
      %v1679 = vlaneseq
      %v1680 = vshrl.u32 %v1679, 7
      %v1681 = vsub.s32 %v1678, %v1680
      %v1682 = vrot.slane %v1674, %v1681
      %v1684 = vunpack.c.l.s4 1934713408
      %v1685 = vunpack.c.0.s8 %v1684
      %v1686 = vlaneseq
      %v1687 = vshrl.u32 %v1686, 7
      %v1688 = vsub.s32 %v1685, %v1687
      %v1689 = vrot.slane %v1675, %v1688
      %v1690 = vcombine.low %v1633, %v1649
      %v1692 = vunpack.c.l.s4 1934713408
      %v1693 = vunpack.c.0.s8 %v1692
      %v1694 = vlaneseq
      %v1695 = vshrl.u32 %v1694, 7
      %v1696 = vsub.s32 %v1693, %v1695
      %v1697 = vrot.slane %v1690, %v1696
      %v1698 = vcombine.low %v1658, %v1682
      %v1699 = vcombine.high %v1658, %v1682
      %v1700 = vcombine.low %v1665, %v1689
      %v1701 = vcombine.high %v1665, %v1689
      %v1702 = vcombine.low %v1673, %v1697
      %v1703 = vcombine.high %v1673, %v1697
      %v1706 = vpack.i.b16 %v1462, %v1344
      %v1707 = vshrl.u32 %v1344, 16
      %v1708 = vshrl.u32 %v1462, 16
      %v1709 = vpack.i.b16 %v1708, %v1707
      %v1712 = vpack.i.b16 %v1463, %v1345
      %v1713 = vshrl.u32 %v1345, 16
      %v1714 = vshrl.u32 %v1463, 16
      %v1715 = vpack.i.b16 %v1714, %v1713
      %v1718 = vpack.i.b16 %v1464, %v1346
      %v1719 = vshrl.u32 %v1346, 16
      %v1720 = vshrl.u32 %v1464, 16
      %v1721 = vpack.i.b16 %v1720, %v1719
      %v1724 = vpack.i.b16 %v1465, %v1347
      %v1725 = vshrl.u32 %v1347, 16
      %v1726 = vshrl.u32 %v1465, 16
      %v1727 = vpack.i.b16 %v1726, %v1725
      %v1730 = vpack.i.b16 %v1466, %v1348
      %v1732 = vshrl.u32 %v1348, 16
      %v1733 = vshrl.u32 %v1466, 16
      %v1734 = vpack.i.b16 %v1733, %v1732
      %v1738 = vpack.i.b16 %v1467, %v1349
      %v1740 = vshrl.u32 %v1349, 16
      %v1741 = vshrl.u32 %v1467, 16
      %v1742 = vpack.i.b16 %v1741, %v1740
      %v1746 = vpack.i.b16 %v1698, %v1580
      %v1747 = vshrl.u32 %v1580, 16
      %v1748 = vshrl.u32 %v1698, 16
      %v1749 = vpack.i.b16 %v1748, %v1747
      %v1752 = vpack.i.b16 %v1699, %v1581
      %v1753 = vshrl.u32 %v1581, 16
      %v1754 = vshrl.u32 %v1699, 16
      %v1755 = vpack.i.b16 %v1754, %v1753
      %v1758 = vpack.i.b16 %v1700, %v1582
      %v1759 = vshrl.u32 %v1582, 16
      %v1760 = vshrl.u32 %v1700, 16
      %v1761 = vpack.i.b16 %v1760, %v1759
      %v1764 = vpack.i.b16 %v1701, %v1583
      %v1765 = vshrl.u32 %v1583, 16
      %v1766 = vshrl.u32 %v1701, 16
      %v1767 = vpack.i.b16 %v1766, %v1765
      %v1770 = vpack.i.b16 %v1702, %v1584
      %v1772 = vshrl.u32 %v1584, 16
      %v1773 = vshrl.u32 %v1702, 16
      %v1774 = vpack.i.b16 %v1773, %v1772
      %v1778 = vpack.i.b16 %v1703, %v1585
      %v1780 = vshrl.u32 %v1585, 16
      %v1781 = vshrl.u32 %v1703, 16
      %v1782 = vpack.i.b16 %v1781, %v1780
      %vm1784 = vcmask 64512
      %v1786 = vsel %vm1784, %v1706, 0
      %v1789 = vsel %vm1784, %v1718, 0
      %1791 = vmatprep.subr.bf16.mxu0 0
      %1792 = vmatpush1.bf16.xpose.msra.mxu0 %v1789
      %1793 = vmatprep.subr.bf16.mxu0 0
      %1794 = vmatpush1.bf16.xpose.msra.mxu0 0
      %1795 = vmatprep.subr.bf16.mxu0 0
      %1796 = vmatpush1.bf16.xpose.msra.mxu0 0
      %1797 = vmatprep.subr.bf16.mxu0 0
      %1798 = vmatpush1.bf16.xpose.msra.mxu0 0
      %1799 = vmatprep.subr.bf16.mxu0 0
      %1800 = vmatpush1.bf16.xpose.msra.mxu0 0
      %1801 = vmatprep.subr.bf16.mxu0 0
      %1802 = vmatpush1.bf16.xpose.msra.mxu0 0
      %1803 = vmatprep.subr.bf16.mxu0 0
      %1804 = vmatpush1.bf16.xpose.msra.mxu0 0
      %1805 = vmatprep.subr.bf16.mxu0 0
      %1806 = vmatpush1.bf16.xpose.msra.mxu0 0
      %1807 = vmatprep.subr.bf16.mxu0 0
      %1808 = vmatpush1.bf16.xpose.msra.mxu0 0
      %1809 = vmatprep.subr.bf16.mxu0 0
      %1810 = vmatpush1.bf16.xpose.msra.mxu0 0
      %1811 = vmatprep.subr.bf16.mxu0 0
      %1812 = vmatpush1.bf16.xpose.msra.mxu0 0
      %1813 = vmatprep.subr.bf16.mxu0 0
      %1814 = vmatpush1.bf16.xpose.msra.mxu0 0
      %1815 = vmatprep.subr.bf16.mxu0 0
      %1816 = vmatpush1.bf16.xpose.msra.mxu0 0
      %1817 = vmatprep.subr.bf16.mxu0 0
      %1818 = vmatpush1.bf16.xpose.msra.mxu0 0
      %1819 = vmatprep.subr.bf16.mxu0 0
      %1820 = vmatpush1.bf16.xpose.msra.mxu0 0
      %1821 = vmatprep.subr.bf16.mxu0 0
      %1822 = vmatpush1.bf16.xpose.msra.mxu0 0
      %1823 = vmatprep.mubr.bf16.mxu0 0
      %1824 = vmatmul.mubr.bf16.gmra.mrb[0].mxu0 %v1786
      %v1825 = vpop.f32.mrb[0].mxu0
      %v1826 = vadd.f32 %v255, %v1825
      %v1827 = vpop.f32.mrb[0].mxu0
      %v1828 = vpop.f32.mrb[0].mxu0
      %v1829 = vadd.f32 %v256, %v1828
      %v1830 = vpop.f32.mrb[0].mxu0
      %1831 = vdwg.mxu0
      %v1833 = vsel %vm1784, %v1746, 0
      %v1836 = vsel %vm1784, %v1758, 0
      %1838 = vmatprep.subr.bf16.mxu0 0
      %1839 = vmatpush1.bf16.xpose.msra.mxu0 %v1836
      %1840 = vmatprep.subr.bf16.mxu0 0
      %1841 = vmatpush1.bf16.xpose.msra.mxu0 0
      %1842 = vmatprep.subr.bf16.mxu0 0
      %1843 = vmatpush1.bf16.xpose.msra.mxu0 0
      %1844 = vmatprep.subr.bf16.mxu0 0
      %1845 = vmatpush1.bf16.xpose.msra.mxu0 0
      %1846 = vmatprep.subr.bf16.mxu0 0
      %1847 = vmatpush1.bf16.xpose.msra.mxu0 0
      %1848 = vmatprep.subr.bf16.mxu0 0
      %1849 = vmatpush1.bf16.xpose.msra.mxu0 0
      %1850 = vmatprep.subr.bf16.mxu0 0
      %1851 = vmatpush1.bf16.xpose.msra.mxu0 0
      %1852 = vmatprep.subr.bf16.mxu0 0
      %1853 = vmatpush1.bf16.xpose.msra.mxu0 0
      %1854 = vmatprep.subr.bf16.mxu0 0
      %1855 = vmatpush1.bf16.xpose.msra.mxu0 0
      %1856 = vmatprep.subr.bf16.mxu0 0
      %1857 = vmatpush1.bf16.xpose.msra.mxu0 0
      %1858 = vmatprep.subr.bf16.mxu0 0
      %1859 = vmatpush1.bf16.xpose.msra.mxu0 0
      %1860 = vmatprep.subr.bf16.mxu0 0
      %1861 = vmatpush1.bf16.xpose.msra.mxu0 0
      %1862 = vmatprep.subr.bf16.mxu0 0
      %1863 = vmatpush1.bf16.xpose.msra.mxu0 0
      %1864 = vmatprep.subr.bf16.mxu0 0
      %1865 = vmatpush1.bf16.xpose.msra.mxu0 0
      %1866 = vmatprep.subr.bf16.mxu0 0
      %1867 = vmatpush1.bf16.xpose.msra.mxu0 0
      %1868 = vmatprep.subr.bf16.mxu0 0
      %1869 = vmatpush1.bf16.xpose.msra.mxu0 0
      %1870 = vmatprep.mubr.bf16.mxu0 0
      %1871 = vmatmul.mubr.bf16.gmra.mrb[0].mxu0 %v1833
      %v1872 = vpop.f32.mrb[0].mxu0
      %v1873 = vadd.f32 %v257, %v1872
      %v1874 = vpop.f32.mrb[0].mxu0
      %v1875 = vpop.f32.mrb[0].mxu0
      %v1876 = vadd.f32 %v258, %v1875
      %v1877 = vpop.f32.mrb[0].mxu0
      %1878 = vdwg.mxu0
      %v1880 = vsel %vm1784, %v1709, 0
      %v1883 = vsel %vm1784, %v1721, 0
      %1885 = vmatprep.subr.bf16.mxu0 0
      %1886 = vmatpush1.bf16.xpose.msra.mxu0 %v1883
      %1887 = vmatprep.subr.bf16.mxu0 0
      %1888 = vmatpush1.bf16.xpose.msra.mxu0 0
      %1889 = vmatprep.subr.bf16.mxu0 0
      %1890 = vmatpush1.bf16.xpose.msra.mxu0 0
      %1891 = vmatprep.subr.bf16.mxu0 0
      %1892 = vmatpush1.bf16.xpose.msra.mxu0 0
      %1893 = vmatprep.subr.bf16.mxu0 0
      %1894 = vmatpush1.bf16.xpose.msra.mxu0 0
      %1895 = vmatprep.subr.bf16.mxu0 0
      %1896 = vmatpush1.bf16.xpose.msra.mxu0 0
      %1897 = vmatprep.subr.bf16.mxu0 0
      %1898 = vmatpush1.bf16.xpose.msra.mxu0 0
      %1899 = vmatprep.subr.bf16.mxu0 0
      %1900 = vmatpush1.bf16.xpose.msra.mxu0 0
      %1901 = vmatprep.subr.bf16.mxu0 0
      %1902 = vmatpush1.bf16.xpose.msra.mxu0 0
      %1903 = vmatprep.subr.bf16.mxu0 0
      %1904 = vmatpush1.bf16.xpose.msra.mxu0 0
      %1905 = vmatprep.subr.bf16.mxu0 0
      %1906 = vmatpush1.bf16.xpose.msra.mxu0 0
      %1907 = vmatprep.subr.bf16.mxu0 0
      %1908 = vmatpush1.bf16.xpose.msra.mxu0 0
      %1909 = vmatprep.subr.bf16.mxu0 0
      %1910 = vmatpush1.bf16.xpose.msra.mxu0 0
      %1911 = vmatprep.subr.bf16.mxu0 0
      %1912 = vmatpush1.bf16.xpose.msra.mxu0 0
      %1913 = vmatprep.subr.bf16.mxu0 0
      %1914 = vmatpush1.bf16.xpose.msra.mxu0 0
      %1915 = vmatprep.subr.bf16.mxu0 0
      %1916 = vmatpush1.bf16.xpose.msra.mxu0 0
      %1917 = vmatprep.mubr.bf16.mxu0 0
      %1918 = vmatmul.mubr.bf16.gmra.mrb[0].mxu0 %v1880
      %v1919 = vpop.f32.mrb[0].mxu0
      %v1920 = vadd.f32 %v255, %v1919
      %v1921 = vpop.f32.mrb[0].mxu0
      %v1922 = vpop.f32.mrb[0].mxu0
      %v1923 = vadd.f32 %v256, %v1922
      %v1924 = vpop.f32.mrb[0].mxu0
      %1925 = vdwg.mxu0
      %v1927 = vsel %vm1784, %v1749, 0
      %v1930 = vsel %vm1784, %v1761, 0
      %1932 = vmatprep.subr.bf16.mxu0 0
      %1933 = vmatpush1.bf16.xpose.msra.mxu0 %v1930
      %1934 = vmatprep.subr.bf16.mxu0 0
      %1935 = vmatpush1.bf16.xpose.msra.mxu0 0
      %1936 = vmatprep.subr.bf16.mxu0 0
      %1937 = vmatpush1.bf16.xpose.msra.mxu0 0
      %1938 = vmatprep.subr.bf16.mxu0 0
      %1939 = vmatpush1.bf16.xpose.msra.mxu0 0
      %1940 = vmatprep.subr.bf16.mxu0 0
      %1941 = vmatpush1.bf16.xpose.msra.mxu0 0
      %1942 = vmatprep.subr.bf16.mxu0 0
      %1943 = vmatpush1.bf16.xpose.msra.mxu0 0
      %1944 = vmatprep.subr.bf16.mxu0 0
      %1945 = vmatpush1.bf16.xpose.msra.mxu0 0
      %1946 = vmatprep.subr.bf16.mxu0 0
      %1947 = vmatpush1.bf16.xpose.msra.mxu0 0
      %1948 = vmatprep.subr.bf16.mxu0 0
      %1949 = vmatpush1.bf16.xpose.msra.mxu0 0
      %1950 = vmatprep.subr.bf16.mxu0 0
      %1951 = vmatpush1.bf16.xpose.msra.mxu0 0
      %1952 = vmatprep.subr.bf16.mxu0 0
      %1953 = vmatpush1.bf16.xpose.msra.mxu0 0
      %1954 = vmatprep.subr.bf16.mxu0 0
      %1955 = vmatpush1.bf16.xpose.msra.mxu0 0
      %1956 = vmatprep.subr.bf16.mxu0 0
      %1957 = vmatpush1.bf16.xpose.msra.mxu0 0
      %1958 = vmatprep.subr.bf16.mxu0 0
      %1959 = vmatpush1.bf16.xpose.msra.mxu0 0
      %1960 = vmatprep.subr.bf16.mxu0 0
      %1961 = vmatpush1.bf16.xpose.msra.mxu0 0
      %1962 = vmatprep.subr.bf16.mxu0 0
      %1963 = vmatpush1.bf16.xpose.msra.mxu0 0
      %1964 = vmatprep.mubr.bf16.mxu0 0
      %1965 = vmatmul.mubr.bf16.gmra.mrb[0].mxu0 %v1927
      %v1966 = vpop.f32.mrb[0].mxu0
      %v1967 = vadd.f32 %v257, %v1966
      %v1968 = vpop.f32.mrb[0].mxu0
      %v1969 = vpop.f32.mrb[0].mxu0
      %v1970 = vadd.f32 %v258, %v1969
      %v1971 = vpop.f32.mrb[0].mxu0
      %1972 = vdwg.mxu0
      %v1974 = vsel %vm1784, %v1712, 0
      %v1977 = vsel %vm1784, %v1724, 0
      %1979 = vmatprep.subr.bf16.mxu0 0
      %1980 = vmatpush1.bf16.xpose.msra.mxu0 %v1977
      %1981 = vmatprep.subr.bf16.mxu0 0
      %1982 = vmatpush1.bf16.xpose.msra.mxu0 0
      %1983 = vmatprep.subr.bf16.mxu0 0
      %1984 = vmatpush1.bf16.xpose.msra.mxu0 0
      %1985 = vmatprep.subr.bf16.mxu0 0
      %1986 = vmatpush1.bf16.xpose.msra.mxu0 0
      %1987 = vmatprep.subr.bf16.mxu0 0
      %1988 = vmatpush1.bf16.xpose.msra.mxu0 0
      %1989 = vmatprep.subr.bf16.mxu0 0
      %1990 = vmatpush1.bf16.xpose.msra.mxu0 0
      %1991 = vmatprep.subr.bf16.mxu0 0
      %1992 = vmatpush1.bf16.xpose.msra.mxu0 0
      %1993 = vmatprep.subr.bf16.mxu0 0
      %1994 = vmatpush1.bf16.xpose.msra.mxu0 0
      %1995 = vmatprep.subr.bf16.mxu0 0
      %1996 = vmatpush1.bf16.xpose.msra.mxu0 0
      %1997 = vmatprep.subr.bf16.mxu0 0
      %1998 = vmatpush1.bf16.xpose.msra.mxu0 0
      %1999 = vmatprep.subr.bf16.mxu0 0
      %2000 = vmatpush1.bf16.xpose.msra.mxu0 0
      %2001 = vmatprep.subr.bf16.mxu0 0
      %2002 = vmatpush1.bf16.xpose.msra.mxu0 0
      %2003 = vmatprep.subr.bf16.mxu0 0
      %2004 = vmatpush1.bf16.xpose.msra.mxu0 0
      %2005 = vmatprep.subr.bf16.mxu0 0
      %2006 = vmatpush1.bf16.xpose.msra.mxu0 0
      %2007 = vmatprep.subr.bf16.mxu0 0
      %2008 = vmatpush1.bf16.xpose.msra.mxu0 0
      %2009 = vmatprep.subr.bf16.mxu0 0
      %2010 = vmatpush1.bf16.xpose.msra.mxu0 0
      %2011 = vmatprep.mubr.bf16.mxu0 0
      %2012 = vmatmul.mubr.bf16.gmra.mrb[0].mxu0 %v1974
      %v2013 = vpop.f32.mrb[0].mxu0
      %v2014 = vadd.f32 %v255, %v2013
      %v2015 = vpop.f32.mrb[0].mxu0
      %v2016 = vpop.f32.mrb[0].mxu0
      %v2017 = vadd.f32 %v256, %v2016
      %v2018 = vpop.f32.mrb[0].mxu0
      %2019 = vdwg.mxu0
      %v2021 = vsel %vm1784, %v1752, 0
      %v2024 = vsel %vm1784, %v1764, 0
      %2026 = vmatprep.subr.bf16.mxu0 0
      %2027 = vmatpush1.bf16.xpose.msra.mxu0 %v2024
      %2028 = vmatprep.subr.bf16.mxu0 0
      %2029 = vmatpush1.bf16.xpose.msra.mxu0 0
      %2030 = vmatprep.subr.bf16.mxu0 0
      %2031 = vmatpush1.bf16.xpose.msra.mxu0 0
      %2032 = vmatprep.subr.bf16.mxu0 0
      %2033 = vmatpush1.bf16.xpose.msra.mxu0 0
      %2034 = vmatprep.subr.bf16.mxu0 0
      %2035 = vmatpush1.bf16.xpose.msra.mxu0 0
      %2036 = vmatprep.subr.bf16.mxu0 0
      %2037 = vmatpush1.bf16.xpose.msra.mxu0 0
      %2038 = vmatprep.subr.bf16.mxu0 0
      %2039 = vmatpush1.bf16.xpose.msra.mxu0 0
      %2040 = vmatprep.subr.bf16.mxu0 0
      %2041 = vmatpush1.bf16.xpose.msra.mxu0 0
      %2042 = vmatprep.subr.bf16.mxu0 0
      %2043 = vmatpush1.bf16.xpose.msra.mxu0 0
      %2044 = vmatprep.subr.bf16.mxu0 0
      %2045 = vmatpush1.bf16.xpose.msra.mxu0 0
      %2046 = vmatprep.subr.bf16.mxu0 0
      %2047 = vmatpush1.bf16.xpose.msra.mxu0 0
      %2048 = vmatprep.subr.bf16.mxu0 0
      %2049 = vmatpush1.bf16.xpose.msra.mxu0 0
      %2050 = vmatprep.subr.bf16.mxu0 0
      %2051 = vmatpush1.bf16.xpose.msra.mxu0 0
      %2052 = vmatprep.subr.bf16.mxu0 0
      %2053 = vmatpush1.bf16.xpose.msra.mxu0 0
      %2054 = vmatprep.subr.bf16.mxu0 0
      %2055 = vmatpush1.bf16.xpose.msra.mxu0 0
      %2056 = vmatprep.subr.bf16.mxu0 0
      %2057 = vmatpush1.bf16.xpose.msra.mxu0 0
      %2058 = vmatprep.mubr.bf16.mxu0 0
      %2059 = vmatmul.mubr.bf16.gmra.mrb[0].mxu0 %v2021
      %v2060 = vpop.f32.mrb[0].mxu0
      %v2061 = vadd.f32 %v257, %v2060
      %v2062 = vpop.f32.mrb[0].mxu0
      %v2063 = vpop.f32.mrb[0].mxu0
      %v2064 = vadd.f32 %v258, %v2063
      %v2065 = vpop.f32.mrb[0].mxu0
      %2066 = vdwg.mxu0
      %v2068 = vsel %vm1784, %v1715, 0
      %v2071 = vsel %vm1784, %v1727, 0
      %2073 = vmatprep.subr.bf16.mxu0 0
      %2074 = vmatpush1.bf16.xpose.msra.mxu0 %v2071
      %2075 = vmatprep.subr.bf16.mxu0 0
      %2076 = vmatpush1.bf16.xpose.msra.mxu0 0
      %2077 = vmatprep.subr.bf16.mxu0 0
      %2078 = vmatpush1.bf16.xpose.msra.mxu0 0
      %2079 = vmatprep.subr.bf16.mxu0 0
      %2080 = vmatpush1.bf16.xpose.msra.mxu0 0
      %2081 = vmatprep.subr.bf16.mxu0 0
      %2082 = vmatpush1.bf16.xpose.msra.mxu0 0
      %2083 = vmatprep.subr.bf16.mxu0 0
      %2084 = vmatpush1.bf16.xpose.msra.mxu0 0
      %2085 = vmatprep.subr.bf16.mxu0 0
      %2086 = vmatpush1.bf16.xpose.msra.mxu0 0
      %2087 = vmatprep.subr.bf16.mxu0 0
      %2088 = vmatpush1.bf16.xpose.msra.mxu0 0
      %2089 = vmatprep.subr.bf16.mxu0 0
      %2090 = vmatpush1.bf16.xpose.msra.mxu0 0
      %2091 = vmatprep.subr.bf16.mxu0 0
      %2092 = vmatpush1.bf16.xpose.msra.mxu0 0
      %2093 = vmatprep.subr.bf16.mxu0 0
      %2094 = vmatpush1.bf16.xpose.msra.mxu0 0
      %2095 = vmatprep.subr.bf16.mxu0 0
      %2096 = vmatpush1.bf16.xpose.msra.mxu0 0
      %2097 = vmatprep.subr.bf16.mxu0 0
      %2098 = vmatpush1.bf16.xpose.msra.mxu0 0
      %2099 = vmatprep.subr.bf16.mxu0 0
      %2100 = vmatpush1.bf16.xpose.msra.mxu0 0
      %2101 = vmatprep.subr.bf16.mxu0 0
      %2102 = vmatpush1.bf16.xpose.msra.mxu0 0
      %2103 = vmatprep.subr.bf16.mxu0 0
      %2104 = vmatpush1.bf16.xpose.msra.mxu0 0
      %2105 = vmatprep.mubr.bf16.mxu0 0
      %2106 = vmatmul.mubr.bf16.gmra.mrb[0].mxu0 %v2068
      %v2107 = vpop.f32.mrb[0].mxu0
      %v2108 = vadd.f32 %v255, %v2107
      %v2109 = vpop.f32.mrb[0].mxu0
      %v2110 = vpop.f32.mrb[0].mxu0
      %v2111 = vadd.f32 %v256, %v2110
      %v2112 = vpop.f32.mrb[0].mxu0
      %2113 = vdwg.mxu0
      %v2115 = vsel %vm1784, %v1755, 0
      %v2118 = vsel %vm1784, %v1767, 0
      %2120 = vmatprep.subr.bf16.mxu0 0
      %2121 = vmatpush1.bf16.xpose.msra.mxu0 %v2118
      %2122 = vmatprep.subr.bf16.mxu0 0
      %2123 = vmatpush1.bf16.xpose.msra.mxu0 0
      %2124 = vmatprep.subr.bf16.mxu0 0
      %2125 = vmatpush1.bf16.xpose.msra.mxu0 0
      %2126 = vmatprep.subr.bf16.mxu0 0
      %2127 = vmatpush1.bf16.xpose.msra.mxu0 0
      %2128 = vmatprep.subr.bf16.mxu0 0
      %2129 = vmatpush1.bf16.xpose.msra.mxu0 0
      %2130 = vmatprep.subr.bf16.mxu0 0
      %2131 = vmatpush1.bf16.xpose.msra.mxu0 0
      %2132 = vmatprep.subr.bf16.mxu0 0
      %2133 = vmatpush1.bf16.xpose.msra.mxu0 0
      %2134 = vmatprep.subr.bf16.mxu0 0
      %2135 = vmatpush1.bf16.xpose.msra.mxu0 0
      %2136 = vmatprep.subr.bf16.mxu0 0
      %2137 = vmatpush1.bf16.xpose.msra.mxu0 0
      %2138 = vmatprep.subr.bf16.mxu0 0
      %2139 = vmatpush1.bf16.xpose.msra.mxu0 0
      %2140 = vmatprep.subr.bf16.mxu0 0
      %2141 = vmatpush1.bf16.xpose.msra.mxu0 0
      %2142 = vmatprep.subr.bf16.mxu0 0
      %2143 = vmatpush1.bf16.xpose.msra.mxu0 0
      %2144 = vmatprep.subr.bf16.mxu0 0
      %2145 = vmatpush1.bf16.xpose.msra.mxu0 0
      %2146 = vmatprep.subr.bf16.mxu0 0
      %2147 = vmatpush1.bf16.xpose.msra.mxu0 0
      %2148 = vmatprep.subr.bf16.mxu0 0
      %2149 = vmatpush1.bf16.xpose.msra.mxu0 0
      %2150 = vmatprep.subr.bf16.mxu0 0
      %2151 = vmatpush1.bf16.xpose.msra.mxu0 0
      %2152 = vmatprep.mubr.bf16.mxu0 0
      %2153 = vmatmul.mubr.bf16.gmra.mrb[0].mxu0 %v2115
      %v2154 = vpop.f32.mrb[0].mxu0
      %v2155 = vadd.f32 %v257, %v2154
      %v2156 = vpop.f32.mrb[0].mxu0
      %v2157 = vpop.f32.mrb[0].mxu0
      %v2158 = vadd.f32 %v258, %v2157
      %v2159 = vpop.f32.mrb[0].mxu0
      %2160 = vdwg.mxu0
      %vm2161 = vcmask 130048
      %v2162 = vsel %vm2161, %v1826, -inf
      %2163 = vmax.xlane.f32.xlu0 %v2162
      %v2164 = vpop.xlane.xlu0 %2163
      %v2165 = vsel %vm2161, %v1829, -inf
      %2166 = vmax.xlane.f32.xlu0 %v2165
      %v2167 = vpop.xlane.xlu0 %2166
      %v2168 = vsel %vm2161, %v1873, -inf
      %2169 = vmax.xlane.f32.xlu0 %v2168
      %v2170 = vpop.xlane.xlu0 %2169
      %v2171 = vsel %vm2161, %v1876, -inf
      %2172 = vmax.xlane.f32.xlu0 %v2171
      %v2173 = vpop.xlane.xlu0 %2172
      %v2174 = vsel %vm2161, %v1920, -inf
      %2175 = vmax.xlane.f32.xlu0 %v2174
      %v2176 = vpop.xlane.xlu0 %2175
      %v2177 = vsel %vm2161, %v1923, -inf
      %2178 = vmax.xlane.f32.xlu0 %v2177
      %v2179 = vpop.xlane.xlu0 %2178
      %v2180 = vsel %vm2161, %v1967, -inf
      %2181 = vmax.xlane.f32.xlu0 %v2180
      %v2182 = vpop.xlane.xlu0 %2181
      %v2183 = vsel %vm2161, %v1970, -inf
      %2184 = vmax.xlane.f32.xlu0 %v2183
      %v2185 = vpop.xlane.xlu0 %2184
      %v2186 = vsel %vm2161, %v2014, -inf
      %2187 = vmax.xlane.f32.xlu0 %v2186
      %v2188 = vpop.xlane.xlu0 %2187
      %v2189 = vsel %vm2161, %v2017, -inf
      %2190 = vmax.xlane.f32.xlu0 %v2189
      %v2191 = vpop.xlane.xlu0 %2190
      %v2192 = vsel %vm2161, %v2061, -inf
      %2193 = vmax.xlane.f32.xlu0 %v2192
      %v2194 = vpop.xlane.xlu0 %2193
      %v2195 = vsel %vm2161, %v2064, -inf
      %2196 = vmax.xlane.f32.xlu0 %v2195
      %v2197 = vpop.xlane.xlu0 %2196
      %v2198 = vsel %vm2161, %v2108, -inf
      %2199 = vmax.xlane.f32.xlu0 %v2198
      %v2200 = vpop.xlane.xlu0 %2199
      %v2201 = vsel %vm2161, %v2111, -inf
      %2202 = vmax.xlane.f32.xlu0 %v2201
      %v2203 = vpop.xlane.xlu0 %2202
      %v2204 = vsel %vm2161, %v2155, -inf
      %2205 = vmax.xlane.f32.xlu0 %v2204
      %v2206 = vpop.xlane.xlu0 %2205
      %v2207 = vsel %vm2161, %v2158, -inf
      %2208 = vmax.xlane.f32.xlu0 %v2207
      %v2209 = vpop.xlane.xlu0 %2208
      %v2210 = vsub.f32 %v1826, %v2164
      %v2211 = vsub.f32 %v1829, %v2167
      %v2212 = vsub.f32 %v1873, %v2170
      %v2213 = vsub.f32 %v1876, %v2173
      %v2214 = vsub.f32 %v1920, %v2176
      %v2215 = vsub.f32 %v1923, %v2179
      %v2216 = vsub.f32 %v1967, %v2182
      %v2217 = vsub.f32 %v1970, %v2185
      %v2218 = vsub.f32 %v2014, %v2188
      %v2219 = vsub.f32 %v2017, %v2191
      %v2220 = vsub.f32 %v2061, %v2194
      %v2221 = vsub.f32 %v2064, %v2197
      %v2222 = vsub.f32 %v2108, %v2200
      %v2223 = vsub.f32 %v2111, %v2203
      %v2224 = vsub.f32 %v2155, %v2206
      %v2225 = vsub.f32 %v2158, %v2209
      %v2226 = vmul.f32 %v2210, 1.442695
      %v2227 = vpow.pop %v2226
      %v2228 = vmul.f32 %v2211, 1.442695
      %v2229 = vpow.pop %v2228
      %v2230 = vmul.f32 %v2212, 1.442695
      %v2231 = vpow.pop %v2230
      %v2232 = vmul.f32 %v2213, 1.442695
      %v2233 = vpow.pop %v2232
      %v2234 = vmul.f32 %v2214, 1.442695
      %v2235 = vpow.pop %v2234
      %v2236 = vmul.f32 %v2215, 1.442695
      %v2237 = vpow.pop %v2236
      %v2238 = vmul.f32 %v2216, 1.442695
      %v2239 = vpow.pop %v2238
      %v2240 = vmul.f32 %v2217, 1.442695
      %v2241 = vpow.pop %v2240
      %v2242 = vmul.f32 %v2218, 1.442695
      %v2243 = vpow.pop %v2242
      %v2244 = vmul.f32 %v2219, 1.442695
      %v2245 = vpow.pop %v2244
      %v2246 = vmul.f32 %v2220, 1.442695
      %v2247 = vpow.pop %v2246
      %v2248 = vmul.f32 %v2221, 1.442695
      %v2249 = vpow.pop %v2248
      %v2250 = vmul.f32 %v2222, 1.442695
      %v2251 = vpow.pop %v2250
      %v2252 = vmul.f32 %v2223, 1.442695
      %v2253 = vpow.pop %v2252
      %v2254 = vmul.f32 %v2224, 1.442695
      %v2255 = vpow.pop %v2254
      %v2256 = vmul.f32 %v2225, 1.442695
      %v2257 = vpow.pop %v2256
      %v2258 = vsel %vm2161, %v2227, 0.0
      %2259 = vadd.xlane.f32.xlu0 %v2258
      %v2260 = vpop.xlane.xlu0 %2259
      %v2261 = vsel %vm2161, %v2229, 0.0
      %2262 = vadd.xlane.f32.xlu0 %v2261
      %v2263 = vpop.xlane.xlu0 %2262
      %v2264 = vsel %vm2161, %v2231, 0.0
      %2265 = vadd.xlane.f32.xlu0 %v2264
      %v2266 = vpop.xlane.xlu0 %2265
      %v2267 = vsel %vm2161, %v2233, 0.0
      %2268 = vadd.xlane.f32.xlu0 %v2267
      %v2269 = vpop.xlane.xlu0 %2268
      %v2270 = vsel %vm2161, %v2235, 0.0
      %2271 = vadd.xlane.f32.xlu0 %v2270
      %v2272 = vpop.xlane.xlu0 %2271
      %v2273 = vsel %vm2161, %v2237, 0.0
      %2274 = vadd.xlane.f32.xlu0 %v2273
      %v2275 = vpop.xlane.xlu0 %2274
      %v2276 = vsel %vm2161, %v2239, 0.0
      %2277 = vadd.xlane.f32.xlu0 %v2276
      %v2278 = vpop.xlane.xlu0 %2277
      %v2279 = vsel %vm2161, %v2241, 0.0
      %2280 = vadd.xlane.f32.xlu0 %v2279
      %v2281 = vpop.xlane.xlu0 %2280
      %v2282 = vsel %vm2161, %v2243, 0.0
      %2283 = vadd.xlane.f32.xlu0 %v2282
      %v2284 = vpop.xlane.xlu0 %2283
      %v2285 = vsel %vm2161, %v2245, 0.0
      %2286 = vadd.xlane.f32.xlu0 %v2285
      %v2287 = vpop.xlane.xlu0 %2286
      %v2288 = vsel %vm2161, %v2247, 0.0
      %2289 = vadd.xlane.f32.xlu0 %v2288
      %v2290 = vpop.xlane.xlu0 %2289
      %v2291 = vsel %vm2161, %v2249, 0.0
      %2292 = vadd.xlane.f32.xlu0 %v2291
      %v2293 = vpop.xlane.xlu0 %2292
      %v2294 = vsel %vm2161, %v2251, 0.0
      %2295 = vadd.xlane.f32.xlu0 %v2294
      %v2296 = vpop.xlane.xlu0 %2295
      %v2297 = vsel %vm2161, %v2253, 0.0
      %2298 = vadd.xlane.f32.xlu0 %v2297
      %v2299 = vpop.xlane.xlu0 %2298
      %v2300 = vsel %vm2161, %v2255, 0.0
      %2301 = vadd.xlane.f32.xlu0 %v2300
      %v2302 = vpop.xlane.xlu0 %2301
      %v2303 = vsel %vm2161, %v2257, 0.0
      %2304 = vadd.xlane.f32.xlu0 %v2303
      %v2305 = vpop.xlane.xlu0 %2304
      %v2306 = vrcp.pop %v2260
      %v2307 = vrcp.pop %v2263
      %v2308 = vrcp.pop %v2266
      %v2309 = vrcp.pop %v2269
      %v2310 = vrcp.pop %v2272
      %v2311 = vrcp.pop %v2275
      %v2312 = vrcp.pop %v2278
      %v2313 = vrcp.pop %v2281
      %v2314 = vrcp.pop %v2284
      %v2315 = vrcp.pop %v2287
      %v2316 = vrcp.pop %v2290
      %v2317 = vrcp.pop %v2293
      %v2318 = vrcp.pop %v2296
      %v2319 = vrcp.pop %v2299
      %v2320 = vrcp.pop %v2302
      %v2321 = vrcp.pop %v2305
      %v2322 = vmul.f32 %v2227, %v2306
      %v2323 = vmul.f32 %v2229, %v2307
      %v2324 = vmul.f32 %v2231, %v2308
      %v2325 = vmul.f32 %v2233, %v2309
      %v2326 = vmul.f32 %v2235, %v2310
      %v2327 = vmul.f32 %v2237, %v2311
      %v2328 = vmul.f32 %v2239, %v2312
      %v2329 = vmul.f32 %v2241, %v2313
      %v2330 = vmul.f32 %v2243, %v2314
      %v2331 = vmul.f32 %v2245, %v2315
      %v2332 = vmul.f32 %v2247, %v2316
      %v2333 = vmul.f32 %v2249, %v2317
      %v2334 = vmul.f32 %v2251, %v2318
      %v2335 = vmul.f32 %v2253, %v2319
      %v2336 = vmul.f32 %v2255, %v2320
      %v2337 = vmul.f32 %v2257, %v2321
      %v2338 = vpack.c.bf16 %v2323, %v2322
      %v2339 = vpack.c.bf16 %v2325, %v2324
      %v2340 = vpack.c.bf16 %v2327, %v2326
      %v2341 = vpack.c.bf16 %v2329, %v2328
      %v2342 = vpack.c.bf16 %v2331, %v2330
      %v2343 = vpack.c.bf16 %v2333, %v2332
      %v2344 = vpack.c.bf16 %v2335, %v2334
      %v2345 = vpack.c.bf16 %v2337, %v2336
      %v2347 = vsel %vm2161, %v2338, 0
      %2349 = vmatprep.subr.bf16.mxu0 0
      %2350 = vmatpush1.bf16.msra.mxu0 %v1730
      %2351 = vmatprep.subr.bf16.mxu0 0
      %2352 = vmatpush1.bf16.msra.mxu0 0
      %2353 = vmatprep.subr.bf16.mxu0 0
      %2354 = vmatpush1.bf16.msra.mxu0 0
      %2355 = vmatprep.subr.bf16.mxu0 0
      %2356 = vmatpush1.bf16.msra.mxu0 0
      %2357 = vmatprep.subr.bf16.mxu0 0
      %2358 = vmatpush1.bf16.msra.mxu0 0
      %2359 = vmatprep.subr.bf16.mxu0 0
      %2360 = vmatpush1.bf16.msra.mxu0 0
      %2361 = vmatprep.subr.bf16.mxu0 0
      %2362 = vmatpush1.bf16.msra.mxu0 0
      %2363 = vmatprep.subr.bf16.mxu0 0
      %2364 = vmatpush1.bf16.msra.mxu0 0
      %2365 = vmatprep.subr.bf16.mxu0 0
      %2366 = vmatpush1.bf16.msra.mxu0 0
      %2367 = vmatprep.subr.bf16.mxu0 0
      %2368 = vmatpush1.bf16.msra.mxu0 0
      %2369 = vmatprep.subr.bf16.mxu0 0
      %2370 = vmatpush1.bf16.msra.mxu0 0
      %2371 = vmatprep.subr.bf16.mxu0 0
      %2372 = vmatpush1.bf16.msra.mxu0 0
      %2373 = vmatprep.subr.bf16.mxu0 0
      %2374 = vmatpush1.bf16.msra.mxu0 0
      %2375 = vmatprep.subr.bf16.mxu0 0
      %2376 = vmatpush1.bf16.msra.mxu0 0
      %2377 = vmatprep.subr.bf16.mxu0 0
      %2378 = vmatpush1.bf16.msra.mxu0 0
      %2379 = vmatprep.subr.bf16.mxu0 0
      %2380 = vmatpush1.bf16.msra.mxu0 0
      %2381 = vmatprep.mubr.bf16.mxu0 0
      %2382 = vmatmul.mubr.bf16.gmra.mrb[0].mxu0 %v2347
      %v2383 = vpop.f32.mrb[0].mxu0
      %v2384 = vadd.f32 0.0, %v2383
      %v2385 = vpop.f32.mrb[0].mxu0
      %v2386 = vpop.f32.mrb[0].mxu0
      %v2387 = vadd.f32 0.0, %v2386
      %v2388 = vpop.f32.mrb[0].mxu0
      %2389 = vdwg.mxu0
      %v2391 = vsel %vm2161, %v2339, 0
      %2393 = vmatprep.subr.bf16.mxu0 0
      %2394 = vmatpush1.bf16.msra.mxu0 %v1770
      %2395 = vmatprep.subr.bf16.mxu0 0
      %2396 = vmatpush1.bf16.msra.mxu0 0
      %2397 = vmatprep.subr.bf16.mxu0 0
      %2398 = vmatpush1.bf16.msra.mxu0 0
      %2399 = vmatprep.subr.bf16.mxu0 0
      %2400 = vmatpush1.bf16.msra.mxu0 0
      %2401 = vmatprep.subr.bf16.mxu0 0
      %2402 = vmatpush1.bf16.msra.mxu0 0
      %2403 = vmatprep.subr.bf16.mxu0 0
      %2404 = vmatpush1.bf16.msra.mxu0 0
      %2405 = vmatprep.subr.bf16.mxu0 0
      %2406 = vmatpush1.bf16.msra.mxu0 0
      %2407 = vmatprep.subr.bf16.mxu0 0
      %2408 = vmatpush1.bf16.msra.mxu0 0
      %2409 = vmatprep.subr.bf16.mxu0 0
      %2410 = vmatpush1.bf16.msra.mxu0 0
      %2411 = vmatprep.subr.bf16.mxu0 0
      %2412 = vmatpush1.bf16.msra.mxu0 0
      %2413 = vmatprep.subr.bf16.mxu0 0
      %2414 = vmatpush1.bf16.msra.mxu0 0
      %2415 = vmatprep.subr.bf16.mxu0 0
      %2416 = vmatpush1.bf16.msra.mxu0 0
      %2417 = vmatprep.subr.bf16.mxu0 0
      %2418 = vmatpush1.bf16.msra.mxu0 0
      %2419 = vmatprep.subr.bf16.mxu0 0
      %2420 = vmatpush1.bf16.msra.mxu0 0
      %2421 = vmatprep.subr.bf16.mxu0 0
      %2422 = vmatpush1.bf16.msra.mxu0 0
      %2423 = vmatprep.subr.bf16.mxu0 0
      %2424 = vmatpush1.bf16.msra.mxu0 0
      %2425 = vmatprep.mubr.bf16.mxu0 0
      %2426 = vmatmul.mubr.bf16.gmra.mrb[0].mxu0 %v2391
      %v2427 = vpop.f32.mrb[0].mxu0
      %v2428 = vadd.f32 0.0, %v2427
      %v2429 = vpop.f32.mrb[0].mxu0
      %v2430 = vpop.f32.mrb[0].mxu0
      %v2431 = vadd.f32 0.0, %v2430
      %v2432 = vpop.f32.mrb[0].mxu0
      %2433 = vdwg.mxu0
      %v2435 = vsel %vm2161, %v2340, 0
      %2437 = vmatprep.subr.bf16.mxu0 0
      %2438 = vmatpush1.bf16.msra.mxu0 %v1734
      %2439 = vmatprep.subr.bf16.mxu0 0
      %2440 = vmatpush1.bf16.msra.mxu0 0
      %2441 = vmatprep.subr.bf16.mxu0 0
      %2442 = vmatpush1.bf16.msra.mxu0 0
      %2443 = vmatprep.subr.bf16.mxu0 0
      %2444 = vmatpush1.bf16.msra.mxu0 0
      %2445 = vmatprep.subr.bf16.mxu0 0
      %2446 = vmatpush1.bf16.msra.mxu0 0
      %2447 = vmatprep.subr.bf16.mxu0 0
      %2448 = vmatpush1.bf16.msra.mxu0 0
      %2449 = vmatprep.subr.bf16.mxu0 0
      %2450 = vmatpush1.bf16.msra.mxu0 0
      %2451 = vmatprep.subr.bf16.mxu0 0
      %2452 = vmatpush1.bf16.msra.mxu0 0
      %2453 = vmatprep.subr.bf16.mxu0 0
      %2454 = vmatpush1.bf16.msra.mxu0 0
      %2455 = vmatprep.subr.bf16.mxu0 0
      %2456 = vmatpush1.bf16.msra.mxu0 0
      %2457 = vmatprep.subr.bf16.mxu0 0
      %2458 = vmatpush1.bf16.msra.mxu0 0
      %2459 = vmatprep.subr.bf16.mxu0 0
      %2460 = vmatpush1.bf16.msra.mxu0 0
      %2461 = vmatprep.subr.bf16.mxu0 0
      %2462 = vmatpush1.bf16.msra.mxu0 0
      %2463 = vmatprep.subr.bf16.mxu0 0
      %2464 = vmatpush1.bf16.msra.mxu0 0
      %2465 = vmatprep.subr.bf16.mxu0 0
      %2466 = vmatpush1.bf16.msra.mxu0 0
      %2467 = vmatprep.subr.bf16.mxu0 0
      %2468 = vmatpush1.bf16.msra.mxu0 0
      %2469 = vmatprep.mubr.bf16.mxu0 0
      %2470 = vmatmul.mubr.bf16.gmra.mrb[0].mxu0 %v2435
      %v2471 = vpop.f32.mrb[0].mxu0
      %v2472 = vadd.f32 0.0, %v2471
      %v2473 = vpop.f32.mrb[0].mxu0
      %v2474 = vpop.f32.mrb[0].mxu0
      %v2475 = vadd.f32 0.0, %v2474
      %v2476 = vpop.f32.mrb[0].mxu0
      %2477 = vdwg.mxu0
      %v2479 = vsel %vm2161, %v2341, 0
      %2481 = vmatprep.subr.bf16.mxu0 0
      %2482 = vmatpush1.bf16.msra.mxu0 %v1774
      %2483 = vmatprep.subr.bf16.mxu0 0
      %2484 = vmatpush1.bf16.msra.mxu0 0
      %2485 = vmatprep.subr.bf16.mxu0 0
      %2486 = vmatpush1.bf16.msra.mxu0 0
      %2487 = vmatprep.subr.bf16.mxu0 0
      %2488 = vmatpush1.bf16.msra.mxu0 0
      %2489 = vmatprep.subr.bf16.mxu0 0
      %2490 = vmatpush1.bf16.msra.mxu0 0
      %2491 = vmatprep.subr.bf16.mxu0 0
      %2492 = vmatpush1.bf16.msra.mxu0 0
      %2493 = vmatprep.subr.bf16.mxu0 0
      %2494 = vmatpush1.bf16.msra.mxu0 0
      %2495 = vmatprep.subr.bf16.mxu0 0
      %2496 = vmatpush1.bf16.msra.mxu0 0
      %2497 = vmatprep.subr.bf16.mxu0 0
      %2498 = vmatpush1.bf16.msra.mxu0 0
      %2499 = vmatprep.subr.bf16.mxu0 0
      %2500 = vmatpush1.bf16.msra.mxu0 0
      %2501 = vmatprep.subr.bf16.mxu0 0
      %2502 = vmatpush1.bf16.msra.mxu0 0
      %2503 = vmatprep.subr.bf16.mxu0 0
      %2504 = vmatpush1.bf16.msra.mxu0 0
      %2505 = vmatprep.subr.bf16.mxu0 0
      %2506 = vmatpush1.bf16.msra.mxu0 0
      %2507 = vmatprep.subr.bf16.mxu0 0
      %2508 = vmatpush1.bf16.msra.mxu0 0
      %2509 = vmatprep.subr.bf16.mxu0 0
      %2510 = vmatpush1.bf16.msra.mxu0 0
      %2511 = vmatprep.subr.bf16.mxu0 0
      %2512 = vmatpush1.bf16.msra.mxu0 0
      %2513 = vmatprep.mubr.bf16.mxu0 0
      %2514 = vmatmul.mubr.bf16.gmra.mrb[0].mxu0 %v2479
      %v2515 = vpop.f32.mrb[0].mxu0
      %v2516 = vadd.f32 0.0, %v2515
      %v2517 = vpop.f32.mrb[0].mxu0
      %v2518 = vpop.f32.mrb[0].mxu0
      %v2519 = vadd.f32 0.0, %v2518
      %v2520 = vpop.f32.mrb[0].mxu0
      %2521 = vdwg.mxu0
      %v2523 = vsel %vm2161, %v2342, 0
      %2525 = vmatprep.subr.bf16.mxu0 0
      %2526 = vmatpush1.bf16.msra.mxu0 %v1738
      %2527 = vmatprep.subr.bf16.mxu0 0
      %2528 = vmatpush1.bf16.msra.mxu0 0
      %2529 = vmatprep.subr.bf16.mxu0 0
      %2530 = vmatpush1.bf16.msra.mxu0 0
      %2531 = vmatprep.subr.bf16.mxu0 0
      %2532 = vmatpush1.bf16.msra.mxu0 0
      %2533 = vmatprep.subr.bf16.mxu0 0
      %2534 = vmatpush1.bf16.msra.mxu0 0
      %2535 = vmatprep.subr.bf16.mxu0 0
      %2536 = vmatpush1.bf16.msra.mxu0 0
      %2537 = vmatprep.subr.bf16.mxu0 0
      %2538 = vmatpush1.bf16.msra.mxu0 0
      %2539 = vmatprep.subr.bf16.mxu0 0
      %2540 = vmatpush1.bf16.msra.mxu0 0
      %2541 = vmatprep.subr.bf16.mxu0 0
      %2542 = vmatpush1.bf16.msra.mxu0 0
      %2543 = vmatprep.subr.bf16.mxu0 0
      %2544 = vmatpush1.bf16.msra.mxu0 0
      %2545 = vmatprep.subr.bf16.mxu0 0
      %2546 = vmatpush1.bf16.msra.mxu0 0
      %2547 = vmatprep.subr.bf16.mxu0 0
      %2548 = vmatpush1.bf16.msra.mxu0 0
      %2549 = vmatprep.subr.bf16.mxu0 0
      %2550 = vmatpush1.bf16.msra.mxu0 0
      %2551 = vmatprep.subr.bf16.mxu0 0
      %2552 = vmatpush1.bf16.msra.mxu0 0
      %2553 = vmatprep.subr.bf16.mxu0 0
      %2554 = vmatpush1.bf16.msra.mxu0 0
      %2555 = vmatprep.subr.bf16.mxu0 0
      %2556 = vmatpush1.bf16.msra.mxu0 0
      %2557 = vmatprep.mubr.bf16.mxu0 0
      %2558 = vmatmul.mubr.bf16.gmra.mrb[0].mxu0 %v2523
      %v2559 = vpop.f32.mrb[0].mxu0
      %v2560 = vadd.f32 0.0, %v2559
      %v2561 = vpop.f32.mrb[0].mxu0
      %v2562 = vpop.f32.mrb[0].mxu0
      %v2563 = vadd.f32 0.0, %v2562
      %v2564 = vpop.f32.mrb[0].mxu0
      %2565 = vdwg.mxu0
      %v2567 = vsel %vm2161, %v2343, 0
      %2569 = vmatprep.subr.bf16.mxu0 0
      %2570 = vmatpush1.bf16.msra.mxu0 %v1778
      %2571 = vmatprep.subr.bf16.mxu0 0
      %2572 = vmatpush1.bf16.msra.mxu0 0
      %2573 = vmatprep.subr.bf16.mxu0 0
      %2574 = vmatpush1.bf16.msra.mxu0 0
      %2575 = vmatprep.subr.bf16.mxu0 0
      %2576 = vmatpush1.bf16.msra.mxu0 0
      %2577 = vmatprep.subr.bf16.mxu0 0
      %2578 = vmatpush1.bf16.msra.mxu0 0
      %2579 = vmatprep.subr.bf16.mxu0 0
      %2580 = vmatpush1.bf16.msra.mxu0 0
      %2581 = vmatprep.subr.bf16.mxu0 0
      %2582 = vmatpush1.bf16.msra.mxu0 0
      %2583 = vmatprep.subr.bf16.mxu0 0
      %2584 = vmatpush1.bf16.msra.mxu0 0
      %2585 = vmatprep.subr.bf16.mxu0 0
      %2586 = vmatpush1.bf16.msra.mxu0 0
      %2587 = vmatprep.subr.bf16.mxu0 0
      %2588 = vmatpush1.bf16.msra.mxu0 0
      %2589 = vmatprep.subr.bf16.mxu0 0
      %2590 = vmatpush1.bf16.msra.mxu0 0
      %2591 = vmatprep.subr.bf16.mxu0 0
      %2592 = vmatpush1.bf16.msra.mxu0 0
      %2593 = vmatprep.subr.bf16.mxu0 0
      %2594 = vmatpush1.bf16.msra.mxu0 0
      %2595 = vmatprep.subr.bf16.mxu0 0
      %2596 = vmatpush1.bf16.msra.mxu0 0
      %2597 = vmatprep.subr.bf16.mxu0 0
      %2598 = vmatpush1.bf16.msra.mxu0 0
      %2599 = vmatprep.subr.bf16.mxu0 0
      %2600 = vmatpush1.bf16.msra.mxu0 0
      %2601 = vmatprep.mubr.bf16.mxu0 0
      %2602 = vmatmul.mubr.bf16.gmra.mrb[0].mxu0 %v2567
      %v2603 = vpop.f32.mrb[0].mxu0
      %v2604 = vadd.f32 0.0, %v2603
      %v2605 = vpop.f32.mrb[0].mxu0
      %v2606 = vpop.f32.mrb[0].mxu0
      %v2607 = vadd.f32 0.0, %v2606
      %v2608 = vpop.f32.mrb[0].mxu0
      %2609 = vdwg.mxu0
      %v2611 = vsel %vm2161, %v2344, 0
      %2613 = vmatprep.subr.bf16.mxu0 0
      %2614 = vmatpush1.bf16.msra.mxu0 %v1742
      %2615 = vmatprep.subr.bf16.mxu0 0
      %2616 = vmatpush1.bf16.msra.mxu0 0
      %2617 = vmatprep.subr.bf16.mxu0 0
      %2618 = vmatpush1.bf16.msra.mxu0 0
      %2619 = vmatprep.subr.bf16.mxu0 0
      %2620 = vmatpush1.bf16.msra.mxu0 0
      %2621 = vmatprep.subr.bf16.mxu0 0
      %2622 = vmatpush1.bf16.msra.mxu0 0
      %2623 = vmatprep.subr.bf16.mxu0 0
      %2624 = vmatpush1.bf16.msra.mxu0 0
      %2625 = vmatprep.subr.bf16.mxu0 0
      %2626 = vmatpush1.bf16.msra.mxu0 0
      %2627 = vmatprep.subr.bf16.mxu0 0
      %2628 = vmatpush1.bf16.msra.mxu0 0
      %2629 = vmatprep.subr.bf16.mxu0 0
      %2630 = vmatpush1.bf16.msra.mxu0 0
      %2631 = vmatprep.subr.bf16.mxu0 0
      %2632 = vmatpush1.bf16.msra.mxu0 0
      %2633 = vmatprep.subr.bf16.mxu0 0
      %2634 = vmatpush1.bf16.msra.mxu0 0
      %2635 = vmatprep.subr.bf16.mxu0 0
      %2636 = vmatpush1.bf16.msra.mxu0 0
      %2637 = vmatprep.subr.bf16.mxu0 0
      %2638 = vmatpush1.bf16.msra.mxu0 0
      %2639 = vmatprep.subr.bf16.mxu0 0
      %2640 = vmatpush1.bf16.msra.mxu0 0
      %2641 = vmatprep.subr.bf16.mxu0 0
      %2642 = vmatpush1.bf16.msra.mxu0 0
      %2643 = vmatprep.subr.bf16.mxu0 0
      %2644 = vmatpush1.bf16.msra.mxu0 0
      %2645 = vmatprep.mubr.bf16.mxu0 0
      %2646 = vmatmul.mubr.bf16.gmra.mrb[0].mxu0 %v2611
      %v2647 = vpop.f32.mrb[0].mxu0
      %v2648 = vadd.f32 0.0, %v2647
      %v2649 = vpop.f32.mrb[0].mxu0
      %v2650 = vpop.f32.mrb[0].mxu0
      %v2651 = vadd.f32 0.0, %v2650
      %v2652 = vpop.f32.mrb[0].mxu0
      %2653 = vdwg.mxu0
      %v2655 = vsel %vm2161, %v2345, 0
      %2657 = vmatprep.subr.bf16.mxu0 0
      %2658 = vmatpush1.bf16.msra.mxu0 %v1782
      %2659 = vmatprep.subr.bf16.mxu0 0
      %2660 = vmatpush1.bf16.msra.mxu0 0
      %2661 = vmatprep.subr.bf16.mxu0 0
      %2662 = vmatpush1.bf16.msra.mxu0 0
      %2663 = vmatprep.subr.bf16.mxu0 0
      %2664 = vmatpush1.bf16.msra.mxu0 0
      %2665 = vmatprep.subr.bf16.mxu0 0
      %2666 = vmatpush1.bf16.msra.mxu0 0
      %2667 = vmatprep.subr.bf16.mxu0 0
      %2668 = vmatpush1.bf16.msra.mxu0 0
      %2669 = vmatprep.subr.bf16.mxu0 0
      %2670 = vmatpush1.bf16.msra.mxu0 0
      %2671 = vmatprep.subr.bf16.mxu0 0
      %2672 = vmatpush1.bf16.msra.mxu0 0
      %2673 = vmatprep.subr.bf16.mxu0 0
      %2674 = vmatpush1.bf16.msra.mxu0 0
      %2675 = vmatprep.subr.bf16.mxu0 0
      %2676 = vmatpush1.bf16.msra.mxu0 0
      %2677 = vmatprep.subr.bf16.mxu0 0
      %2678 = vmatpush1.bf16.msra.mxu0 0
      %2679 = vmatprep.subr.bf16.mxu0 0
      %2680 = vmatpush1.bf16.msra.mxu0 0
      %2681 = vmatprep.subr.bf16.mxu0 0
      %2682 = vmatpush1.bf16.msra.mxu0 0
      %2683 = vmatprep.subr.bf16.mxu0 0
      %2684 = vmatpush1.bf16.msra.mxu0 0
      %2685 = vmatprep.subr.bf16.mxu0 0
      %2686 = vmatpush1.bf16.msra.mxu0 0
      %2687 = vmatprep.subr.bf16.mxu0 0
      %2688 = vmatpush1.bf16.msra.mxu0 0
      %2689 = vmatprep.mubr.bf16.mxu0 0
      %2690 = vmatmul.mubr.bf16.gmra.mrb[0].mxu0 %v2655
      %v2691 = vpop.f32.mrb[0].mxu0
      %v2692 = vadd.f32 0.0, %v2691
      %v2693 = vpop.f32.mrb[0].mxu0
      %v2694 = vpop.f32.mrb[0].mxu0
      %v2695 = vadd.f32 0.0, %v2694
      %v2696 = vpop.f32.mrb[0].mxu0
      %2697 = vdwg.mxu0
      %v2698 = vcombine.low %v2384, %v2560
      %v2699 = vcombine.high %v2384, %v2560
      %v2701 = vunpack.c.l.s4 1983009808
      %v2702 = vunpack.c.0.s8 %v2701
      %v2703 = vlaneseq
      %v2704 = vshrl.u32 %v2703, 7
      %v2705 = vsub.s32 %v2702, %v2704
      %v2706 = vrot.slane %v2698, %v2705
      %v2708 = vunpack.c.l.s4 1983009808
      %v2709 = vunpack.c.0.s8 %v2708
      %v2710 = vlaneseq
      %v2711 = vshrl.u32 %v2710, 7
      %v2712 = vsub.s32 %v2709, %v2711
      %v2713 = vrot.slane %v2699, %v2712
      %v2714 = vcombine.low %v2472, %v2648
      %v2715 = vcombine.high %v2472, %v2648
      %v2717 = vunpack.c.l.s4 1983009808
      %v2718 = vunpack.c.0.s8 %v2717
      %v2719 = vlaneseq
      %v2720 = vshrl.u32 %v2719, 7
      %v2721 = vsub.s32 %v2718, %v2720
      %v2722 = vrot.slane %v2714, %v2721
      %v2724 = vunpack.c.l.s4 1983009808
      %v2725 = vunpack.c.0.s8 %v2724
      %v2726 = vlaneseq
      %v2727 = vshrl.u32 %v2726, 7
      %v2728 = vsub.s32 %v2725, %v2727
      %v2729 = vrot.slane %v2715, %v2728
      %v2730 = vcombine.low %v2706, %v2722
      %v2731 = vcombine.high %v2706, %v2722
      %v2733 = vunpack.c.l.s4 1934713408
      %v2734 = vunpack.c.0.s8 %v2733
      %v2735 = vlaneseq
      %v2736 = vshrl.u32 %v2735, 7
      %v2737 = vsub.s32 %v2734, %v2736
      %v2738 = vrot.slane %v2730, %v2737
      %v2740 = vunpack.c.l.s4 1934713408
      %v2741 = vunpack.c.0.s8 %v2740
      %v2742 = vlaneseq
      %v2743 = vshrl.u32 %v2742, 7
      %v2744 = vsub.s32 %v2741, %v2743
      %v2745 = vrot.slane %v2731, %v2744
      %v2746 = vcombine.low %v2713, %v2729
      %v2747 = vcombine.high %v2713, %v2729
      %v2749 = vunpack.c.l.s4 1934713408
      %v2750 = vunpack.c.0.s8 %v2749
      %v2751 = vlaneseq
      %v2752 = vshrl.u32 %v2751, 7
      %v2753 = vsub.s32 %v2750, %v2752
      %v2754 = vrot.slane %v2746, %v2753
      %v2756 = vunpack.c.l.s4 1934713408
      %v2757 = vunpack.c.0.s8 %v2756
      %v2758 = vlaneseq
      %v2759 = vshrl.u32 %v2758, 7
      %v2760 = vsub.s32 %v2757, %v2759
      %v2761 = vrot.slane %v2747, %v2760
      %v2762 = vcombine.high %v2738, 0.0
      %v2763 = vcombine.high %v2745, 0.0
      %v2764 = vcombine.high %v2754, 0.0
      %v2765 = vcombine.high %v2761, 0.0
      %v2766 = vcombine.low %v2387, %v2563
      %v2767 = vcombine.high %v2387, %v2563
      %v2769 = vunpack.c.l.s4 1983009808
      %v2770 = vunpack.c.0.s8 %v2769
      %v2771 = vlaneseq
      %v2772 = vshrl.u32 %v2771, 7
      %v2773 = vsub.s32 %v2770, %v2772
      %v2774 = vrot.slane %v2766, %v2773
      %v2776 = vunpack.c.l.s4 1983009808
      %v2777 = vunpack.c.0.s8 %v2776
      %v2778 = vlaneseq
      %v2779 = vshrl.u32 %v2778, 7
      %v2780 = vsub.s32 %v2777, %v2779
      %v2781 = vrot.slane %v2767, %v2780
      %v2782 = vcombine.low %v2475, %v2651
      %v2783 = vcombine.high %v2475, %v2651
      %v2785 = vunpack.c.l.s4 1983009808
      %v2786 = vunpack.c.0.s8 %v2785
      %v2787 = vlaneseq
      %v2788 = vshrl.u32 %v2787, 7
      %v2789 = vsub.s32 %v2786, %v2788
      %v2790 = vrot.slane %v2782, %v2789
      %v2792 = vunpack.c.l.s4 1983009808
      %v2793 = vunpack.c.0.s8 %v2792
      %v2794 = vlaneseq
      %v2795 = vshrl.u32 %v2794, 7
      %v2796 = vsub.s32 %v2793, %v2795
      %v2797 = vrot.slane %v2783, %v2796
      %v2798 = vcombine.low %v2774, %v2790
      %v2799 = vcombine.high %v2774, %v2790
      %v2801 = vunpack.c.l.s4 1934713408
      %v2802 = vunpack.c.0.s8 %v2801
      %v2803 = vlaneseq
      %v2804 = vshrl.u32 %v2803, 7
      %v2805 = vsub.s32 %v2802, %v2804
      %v2806 = vrot.slane %v2798, %v2805
      %v2808 = vunpack.c.l.s4 1934713408
      %v2809 = vunpack.c.0.s8 %v2808
      %v2810 = vlaneseq
      %v2811 = vshrl.u32 %v2810, 7
      %v2812 = vsub.s32 %v2809, %v2811
      %v2813 = vrot.slane %v2799, %v2812
      %v2814 = vcombine.low %v2781, %v2797
      %v2815 = vcombine.high %v2781, %v2797
      %v2817 = vunpack.c.l.s4 1934713408
      %v2818 = vunpack.c.0.s8 %v2817
      %v2819 = vlaneseq
      %v2820 = vshrl.u32 %v2819, 7
      %v2821 = vsub.s32 %v2818, %v2820
      %v2822 = vrot.slane %v2814, %v2821
      %v2824 = vunpack.c.l.s4 1934713408
      %v2825 = vunpack.c.0.s8 %v2824
      %v2826 = vlaneseq
      %v2827 = vshrl.u32 %v2826, 7
      %v2828 = vsub.s32 %v2825, %v2827
      %v2829 = vrot.slane %v2815, %v2828
      %v2830 = vcombine.high %v2806, 0.0
      %v2831 = vcombine.high %v2813, 0.0
      %v2832 = vcombine.high %v2822, 0.0
      %v2833 = vcombine.high %v2829, 0.0
      %v2834 = vcombine.low %v2428, %v2604
      %v2835 = vcombine.high %v2428, %v2604
      %v2837 = vunpack.c.l.s4 1983009808
      %v2838 = vunpack.c.0.s8 %v2837
      %v2839 = vlaneseq
      %v2840 = vshrl.u32 %v2839, 7
      %v2841 = vsub.s32 %v2838, %v2840
      %v2842 = vrot.slane %v2834, %v2841
      %v2844 = vunpack.c.l.s4 1983009808
      %v2845 = vunpack.c.0.s8 %v2844
      %v2846 = vlaneseq
      %v2847 = vshrl.u32 %v2846, 7
      %v2848 = vsub.s32 %v2845, %v2847
      %v2849 = vrot.slane %v2835, %v2848
      %v2850 = vcombine.low %v2516, %v2692
      %v2851 = vcombine.high %v2516, %v2692
      %v2853 = vunpack.c.l.s4 1983009808
      %v2854 = vunpack.c.0.s8 %v2853
      %v2855 = vlaneseq
      %v2856 = vshrl.u32 %v2855, 7
      %v2857 = vsub.s32 %v2854, %v2856
      %v2858 = vrot.slane %v2850, %v2857
      %v2860 = vunpack.c.l.s4 1983009808
      %v2861 = vunpack.c.0.s8 %v2860
      %v2862 = vlaneseq
      %v2863 = vshrl.u32 %v2862, 7
      %v2864 = vsub.s32 %v2861, %v2863
      %v2865 = vrot.slane %v2851, %v2864
      %v2866 = vcombine.low %v2842, %v2858
      %v2867 = vcombine.high %v2842, %v2858
      %v2869 = vunpack.c.l.s4 1934713408
      %v2870 = vunpack.c.0.s8 %v2869
      %v2871 = vlaneseq
      %v2872 = vshrl.u32 %v2871, 7
      %v2873 = vsub.s32 %v2870, %v2872
      %v2874 = vrot.slane %v2866, %v2873
      %v2876 = vunpack.c.l.s4 1934713408
      %v2877 = vunpack.c.0.s8 %v2876
      %v2878 = vlaneseq
      %v2879 = vshrl.u32 %v2878, 7
      %v2880 = vsub.s32 %v2877, %v2879
      %v2881 = vrot.slane %v2867, %v2880
      %v2882 = vcombine.low %v2849, %v2865
      %v2883 = vcombine.high %v2849, %v2865
      %v2885 = vunpack.c.l.s4 1934713408
      %v2886 = vunpack.c.0.s8 %v2885
      %v2887 = vlaneseq
      %v2888 = vshrl.u32 %v2887, 7
      %v2889 = vsub.s32 %v2886, %v2888
      %v2890 = vrot.slane %v2882, %v2889
      %v2892 = vunpack.c.l.s4 1934713408
      %v2893 = vunpack.c.0.s8 %v2892
      %v2894 = vlaneseq
      %v2895 = vshrl.u32 %v2894, 7
      %v2896 = vsub.s32 %v2893, %v2895
      %v2897 = vrot.slane %v2883, %v2896
      %v2898 = vcombine.high %v2874, 0.0
      %v2899 = vcombine.high %v2881, 0.0
      %v2900 = vcombine.high %v2890, 0.0
      %v2901 = vcombine.high %v2897, 0.0
      %v2902 = vcombine.low %v2431, %v2607
      %v2903 = vcombine.high %v2431, %v2607
      %v2905 = vunpack.c.l.s4 1983009808
      %v2906 = vunpack.c.0.s8 %v2905
      %v2907 = vlaneseq
      %v2908 = vshrl.u32 %v2907, 7
      %v2909 = vsub.s32 %v2906, %v2908
      %v2910 = vrot.slane %v2902, %v2909
      %v2912 = vunpack.c.l.s4 1983009808
      %v2913 = vunpack.c.0.s8 %v2912
      %v2914 = vlaneseq
      %v2915 = vshrl.u32 %v2914, 7
      %v2916 = vsub.s32 %v2913, %v2915
      %v2917 = vrot.slane %v2903, %v2916
      %v2918 = vcombine.low %v2519, %v2695
      %v2919 = vcombine.high %v2519, %v2695
      %v2921 = vunpack.c.l.s4 1983009808
      %v2922 = vunpack.c.0.s8 %v2921
      %v2923 = vlaneseq
      %v2924 = vshrl.u32 %v2923, 7
      %v2925 = vsub.s32 %v2922, %v2924
      %v2926 = vrot.slane %v2918, %v2925
      %v2928 = vunpack.c.l.s4 1983009808
      %v2929 = vunpack.c.0.s8 %v2928
      %v2930 = vlaneseq
      %v2931 = vshrl.u32 %v2930, 7
      %v2932 = vsub.s32 %v2929, %v2931
      %v2933 = vrot.slane %v2919, %v2932
      %v2934 = vcombine.low %v2910, %v2926
      %v2935 = vcombine.high %v2910, %v2926
      %v2937 = vunpack.c.l.s4 1934713408
      %v2938 = vunpack.c.0.s8 %v2937
      %v2939 = vlaneseq
      %v2940 = vshrl.u32 %v2939, 7
      %v2941 = vsub.s32 %v2938, %v2940
      %v2942 = vrot.slane %v2934, %v2941
      %v2944 = vunpack.c.l.s4 1934713408
      %v2945 = vunpack.c.0.s8 %v2944
      %v2946 = vlaneseq
      %v2947 = vshrl.u32 %v2946, 7
      %v2948 = vsub.s32 %v2945, %v2947
      %v2949 = vrot.slane %v2935, %v2948
      %v2950 = vcombine.low %v2917, %v2933
      %v2951 = vcombine.high %v2917, %v2933
      %v2953 = vunpack.c.l.s4 1934713408
      %v2954 = vunpack.c.0.s8 %v2953
      %v2955 = vlaneseq
      %v2956 = vshrl.u32 %v2955, 7
      %v2957 = vsub.s32 %v2954, %v2956
      %v2958 = vrot.slane %v2950, %v2957
      %v2960 = vunpack.c.l.s4 1934713408
      %v2961 = vunpack.c.0.s8 %v2960
      %v2962 = vlaneseq
      %v2963 = vshrl.u32 %v2962, 7
      %v2964 = vsub.s32 %v2961, %v2963
      %v2965 = vrot.slane %v2951, %v2964
      %v2966 = vcombine.high %v2942, 0.0
      %v2967 = vcombine.high %v2949, 0.0
      %v2968 = vcombine.high %v2958, 0.0
      %v2969 = vcombine.high %v2965, 0.0
      %v2970 = vcombine.low %v2738, %v2745
      %v2972 = vunpack.c.l.s4 1983009808
      %v2973 = vunpack.c.0.s8 %v2972
      %v2974 = vlaneseq
      %v2975 = vshrl.u32 %v2974, 7
      %v2976 = vsub.s32 %v2973, %v2975
      %v2977 = vrot.slane %v2970, %v2976
      %v2978 = vcombine.low %v2762, %v2763
      %v2980 = vunpack.c.l.s4 1983009808
      %v2981 = vunpack.c.0.s8 %v2980
      %v2982 = vlaneseq
      %v2983 = vshrl.u32 %v2982, 7
      %v2984 = vsub.s32 %v2981, %v2983
      %v2985 = vrot.slane %v2978, %v2984
      %v2986 = vcombine.low %v2754, %v2761
      %v2988 = vunpack.c.l.s4 1983009808
      %v2989 = vunpack.c.0.s8 %v2988
      %v2990 = vlaneseq
      %v2991 = vshrl.u32 %v2990, 7
      %v2992 = vsub.s32 %v2989, %v2991
      %v2993 = vrot.slane %v2986, %v2992
      %v2994 = vcombine.low %v2764, %v2765
      %v2996 = vunpack.c.l.s4 1983009808
      %v2997 = vunpack.c.0.s8 %v2996
      %v2998 = vlaneseq
      %v2999 = vshrl.u32 %v2998, 7
      %v3000 = vsub.s32 %v2997, %v2999
      %v3001 = vrot.slane %v2994, %v3000
      %v3002 = vcombine.low %v2977, %v2985
      %v3003 = vcombine.high %v2977, %v2985
      %v3005 = vunpack.c.l.s4 1934713408
      %v3006 = vunpack.c.0.s8 %v3005
      %v3007 = vlaneseq
      %v3008 = vshrl.u32 %v3007, 7
      %v3009 = vsub.s32 %v3006, %v3008
      %v3010 = vrot.slane %v3002, %v3009
      %v3012 = vunpack.c.l.s4 1934713408
      %v3013 = vunpack.c.0.s8 %v3012
      %v3014 = vlaneseq
      %v3015 = vshrl.u32 %v3014, 7
      %v3016 = vsub.s32 %v3013, %v3015
      %v3017 = vrot.slane %v3003, %v3016
      %v3018 = vcombine.low %v2993, %v3001
      %v3019 = vcombine.high %v2993, %v3001
      %v3021 = vunpack.c.l.s4 1934713408
      %v3022 = vunpack.c.0.s8 %v3021
      %v3023 = vlaneseq
      %v3024 = vshrl.u32 %v3023, 7
      %v3025 = vsub.s32 %v3022, %v3024
      %v3026 = vrot.slane %v3018, %v3025
      %v3028 = vunpack.c.l.s4 1934713408
      %v3029 = vunpack.c.0.s8 %v3028
      %v3030 = vlaneseq
      %v3031 = vshrl.u32 %v3030, 7
      %v3032 = vsub.s32 %v3029, %v3031
      %v3033 = vrot.slane %v3019, %v3032
      %v3034 = vcombine.low %v3010, %v3026
      %v3035 = vcombine.high %v3010, %v3026
      %v3036 = vcombine.low %v3017, %v3033
      %v3037 = vcombine.high %v3017, %v3033
      %v3038 = vcombine.low %v2806, %v2813
      %v3040 = vunpack.c.l.s4 1983009808
      %v3041 = vunpack.c.0.s8 %v3040
      %v3042 = vlaneseq
      %v3043 = vshrl.u32 %v3042, 7
      %v3044 = vsub.s32 %v3041, %v3043
      %v3045 = vrot.slane %v3038, %v3044
      %v3046 = vcombine.low %v2830, %v2831
      %v3048 = vunpack.c.l.s4 1983009808
      %v3049 = vunpack.c.0.s8 %v3048
      %v3050 = vlaneseq
      %v3051 = vshrl.u32 %v3050, 7
      %v3052 = vsub.s32 %v3049, %v3051
      %v3053 = vrot.slane %v3046, %v3052
      %v3054 = vcombine.low %v2822, %v2829
      %v3056 = vunpack.c.l.s4 1983009808
      %v3057 = vunpack.c.0.s8 %v3056
      %v3058 = vlaneseq
      %v3059 = vshrl.u32 %v3058, 7
      %v3060 = vsub.s32 %v3057, %v3059
      %v3061 = vrot.slane %v3054, %v3060
      %v3062 = vcombine.low %v2832, %v2833
      %v3064 = vunpack.c.l.s4 1983009808
      %v3065 = vunpack.c.0.s8 %v3064
      %v3066 = vlaneseq
      %v3067 = vshrl.u32 %v3066, 7
      %v3068 = vsub.s32 %v3065, %v3067
      %v3069 = vrot.slane %v3062, %v3068
      %v3070 = vcombine.low %v3045, %v3053
      %v3071 = vcombine.high %v3045, %v3053
      %v3073 = vunpack.c.l.s4 1934713408
      %v3074 = vunpack.c.0.s8 %v3073
      %v3075 = vlaneseq
      %v3076 = vshrl.u32 %v3075, 7
      %v3077 = vsub.s32 %v3074, %v3076
      %v3078 = vrot.slane %v3070, %v3077
      %v3080 = vunpack.c.l.s4 1934713408
      %v3081 = vunpack.c.0.s8 %v3080
      %v3082 = vlaneseq
      %v3083 = vshrl.u32 %v3082, 7
      %v3084 = vsub.s32 %v3081, %v3083
      %v3085 = vrot.slane %v3071, %v3084
      %v3086 = vcombine.low %v3061, %v3069
      %v3087 = vcombine.high %v3061, %v3069
      %v3089 = vunpack.c.l.s4 1934713408
      %v3090 = vunpack.c.0.s8 %v3089
      %v3091 = vlaneseq
      %v3092 = vshrl.u32 %v3091, 7
      %v3093 = vsub.s32 %v3090, %v3092
      %v3094 = vrot.slane %v3086, %v3093
      %v3096 = vunpack.c.l.s4 1934713408
      %v3097 = vunpack.c.0.s8 %v3096
      %v3098 = vlaneseq
      %v3099 = vshrl.u32 %v3098, 7
      %v3100 = vsub.s32 %v3097, %v3099
      %v3101 = vrot.slane %v3087, %v3100
      %v3102 = vcombine.low %v3078, %v3094
      %v3103 = vcombine.high %v3078, %v3094
      %v3104 = vcombine.low %v3085, %v3101
      %v3105 = vcombine.high %v3085, %v3101
      %v3106 = vcombine.low %v2874, %v2881
      %v3108 = vunpack.c.l.s4 1983009808
      %v3109 = vunpack.c.0.s8 %v3108
      %v3110 = vlaneseq
      %v3111 = vshrl.u32 %v3110, 7
      %v3112 = vsub.s32 %v3109, %v3111
      %v3113 = vrot.slane %v3106, %v3112
      %v3114 = vcombine.low %v2898, %v2899
      %v3116 = vunpack.c.l.s4 1983009808
      %v3117 = vunpack.c.0.s8 %v3116
      %v3118 = vlaneseq
      %v3119 = vshrl.u32 %v3118, 7
      %v3120 = vsub.s32 %v3117, %v3119
      %v3121 = vrot.slane %v3114, %v3120
      %v3122 = vcombine.low %v2890, %v2897
      %v3124 = vunpack.c.l.s4 1983009808
      %v3125 = vunpack.c.0.s8 %v3124
      %v3126 = vlaneseq
      %v3127 = vshrl.u32 %v3126, 7
      %v3128 = vsub.s32 %v3125, %v3127
      %v3129 = vrot.slane %v3122, %v3128
      %v3130 = vcombine.low %v2900, %v2901
      %v3132 = vunpack.c.l.s4 1983009808
      %v3133 = vunpack.c.0.s8 %v3132
      %v3134 = vlaneseq
      %v3135 = vshrl.u32 %v3134, 7
      %v3136 = vsub.s32 %v3133, %v3135
      %v3137 = vrot.slane %v3130, %v3136
      %v3138 = vcombine.low %v3113, %v3121
      %v3139 = vcombine.high %v3113, %v3121
      %v3141 = vunpack.c.l.s4 1934713408
      %v3142 = vunpack.c.0.s8 %v3141
      %v3143 = vlaneseq
      %v3144 = vshrl.u32 %v3143, 7
      %v3145 = vsub.s32 %v3142, %v3144
      %v3146 = vrot.slane %v3138, %v3145
      %v3148 = vunpack.c.l.s4 1934713408
      %v3149 = vunpack.c.0.s8 %v3148
      %v3150 = vlaneseq
      %v3151 = vshrl.u32 %v3150, 7
      %v3152 = vsub.s32 %v3149, %v3151
      %v3153 = vrot.slane %v3139, %v3152
      %v3154 = vcombine.low %v3129, %v3137
      %v3155 = vcombine.high %v3129, %v3137
      %v3157 = vunpack.c.l.s4 1934713408
      %v3158 = vunpack.c.0.s8 %v3157
      %v3159 = vlaneseq
      %v3160 = vshrl.u32 %v3159, 7
      %v3161 = vsub.s32 %v3158, %v3160
      %v3162 = vrot.slane %v3154, %v3161
      %v3164 = vunpack.c.l.s4 1934713408
      %v3165 = vunpack.c.0.s8 %v3164
      %v3166 = vlaneseq
      %v3167 = vshrl.u32 %v3166, 7
      %v3168 = vsub.s32 %v3165, %v3167
      %v3169 = vrot.slane %v3155, %v3168
      %v3170 = vcombine.low %v3146, %v3162
      %v3171 = vcombine.high %v3146, %v3162
      %v3172 = vcombine.low %v3153, %v3169
      %v3173 = vcombine.high %v3153, %v3169
      %v3174 = vcombine.low %v2942, %v2949
      %v3176 = vunpack.c.l.s4 1983009808
      %v3177 = vunpack.c.0.s8 %v3176
      %v3178 = vlaneseq
      %v3179 = vshrl.u32 %v3178, 7
      %v3180 = vsub.s32 %v3177, %v3179
      %v3181 = vrot.slane %v3174, %v3180
      %v3182 = vcombine.low %v2966, %v2967
      %v3184 = vunpack.c.l.s4 1983009808
      %v3185 = vunpack.c.0.s8 %v3184
      %v3186 = vlaneseq
      %v3187 = vshrl.u32 %v3186, 7
      %v3188 = vsub.s32 %v3185, %v3187
      %v3189 = vrot.slane %v3182, %v3188
      %v3190 = vcombine.low %v2958, %v2965
      %v3192 = vunpack.c.l.s4 1983009808
      %v3193 = vunpack.c.0.s8 %v3192
      %v3194 = vlaneseq
      %v3195 = vshrl.u32 %v3194, 7
      %v3196 = vsub.s32 %v3193, %v3195
      %v3197 = vrot.slane %v3190, %v3196
      %v3198 = vcombine.low %v2968, %v2969
      %v3200 = vunpack.c.l.s4 1983009808
      %v3201 = vunpack.c.0.s8 %v3200
      %v3202 = vlaneseq
      %v3203 = vshrl.u32 %v3202, 7
      %v3204 = vsub.s32 %v3201, %v3203
      %v3205 = vrot.slane %v3198, %v3204
      %v3206 = vcombine.low %v3181, %v3189
      %v3207 = vcombine.high %v3181, %v3189
      %v3209 = vunpack.c.l.s4 1934713408
      %v3210 = vunpack.c.0.s8 %v3209
      %v3211 = vlaneseq
      %v3212 = vshrl.u32 %v3211, 7
      %v3213 = vsub.s32 %v3210, %v3212
      %v3214 = vrot.slane %v3206, %v3213
      %v3216 = vunpack.c.l.s4 1934713408
      %v3217 = vunpack.c.0.s8 %v3216
      %v3218 = vlaneseq
      %v3219 = vshrl.u32 %v3218, 7
      %v3220 = vsub.s32 %v3217, %v3219
      %v3221 = vrot.slane %v3207, %v3220
      %v3222 = vcombine.low %v3197, %v3205
      %v3223 = vcombine.high %v3197, %v3205
      %v3225 = vunpack.c.l.s4 1934713408
      %v3226 = vunpack.c.0.s8 %v3225
      %v3227 = vlaneseq
      %v3228 = vshrl.u32 %v3227, 7
      %v3229 = vsub.s32 %v3226, %v3228
      %v3230 = vrot.slane %v3222, %v3229
      %v3232 = vunpack.c.l.s4 1934713408
      %v3233 = vunpack.c.0.s8 %v3232
      %v3234 = vlaneseq
      %v3235 = vshrl.u32 %v3234, 7
      %v3236 = vsub.s32 %v3233, %v3235
      %v3237 = vrot.slane %v3223, %v3236
      %v3238 = vcombine.low %v3214, %v3230
      %v3239 = vcombine.high %v3214, %v3230
      %v3240 = vcombine.low %v3221, %v3237
      %v3241 = vcombine.high %v3221, %v3237
      %3246 = vrot.lane.b32.xlu0 %v3035, 8
      %v3247 = vpop.permute.xlu0 %3246
      %3248 = vrot.lane.b32.xlu0 %v3103, 8
      %v3249 = vpop.permute.xlu0 %3248
      %3250 = vrot.lane.b32.xlu0 %v3171, 8
      %v3251 = vpop.permute.xlu0 %3250
      %3252 = vrot.lane.b32.xlu0 %v3239, 8
      %v3253 = vpop.permute.xlu0 %3252
      %3262 = vrot.lane.b32.xlu0 %v3036, 16
      %v3263 = vpop.permute.xlu0 %3262
      %3264 = vrot.lane.b32.xlu0 %v3104, 16
      %v3265 = vpop.permute.xlu0 %3264
      %3266 = vrot.lane.b32.xlu0 %v3172, 16
      %v3267 = vpop.permute.xlu0 %3266
      %3268 = vrot.lane.b32.xlu0 %v3240, 16
      %v3269 = vpop.permute.xlu0 %3268
      %3278 = vrot.lane.b32.xlu0 %v3037, 24
      %v3279 = vpop.permute.xlu0 %3278
      %3280 = vrot.lane.b32.xlu0 %v3105, 24
      %v3281 = vpop.permute.xlu0 %3280
      %3282 = vrot.lane.b32.xlu0 %v3173, 24
      %v3283 = vpop.permute.xlu0 %3282
      %3284 = vrot.lane.b32.xlu0 %v3241, 24
      %v3285 = vpop.permute.xlu0 %3284
      %v3290 = vsel %vm1784, %v3034, %v3247
      %v3291 = vsel %vm1784, %v3102, %v3249
      %v3292 = vsel %vm1784, %v3170, %v3251
      %v3293 = vsel %vm1784, %v3238, %v3253
      %v3294 = vsel %vm2161, %v3290, %v3263
      %v3295 = vsel %vm2161, %v3291, %v3265
      %v3296 = vsel %vm2161, %v3292, %v3267
      %v3297 = vsel %vm2161, %v3293, %v3269
      %vm3298 = vcmask 195584
      %v3299 = vsel %vm3298, %v3294, %v3279
      %v3300 = vsel %vm3298, %v3295, %v3281
      %v3301 = vsel %vm3298, %v3296, %v3283
      %v3302 = vsel %vm3298, %v3297, %v3285
      %v3303 = vpack.c.bf16 %v3300, %v3299
      %v3304 = vpack.c.bf16 %v3302, %v3301
      %s3305 = smul.addr %s464, 4
      %s3306 = scalar_lea.vmem [#allocation14], %s3305
      %v3307 = vld [vmem:[%s3306] sm:$0xf]
      %v3308 = vld [vmem:[%s3306 + $0x4] sm:$0xf]
      %v3309 = vld [vmem:[%s3306 + $0x8] sm:$0xf]
      %v3310 = vld [vmem:[%s3306 + $0xc] sm:$0xf]
      %v3315 = vunpack.c.l.b16 %v3307
      %v3316 = vunpack.c.l.b16 %v3308
      %v3317 = vunpack.c.l.b16 %v3309
      %v3318 = vunpack.c.l.b16 %v3310
      %v3319 = vpack.c.b16 %v3316, %v3315
      %v3320 = vpack.c.b16 %v3318, %v3317
      %v3324 = vsel %vm388, %v3303, 0
      %v3327 = vsel %vm388, %v3304, 0
      %3329 = vmatprep.subr.bf16.mxu0 0
      %3330 = vmatpush1.bf16.msra.mxu0 %v3319
      %3331 = vmatprep.subr.bf16.mxu0 0
      %3332 = vmatpush1.bf16.msra.mxu0 %v3320
      %3333 = vmatprep.subr.bf16.mxu0 0
      %3334 = vmatpush1.bf16.msra.mxu0 0
      %3335 = vmatprep.subr.bf16.mxu0 0
      %3336 = vmatpush1.bf16.msra.mxu0 0
      %3337 = vmatprep.subr.bf16.mxu0 0
      %3338 = vmatpush1.bf16.msra.mxu0 0
      %3339 = vmatprep.subr.bf16.mxu0 0
      %3340 = vmatpush1.bf16.msra.mxu0 0
      %3341 = vmatprep.subr.bf16.mxu0 0
      %3342 = vmatpush1.bf16.msra.mxu0 0
      %3343 = vmatprep.subr.bf16.mxu0 0
      %3344 = vmatpush1.bf16.msra.mxu0 0
      %3345 = vmatprep.subr.bf16.mxu0 0
      %3346 = vmatpush1.bf16.msra.mxu0 0
      %3347 = vmatprep.subr.bf16.mxu0 0
      %3348 = vmatpush1.bf16.msra.mxu0 0
      %3349 = vmatprep.subr.bf16.mxu0 0
      %3350 = vmatpush1.bf16.msra.mxu0 0
      %3351 = vmatprep.subr.bf16.mxu0 0
      %3352 = vmatpush1.bf16.msra.mxu0 0
      %3353 = vmatprep.subr.bf16.mxu0 0
      %3354 = vmatpush1.bf16.msra.mxu0 0
      %3355 = vmatprep.subr.bf16.mxu0 0
      %3356 = vmatpush1.bf16.msra.mxu0 0
      %3357 = vmatprep.subr.bf16.mxu0 0
      %3358 = vmatpush1.bf16.msra.mxu0 0
      %3359 = vmatprep.subr.bf16.mxu0 0
      %3360 = vmatpush1.bf16.msra.mxu0 0
      %3361 = vmatprep.mubr.bf16.mxu0 0
      %3362 = vmatmul.mubr.bf16.gmra.mrb[0].mxu0 %v3324
      %v3363 = vpop.f32.mrb[0].mxu0
      %v3364 = vadd.f32 0.0, %v3363
      %v3365 = vpop.f32.mrb[0].mxu0
      %v3366 = vpop.f32.mrb[0].mxu0
      %v3367 = vadd.f32 0.0, %v3366
      %v3368 = vpop.f32.mrb[0].mxu0
      %3369 = vmatprep.mubr.bf16.mxu0 0
      %3370 = vmatmul.mubr.bf16.gmra.mrb[0].mxu0 %v3327
      %v3371 = vpop.f32.mrb[0].mxu0
      %v3372 = vadd.f32 0.0, %v3371
      %v3373 = vpop.f32.mrb[0].mxu0
      %v3374 = vpop.f32.mrb[0].mxu0
      %v3375 = vadd.f32 0.0, %v3374
      %v3376 = vpop.f32.mrb[0].mxu0
      %3377 = vdwg.mxu0
      %v3378 = vadd.f32 %v380, %v3364
      %v3379 = vadd.f32 %v381, %v3367
      %v3380 = vadd.f32 %v382, %v3372
      %v3381 = vadd.f32 %v383, %v3375
      %s3382 = scalar_lea.vmem [#allocation15], %s375
      %v3383 = vld [vmem:[%s3382] sm:$0x1]
      %v3385 = vlaneseq
      %v3386 = vshrl.u32 %v3385, 7
      %v3387 = vsub.s32 0, %v3386
      %v3388 = vrot.slane %v3383, %v3387
      %v3390 = vadd.f32 %v3378, %v3388
      %v3391 = vadd.f32 %v3379, %v3388
      %v3392 = vadd.f32 %v3380, %v3388
      %v3393 = vadd.f32 %v3381, %v3388
      %s3394 = scalar_lea.vmem [#allocation17], %s375
      %v3395 = vld [vmem:[%s3394] sm:$0x1]
      %s3396 = scalar_lea.vmem [#allocation18], %s375
      %v3397 = vld [vmem:[%s3396] sm:$0x1]
      %v3398 = vsel %vm388, %v3390, 0.0
      %3399 = vadd.xlane.f32.xlu0 %v3398
      %v3400 = vpop.xlane.xlu0 %3399
      %v3401 = vsel %vm388, %v3391, 0.0
      %3402 = vadd.xlane.f32.xlu0 %v3401
      %v3403 = vpop.xlane.xlu0 %3402
      %v3404 = vsel %vm388, %v3392, 0.0
      %3405 = vadd.xlane.f32.xlu0 %v3404
      %v3406 = vpop.xlane.xlu0 %3405
      %v3407 = vsel %vm388, %v3393, 0.0
      %3408 = vadd.xlane.f32.xlu0 %v3407
      %v3409 = vpop.xlane.xlu0 %3408
      %v3410 = vmul.f32 %v3400, %v401
      %v3411 = vmul.f32 %v3403, %v401
      %v3412 = vmul.f32 %v3406, %v401
      %v3413 = vmul.f32 %v3409, %v401
      %v3414 = vsub.f32 %v3390, %v3410
      %v3415 = vsub.f32 %v3391, %v3411
      %v3416 = vsub.f32 %v3392, %v3412
      %v3417 = vsub.f32 %v3393, %v3413
      %v3418 = vmul.f32 %v3414, %v3414
      %v3419 = vmul.f32 %v3415, %v3415
      %v3420 = vmul.f32 %v3416, %v3416
      %v3421 = vmul.f32 %v3417, %v3417
      %v3422 = vsel %vm388, %v3418, 0.0
      %3423 = vadd.xlane.f32.xlu0 %v3422
      %v3424 = vpop.xlane.xlu0 %3423
      %v3425 = vsel %vm388, %v3419, 0.0
      %3426 = vadd.xlane.f32.xlu0 %v3425
      %v3427 = vpop.xlane.xlu0 %3426
      %v3428 = vsel %vm388, %v3420, 0.0
      %3429 = vadd.xlane.f32.xlu0 %v3428
      %v3430 = vpop.xlane.xlu0 %3429
      %v3431 = vsel %vm388, %v3421, 0.0
      %3432 = vadd.xlane.f32.xlu0 %v3431
      %v3433 = vpop.xlane.xlu0 %3432
      %v3434 = vmul.f32 %v3424, %v401
      %v3435 = vmul.f32 %v3427, %v401
      %v3436 = vmul.f32 %v3430, %v401
      %v3437 = vmul.f32 %v3433, %v401
      %v3438 = vadd.f32 %v3434, 1e-05
      %v3439 = vadd.f32 %v3435, 1e-05
      %v3440 = vadd.f32 %v3436, 1e-05
      %v3441 = vadd.f32 %v3437, 1e-05
      %v3442 = vrsqrt.pop %v3438
      %v3443 = vrsqrt.pop %v3439
      %v3444 = vrsqrt.pop %v3440
      %v3445 = vrsqrt.pop %v3441
      %v3446 = vmul.f32 %v3414, %v3442
      %v3447 = vmul.f32 %v3415, %v3443
      %v3448 = vmul.f32 %v3416, %v3444
      %v3449 = vmul.f32 %v3417, %v3445
      %v3451 = vlaneseq
      %v3452 = vshrl.u32 %v3451, 7
      %v3453 = vsub.s32 0, %v3452
      %v3454 = vrot.slane %v3395, %v3453
      %v3456 = vmul.f32 %v3446, %v3454
      %v3457 = vmul.f32 %v3447, %v3454
      %v3458 = vmul.f32 %v3448, %v3454
      %v3459 = vmul.f32 %v3449, %v3454
      %v3461 = vlaneseq
      %v3462 = vshrl.u32 %v3461, 7
      %v3463 = vsub.s32 0, %v3462
      %v3464 = vrot.slane %v3397, %v3463
      %v3466 = vadd.f32 %v3456, %v3464
      %v3467 = vadd.f32 %v3457, %v3464
      %v3468 = vadd.f32 %v3458, %v3464
      %v3469 = vadd.f32 %v3459, %v3464
      %v3470 = vpack.c.bf16 %v3467, %v3466
      %v3471 = vpack.c.bf16 %v3469, %v3468
      %s3472 = smul.addr %s464, 4
      %s3473 = scalar_lea.vmem %s13, %s3472
      %v3474 = vld [vmem:[%s3473] sm:$0xf]
      %v3475 = vld [vmem:[%s3473 + $0x4] sm:$0xf]
      %v3476 = vld [vmem:[%s3473 + $0x8] sm:$0xf]
      %v3477 = vld [vmem:[%s3473 + $0xc] sm:$0xf]
      %s3478 = scalar_lea.vmem [#allocation20], %s375
      %v3479 = vld [vmem:[%s3478] sm:$0x1]
      %v3481 = vlaneseq
      %v3482 = vshrl.u32 %v3481, 7
      %v3483 = vsub.s32 0, %v3482
      %v3484 = vrot.slane %v3479, %v3483
      %v3490 = vunpack.c.l.b16 %v3474
      %v3491 = vunpack.c.l.b16 %v3475
      %v3492 = vunpack.c.l.b16 %v3476
      %v3493 = vunpack.c.l.b16 %v3477
      %v3494 = vpack.c.b16 %v3491, %v3490
      %v3495 = vpack.c.b16 %v3493, %v3492
      %v3499 = vsel %vm388, %v3470, 0
      %v3502 = vsel %vm388, %v3471, 0
      %3504 = vmatprep.subr.bf16.mxu0 0
      %3505 = vmatpush1.bf16.msra.mxu0 %v3494
      %3506 = vmatprep.subr.bf16.mxu0 0
      %3507 = vmatpush1.bf16.msra.mxu0 %v3495
      %3508 = vmatprep.subr.bf16.mxu0 0
      %3509 = vmatpush1.bf16.msra.mxu0 0
      %3510 = vmatprep.subr.bf16.mxu0 0
      %3511 = vmatpush1.bf16.msra.mxu0 0
      %3512 = vmatprep.subr.bf16.mxu0 0
      %3513 = vmatpush1.bf16.msra.mxu0 0
      %3514 = vmatprep.subr.bf16.mxu0 0
      %3515 = vmatpush1.bf16.msra.mxu0 0
      %3516 = vmatprep.subr.bf16.mxu0 0
      %3517 = vmatpush1.bf16.msra.mxu0 0
      %3518 = vmatprep.subr.bf16.mxu0 0
      %3519 = vmatpush1.bf16.msra.mxu0 0
      %3520 = vmatprep.subr.bf16.mxu0 0
      %3521 = vmatpush1.bf16.msra.mxu0 0
      %3522 = vmatprep.subr.bf16.mxu0 0
      %3523 = vmatpush1.bf16.msra.mxu0 0
      %3524 = vmatprep.subr.bf16.mxu0 0
      %3525 = vmatpush1.bf16.msra.mxu0 0
      %3526 = vmatprep.subr.bf16.mxu0 0
      %3527 = vmatpush1.bf16.msra.mxu0 0
      %3528 = vmatprep.subr.bf16.mxu0 0
      %3529 = vmatpush1.bf16.msra.mxu0 0
      %3530 = vmatprep.subr.bf16.mxu0 0
      %3531 = vmatpush1.bf16.msra.mxu0 0
      %3532 = vmatprep.subr.bf16.mxu0 0
      %3533 = vmatpush1.bf16.msra.mxu0 0
      %3534 = vmatprep.subr.bf16.mxu0 0
      %3535 = vmatpush1.bf16.msra.mxu0 0
      %3536 = vmatprep.mubr.bf16.mxu0 0
      %3537 = vmatmul.mubr.bf16.gmra.mrb[0].mxu0 %v3499
      %v3538 = vpop.f32.mrb[0].mxu0
      %v3539 = vadd.f32 %v3484, %v3538
      %v3540 = vpop.f32.mrb[0].mxu0
      %v3541 = vpop.f32.mrb[0].mxu0
      %v3542 = vadd.f32 %v3484, %v3541
      %v3543 = vpop.f32.mrb[0].mxu0
      %3544 = vmatprep.mubr.bf16.mxu0 0
      %3545 = vmatmul.mubr.bf16.gmra.mrb[0].mxu0 %v3502
      %v3546 = vpop.f32.mrb[0].mxu0
      %v3547 = vadd.f32 %v3484, %v3546
      %v3548 = vpop.f32.mrb[0].mxu0
      %v3549 = vpop.f32.mrb[0].mxu0
      %v3550 = vadd.f32 %v3484, %v3549
      %v3551 = vpop.f32.mrb[0].mxu0
      %3552 = vdwg.mxu0
      %v3553 = vmax.f32 %v3539, 0.0
      %v3554 = vmax.f32 %v3542, 0.0
      %v3555 = vmax.f32 %v3547, 0.0
      %v3556 = vmax.f32 %v3550, 0.0
      %v3557 = vpack.c.bf16 %v3554, %v3553
      %v3558 = vpack.c.bf16 %v3556, %v3555
      %s3559 = smul.addr %s464, 4
      %s3560 = scalar_lea.vmem [#allocation21], %s3559
      %v3561 = vld [vmem:[%s3560] sm:$0xf]
      %v3562 = vld [vmem:[%s3560 + $0x4] sm:$0xf]
      %v3563 = vld [vmem:[%s3560 + $0x8] sm:$0xf]
      %v3564 = vld [vmem:[%s3560 + $0xc] sm:$0xf]
      %v3569 = vunpack.c.l.b16 %v3561
      %v3570 = vunpack.c.l.b16 %v3562
      %v3571 = vunpack.c.l.b16 %v3563
      %v3572 = vunpack.c.l.b16 %v3564
      %v3573 = vpack.c.b16 %v3570, %v3569
      %v3574 = vpack.c.b16 %v3572, %v3571
      %v3578 = vsel %vm388, %v3557, 0
      %v3581 = vsel %vm388, %v3558, 0
      %3583 = vmatprep.subr.bf16.mxu0 0
      %3584 = vmatpush1.bf16.msra.mxu0 %v3573
      %3585 = vmatprep.subr.bf16.mxu0 0
      %3586 = vmatpush1.bf16.msra.mxu0 %v3574
      %3587 = vmatprep.subr.bf16.mxu0 0
      %3588 = vmatpush1.bf16.msra.mxu0 0
      %3589 = vmatprep.subr.bf16.mxu0 0
      %3590 = vmatpush1.bf16.msra.mxu0 0
      %3591 = vmatprep.subr.bf16.mxu0 0
      %3592 = vmatpush1.bf16.msra.mxu0 0
      %3593 = vmatprep.subr.bf16.mxu0 0
      %3594 = vmatpush1.bf16.msra.mxu0 0
      %3595 = vmatprep.subr.bf16.mxu0 0
      %3596 = vmatpush1.bf16.msra.mxu0 0
      %3597 = vmatprep.subr.bf16.mxu0 0
      %3598 = vmatpush1.bf16.msra.mxu0 0
      %3599 = vmatprep.subr.bf16.mxu0 0
      %3600 = vmatpush1.bf16.msra.mxu0 0
      %3601 = vmatprep.subr.bf16.mxu0 0
      %3602 = vmatpush1.bf16.msra.mxu0 0
      %3603 = vmatprep.subr.bf16.mxu0 0
      %3604 = vmatpush1.bf16.msra.mxu0 0
      %3605 = vmatprep.subr.bf16.mxu0 0
      %3606 = vmatpush1.bf16.msra.mxu0 0
      %3607 = vmatprep.subr.bf16.mxu0 0
      %3608 = vmatpush1.bf16.msra.mxu0 0
      %3609 = vmatprep.subr.bf16.mxu0 0
      %3610 = vmatpush1.bf16.msra.mxu0 0
      %3611 = vmatprep.subr.bf16.mxu0 0
      %3612 = vmatpush1.bf16.msra.mxu0 0
      %3613 = vmatprep.subr.bf16.mxu0 0
      %3614 = vmatpush1.bf16.msra.mxu0 0
      %3615 = vmatprep.mubr.bf16.mxu0 0
      %3616 = vmatmul.mubr.bf16.gmra.mrb[0].mxu0 %v3578
      %v3617 = vpop.f32.mrb[0].mxu0
      %v3618 = vadd.f32 0.0, %v3617
      %v3619 = vpop.f32.mrb[0].mxu0
      %v3620 = vpop.f32.mrb[0].mxu0
      %v3621 = vadd.f32 0.0, %v3620
      %v3622 = vpop.f32.mrb[0].mxu0
      %3623 = vmatprep.mubr.bf16.mxu0 0
      %3624 = vmatmul.mubr.bf16.gmra.mrb[0].mxu0 %v3581
      %v3625 = vpop.f32.mrb[0].mxu0
      %v3626 = vadd.f32 0.0, %v3625
      %v3627 = vpop.f32.mrb[0].mxu0
      %v3628 = vpop.f32.mrb[0].mxu0
      %v3629 = vadd.f32 0.0, %v3628
      %v3630 = vpop.f32.mrb[0].mxu0
      %3631 = vdwg.mxu0
      %v3632 = vadd.f32 %v3390, %v3618
      %v3633 = vadd.f32 %v3391, %v3621
      %v3634 = vadd.f32 %v3392, %v3626
      %v3635 = vadd.f32 %v3393, %v3629
      %s3636 = scalar_lea.vmem %s16, %s375
      %v3637 = vld [vmem:[%s3636] sm:$0x1]
      %v3639 = vlaneseq
      %v3640 = vshrl.u32 %v3639, 7
      %v3641 = vsub.s32 0, %v3640
      %v3642 = vrot.slane %v3637, %v3641
      %v3644 = vadd.f32 %v3632, %v3642
      %v3645 = vadd.f32 %v3633, %v3642
      %v3646 = vadd.f32 %v3634, %v3642
      %v3647 = vadd.f32 %v3635, %v3642
    $region146: #{tpu_custom_call.1} parent=1 // loop_footer
      %s379 = sadd.s32 1, %s375
    $region147: #{tpu_custom_call.1} parent=1 // loop_footer_branch
      %374 = sbr.rel target = $region143
    $region148: #{tpu_custom_call.1} parent=1 // loop_exit
      _
    %v3648 = vld [vmem:[#allocation23] sm:$0x1]
    %v3650 = vlaneseq
    %v3651 = vshrl.u32 %v3650, 7
    %v3652 = vsub.s32 0, %v3651
    %v3653 = vrot.slane %v3648, %v3652
    %v3655 = vmul.f32 %v380, %v3653
    %v3656 = vmul.f32 %v381, %v3653
    %v3657 = vmul.f32 %v382, %v3653
    %v3658 = vmul.f32 %v383, %v3653
    %vm3659 = vcmask 261120
    %v3660 = vsel %vm3659, %v3655, 0.0
    %3661 = vadd.xlane.f32.xlu0 %v3660
    %v3662 = vpop.xlane.xlu0 %3661
    %v3663 = vsel %vm3659, %v3656, 0.0
    %3664 = vadd.xlane.f32.xlu0 %v3663
    %v3665 = vpop.xlane.xlu0 %3664
    %v3666 = vsel %vm3659, %v3657, 0.0
    %3667 = vadd.xlane.f32.xlu0 %v3666
    %v3668 = vpop.xlane.xlu0 %3667
    %v3669 = vsel %vm3659, %v3658, 0.0
    %3670 = vadd.xlane.f32.xlu0 %v3669
    %v3671 = vpop.xlane.xlu0 %3670
    %v3672 = vld [vmem:[#allocation2] sm:$0x1]
    %v3674 = vlaneseq
    %v3675 = vshrl.u32 %v3674, 7
    %v3676 = vsub.s32 0, %v3675
    %v3677 = vrot.slane %v3672, %v3676
    %3678 = vset.pattern.permute.xlu0 0
    %3679 = vperm.xlu0 %3678, %v3677
    %v3680 = vpop.permute.xlu0 %3679
    %v3682 = vadd.f32 %v3662, %v3680
    %v3683 = vadd.f32 %v3665, %v3680
    %v3684 = vadd.f32 %v3668, %v3680
    %v3685 = vadd.f32 %v3671, %v3680
    %vm3686 = vcmp.ge.f32.partialorder %v3682, 0.0
    %vm3687 = vcmp.ge.f32.partialorder %v3683, 0.0
    %vm3688 = vcmp.ge.f32.partialorder %v3684, 0.0
    %vm3689 = vcmp.ge.f32.partialorder %v3685, 0.0
    %v3690 = vmul.f32 %v3682, 0.01
    %v3691 = vmul.f32 %v3683, 0.01
    %v3692 = vmul.f32 %v3684, 0.01
    %v3693 = vmul.f32 %v3685, 0.01
    %v3694 = vsel %vm3686, %v3682, %v3690
    %v3695 = vsel %vm3687, %v3683, %v3691
    %v3696 = vsel %vm3688, %v3684, %v3692
    %v3697 = vsel %vm3689, %v3685, %v3693
    %v3698 = vld [vmem:[#allocation6] sm:$0x3]
    %vm3699 = vcmp.ge.f32.partialorder %v3698, 0.0
    %v3700 = vmul.f32 %v3698, 0.01
    %v3701 = vsel %vm3699, %v3698, %v3700
    %v3702 = vld [vmem:[%s19] sm:$0xff]
    %v3703 = vld [vmem:[%s19 + $0x8] sm:$0xff]
    %v3704 = vld [vmem:[%s20] sm:$0xff]
    %v3705 = vld [vmem:[%s20 + $0x8] sm:$0xff]
    %vm3706 = vcmask 130048
    %v3708 = vsel %vm3706, %v3701, 0
    %3710 = vmatprep.subr.mxu0 0.0
    %3711 = vmatpush1.msra.mxu0 %v3704
    %3712 = vmatprep.subr.mxu0 0.0
    %3713 = vmatpush1.msra.mxu0 %v3705
    %3714 = vmatprep.subr.mxu0 0.0
    %3715 = vmatpush1.msra.mxu0 0.0
    %3716 = vmatprep.subr.mxu0 0.0
    %3717 = vmatpush1.msra.mxu0 0.0
    %3718 = vmatprep.subr.mxu0 0.0
    %3719 = vmatpush1.msra.mxu0 0.0
    %3720 = vmatprep.subr.mxu0 0.0
    %3721 = vmatpush1.msra.mxu0 0.0
    %3722 = vmatprep.subr.mxu0 0.0
    %3723 = vmatpush1.msra.mxu0 0.0
    %3724 = vmatprep.subr.mxu0 0.0
    %3725 = vmatpush1.msra.mxu0 0.0
    %3726 = vmatprep.subr.mxu0 0.0
    %3727 = vmatpush1.msra.mxu0 0.0
    %3728 = vmatprep.subr.mxu0 0.0
    %3729 = vmatpush1.msra.mxu0 0.0
    %3730 = vmatprep.subr.mxu0 0.0
    %3731 = vmatpush1.msra.mxu0 0.0
    %3732 = vmatprep.subr.mxu0 0.0
    %3733 = vmatpush1.msra.mxu0 0.0
    %3734 = vmatprep.subr.mxu0 0.0
    %3735 = vmatpush1.msra.mxu0 0.0
    %3736 = vmatprep.subr.mxu0 0.0
    %3737 = vmatpush1.msra.mxu0 0.0
    %3738 = vmatprep.subr.mxu0 0.0
    %3739 = vmatpush1.msra.mxu0 0.0
    %3740 = vmatprep.subr.mxu0 0.0
    %3741 = vmatpush1.msra.mxu0 0.0
    %3742 = vmatprep.subr.mxu0 0.0
    %3743 = vmatpush1.msra.mxu0 0.0
    %3744 = vmatprep.subr.mxu0 0.0
    %3745 = vmatpush1.msra.mxu0 0.0
    %3746 = vmatprep.subr.mxu0 0.0
    %3747 = vmatpush1.msra.mxu0 0.0
    %3748 = vmatprep.subr.mxu0 0.0
    %3749 = vmatpush1.msra.mxu0 0.0
    %3750 = vmatprep.subr.mxu0 0.0
    %3751 = vmatpush1.msra.mxu0 0.0
    %3752 = vmatprep.subr.mxu0 0.0
    %3753 = vmatpush1.msra.mxu0 0.0
    %3754 = vmatprep.subr.mxu0 0.0
    %3755 = vmatpush1.msra.mxu0 0.0
    %3756 = vmatprep.subr.mxu0 0.0
    %3757 = vmatpush1.msra.mxu0 0.0
    %3758 = vmatprep.subr.mxu0 0.0
    %3759 = vmatpush1.msra.mxu0 0.0
    %3760 = vmatprep.subr.mxu0 0.0
    %3761 = vmatpush1.msra.mxu0 0.0
    %3762 = vmatprep.subr.mxu0 0.0
    %3763 = vmatpush1.msra.mxu0 0.0
    %3764 = vmatprep.subr.mxu0 0.0
    %3765 = vmatpush1.msra.mxu0 0.0
    %3766 = vmatprep.subr.mxu0 0.0
    %3767 = vmatpush1.msra.mxu0 0.0
    %3768 = vmatprep.subr.mxu0 0.0
    %3769 = vmatpush1.msra.mxu0 0.0
    %3770 = vmatprep.subr.mxu0 0.0
    %3771 = vmatpush1.msra.mxu0 0.0
    %3772 = vmatprep.subr.mxu0 0.0
    %3773 = vmatpush1.msra.mxu0 0.0
    %3774 = vmatprep.mubr.f32.mxu0 0.0
    %3775 = vmatmul.mubr.f32.gmra.mrb[0].mxu0 %v3708
    %v3776 = vpop.f32.mrb[0].mxu0
    %v3777 = vadd.f32 0.0, %v3776
    %v3778 = vpop.f32.mrb[0].mxu0
    %3779 = vdwg.mxu0
    %v3784 = vlaneseq
    %v3785 = vand.u32 %v3784, 127
    %v3786 = vlaneseq
    %v3787 = vshrl.u32 %v3786, 7
    %v3788 = vsub.s32 %v3785, %v3787
    %v3789 = vrot.slane %v3694, %v3788
    %v3790 = vadd.s32 %v3785, 4294967288
    %v3791 = vlaneseq
    %v3792 = vshrl.u32 %v3791, 7
    %v3793 = vsub.s32 %v3790, %v3792
    %v3794 = vrot.slane %v3695, %v3793
    %vm3795 = vcmask 130112
    %v3796 = vsel %vm3795, %v3794, %v3789
    %v3797 = vlaneseq
    %v3798 = vshrl.u32 %v3797, 7
    %v3799 = vsub.s32 %v3785, %v3798
    %v3800 = vrot.slane %v3696, %v3799
    %v3801 = vlaneseq
    %v3802 = vshrl.u32 %v3801, 7
    %v3803 = vsub.s32 %v3790, %v3802
    %v3804 = vrot.slane %v3697, %v3803
    %v3805 = vsel %vm3795, %v3804, %v3800
    %vm3806 = vcmask 1041409
    %v3807 = vsel %vm3806, %v3805, %v3796
    %v3808 = vsel %vm3706, %v3807, 0
    %3810 = vmatprep.subr.mxu0 0.0
    %3811 = vmatpush1.msra.mxu0 %v3702
    %3812 = vmatprep.subr.mxu0 0.0
    %3813 = vmatpush1.msra.mxu0 %v3703
    %3814 = vmatprep.subr.mxu0 0.0
    %3815 = vmatpush1.msra.mxu0 0.0
    %3816 = vmatprep.subr.mxu0 0.0
    %3817 = vmatpush1.msra.mxu0 0.0
    %3818 = vmatprep.subr.mxu0 0.0
    %3819 = vmatpush1.msra.mxu0 0.0
    %3820 = vmatprep.subr.mxu0 0.0
    %3821 = vmatpush1.msra.mxu0 0.0
    %3822 = vmatprep.subr.mxu0 0.0
    %3823 = vmatpush1.msra.mxu0 0.0
    %3824 = vmatprep.subr.mxu0 0.0
    %3825 = vmatpush1.msra.mxu0 0.0
    %3826 = vmatprep.subr.mxu0 0.0
    %3827 = vmatpush1.msra.mxu0 0.0
    %3828 = vmatprep.subr.mxu0 0.0
    %3829 = vmatpush1.msra.mxu0 0.0
    %3830 = vmatprep.subr.mxu0 0.0
    %3831 = vmatpush1.msra.mxu0 0.0
    %3832 = vmatprep.subr.mxu0 0.0
    %3833 = vmatpush1.msra.mxu0 0.0
    %3834 = vmatprep.subr.mxu0 0.0
    %3835 = vmatpush1.msra.mxu0 0.0
    %3836 = vmatprep.subr.mxu0 0.0
    %3837 = vmatpush1.msra.mxu0 0.0
    %3838 = vmatprep.subr.mxu0 0.0
    %3839 = vmatpush1.msra.mxu0 0.0
    %3840 = vmatprep.subr.mxu0 0.0
    %3841 = vmatpush1.msra.mxu0 0.0
    %3842 = vmatprep.subr.mxu0 0.0
    %3843 = vmatpush1.msra.mxu0 0.0
    %3844 = vmatprep.subr.mxu0 0.0
    %3845 = vmatpush1.msra.mxu0 0.0
    %3846 = vmatprep.subr.mxu0 0.0
    %3847 = vmatpush1.msra.mxu0 0.0
    %3848 = vmatprep.subr.mxu0 0.0
    %3849 = vmatpush1.msra.mxu0 0.0
    %3850 = vmatprep.subr.mxu0 0.0
    %3851 = vmatpush1.msra.mxu0 0.0
    %3852 = vmatprep.subr.mxu0 0.0
    %3853 = vmatpush1.msra.mxu0 0.0
    %3854 = vmatprep.subr.mxu0 0.0
    %3855 = vmatpush1.msra.mxu0 0.0
    %3856 = vmatprep.subr.mxu0 0.0
    %3857 = vmatpush1.msra.mxu0 0.0
    %3858 = vmatprep.subr.mxu0 0.0
    %3859 = vmatpush1.msra.mxu0 0.0
    %3860 = vmatprep.subr.mxu0 0.0
    %3861 = vmatpush1.msra.mxu0 0.0
    %3862 = vmatprep.subr.mxu0 0.0
    %3863 = vmatpush1.msra.mxu0 0.0
    %3864 = vmatprep.subr.mxu0 0.0
    %3865 = vmatpush1.msra.mxu0 0.0
    %3866 = vmatprep.subr.mxu0 0.0
    %3867 = vmatpush1.msra.mxu0 0.0
    %3868 = vmatprep.subr.mxu0 0.0
    %3869 = vmatpush1.msra.mxu0 0.0
    %3870 = vmatprep.subr.mxu0 0.0
    %3871 = vmatpush1.msra.mxu0 0.0
    %3872 = vmatprep.subr.mxu0 0.0
    %3873 = vmatpush1.msra.mxu0 0.0
    %3874 = vmatprep.mubr.f32.mxu0 0.0
    %3875 = vmatmul.mubr.f32.gmra.mrb[0].mxu0 %v3808
    %v3876 = vpop.f32.mrb[0].mxu0
    %v3877 = vadd.f32 %v3777, %v3876
    %v3878 = vpop.f32.mrb[0].mxu0
    %3879 = vdwg.mxu0
    %v3880 = vld [vmem:[%s21] sm:$0x1]
    %v3882 = vlaneseq
    %v3883 = vshrl.u32 %v3882, 7
    %v3884 = vsub.s32 0, %v3883
    %v3885 = vrot.slane %v3880, %v3884
    %v3887 = vadd.f32 %v3877, %v3885
    %vm3888 = vcmask 58368
    %3889 = vst.msk [vmem:[#allocation24] sm:$0x3] %vm3888, %v3887
    // Predicated region
    $region149: #{tpu_custom_call.1} parent=1 // pred_check
      _
    $region150: #{tpu_custom_call.1} parent=1 // pred_check_branch
      %3891 = sbr.rel (0) target = $region152
    $region151: #{tpu_custom_call.1} parent=1 // pred_region
      %s3893 = ssub.s32 32, 32
      %3894 = vsyncadd [#allocation5], %s3893
      %s3896 = sshll.u32 [#allocation24], 4
      %s3897 = int_to_ptr.vmem [resolvable:$true] %s3896
      %3899 = dma.vmem_to_hbm [thread:$0]  %s3897, 32, %s22, [#allocation5]
    $region152: #{tpu_custom_call.1} parent=1 // pred_fallthru
      _
    // Predicated region
    $region153: #{tpu_custom_call.1} parent=1 // pred_check
      _
    $region154: #{tpu_custom_call.1} parent=1 // pred_check_branch
      %3901 = sbr.rel (0) target = $region156
    $region155: #{tpu_custom_call.1} parent=1 // pred_region
      %3902 = dma.done [#allocation5], 32
    $region156: #{tpu_custom_call.1} parent=1 // pred_fallthru
      _
    %3903 = vsyncpa [#allocation4], 1
    %3904 = vsyncpa [#allocation7], 1
    %3905 = vsyncpa [#allocation10], 1
    %3906 = vsyncpa [#allocation13], 1
    %3907 = vsyncpa [#allocation16], 1
    %3908 = vsyncpa [#allocation19], 1
    %3909 = vsyncpa [#allocation22], 1
    %3910 = vsyncpa [#allocation5], 1

</llo_original>
